<compile_context>
chip_gen: v7x
topology: tpu7x:2x2x1
jax: 0.10.0
libtpu: 0.0.40
codegen_flags: <defaults>
</compile_context>

<pallas_src>
import functools
import math

import jax
import jax.numpy as jnp
from jax.experimental import pallas as pl
from jax.experimental.pallas import tpu as pltpu

_BF16 = jnp.bfloat16
_NEG_INF = -1e9
_VMEM_LIMIT = 32 * 1024 * 1024  # safe on v5e/v6e/v7x (v7x scoped default is 32 MiB)


# ----------------------------- in-kernel math helpers -----------------------------

def _softplus(y):
    # numerically stable softplus (f32)
    return jnp.maximum(y, 0.0) + jnp.log(1.0 + jnp.exp(-jnp.abs(y)))


def _gelu(y):
    # TODO(synk): torch.nn.GELU defaults to exact erf; tanh approximation used here.
    return jax.nn.gelu(y, approximate=True)


def _softmax(x, axis):
    m = jnp.max(x, axis=axis, keepdims=True)
    e = jnp.exp(x - m)
    return e * pl.reciprocal(jnp.sum(e, axis=axis, keepdims=True), approx=True)


def _layernorm(x, g, b, eps=1e-5):
    mu = jnp.mean(x, axis=-1, keepdims=True)
    var = jnp.mean((x - mu) ** 2, axis=-1, keepdims=True)
    return (x - mu) * jax.lax.rsqrt(var + eps) * g + b


# ----------------------------- generic tiled linear (time MLP) -----------------------------

def _linear_kernel(x_ref, w_ref, b_ref, o_ref, acc_ref, *, act, nk):
    @pl.when(pl.program_id(2) == 0)
    def _():
        acc_ref[...] = jnp.zeros_like(acc_ref)

    acc_ref[...] += jnp.dot(x_ref[...].astype(_BF16), w_ref[...],
                            preferred_element_type=jnp.float32)

    @pl.when(pl.program_id(2) == nk - 1)
    def _():
        y = acc_ref[...] + b_ref[...]
        if act == "softplus":
            y = _softplus(y)
        elif act == "gelu":
            y = _gelu(y)
        o_ref[...] = y


def _pick_tile(dim, candidates):
    for c in candidates:
        if dim % c == 0:
            return c
    return dim


def linear_pallas(x, w, b, act="none"):
    """Tiled fused matmul + bias + activation.  x:(M,K) f32, w:(K,N), b:(N,) -> (M,N) f32."""
    M, K = x.shape
    N = w.shape[1]
    tm = M if M <= 256 else _pick_tile(M, (256, 128, 64, 32, 16, 8))
    tn = N if N <= 512 else _pick_tile(N, (512, 384, 256, 128))
    tk = K if K <= 512 else _pick_tile(K, (512, 384, 256, 128))
    nk = K // tk
    kern = functools.partial(_linear_kernel, act=act, nk=nk)
    return pl.pallas_call(
        kern,
        out_shape=jax.ShapeDtypeStruct((M, N), jnp.float32),
        grid=(M // tm, N // tn, nk),
        in_specs=[
            pl.BlockSpec((tm, tk), lambda i, j, k: (i, k)),
            pl.BlockSpec((tk, tn), lambda i, j, k: (k, j)),
            pl.BlockSpec((1, tn), lambda i, j, k: (0, j)),
        ],
        out_specs=pl.BlockSpec((tm, tn), lambda i, j, k: (i, j)),
        scratch_shapes=[pltpu.VMEM((tm, tn), jnp.float32)],
        compiler_params=pltpu.CompilerParams(
            dimension_semantics=("parallel", "parallel", "arbitrary"),
            vmem_limit_bytes=_VMEM_LIMIT),
    )(x, w.astype(_BF16), b.reshape(1, N).astype(jnp.float32))


# ----------------------------- fused half-layer: attention + feed-forward --------------------

def _layer_half_kernel(*refs, heads, is_cross, has_mask, has_te):
    idx = 0
    x_ref = refs[idx]; idx += 1
    ctx_ref = mask_ref = te_ref = None
    if is_cross:
        ctx_ref = refs[idx]; idx += 1
        if has_mask:
            mask_ref = refs[idx]; idx += 1
    if has_te:
        te_ref = refs[idx]; idx += 1
    (alng_ref, alnb_ref, wq_ref, wk_ref, wv_ref, wo_ref, bo_ref,
     flng_ref, flnb_ref, w1_ref, b1_ref, w2_ref, b2_ref, o_ref) = refs[idx:idx + 14]

    # ---- attention residual sub-block ----
    x = x_ref[0]                                     # (S, D) f32 residual stream
    if has_te:
        x = x + te_ref[0]                            # additive time conditioning
    h = _layernorm(x, alng_ref[...], alnb_ref[...])  # f32
    h16 = h.astype(_BF16)

    q = jnp.dot(h16, wq_ref[...], preferred_element_type=jnp.float32)
    src16 = ctx_ref[0].astype(_BF16) if is_cross else h16
    k = jnp.dot(src16, wk_ref[...], preferred_element_type=jnp.float32)
    v = jnp.dot(src16, wv_ref[...], preferred_element_type=jnp.float32)

    if is_cross and has_mask:
        m = mask_ref[0]                              # (Sk, 1), 1.0 = keep
        k = jnp.where(m > 0.5, k, _NEG_INF)
        v = jnp.where(m > 0.5, v, 0.0)

    D = q.shape[-1]
    dh = D // heads
    scale = dh ** -0.5

    # lucidrains non-causal linear attention per head:
    #   q = softmax(q, -1) * dh^-0.5 ; k = softmax(k, seq) ; out = q @ (k^T @ v)
    parts = []
    for hd in range(heads):
        lo = hd * dh
        qh = _softmax(q[:, lo:lo + dh], axis=-1) * scale        # (Sq, dh) f32
        kh = _softmax(k[:, lo:lo + dh], axis=0)                 # (Sk, dh) f32
        vh = v[:, lo:lo + dh]
        ctxh = jnp.dot(kh.T.astype(_BF16), vh.astype(_BF16),
                       preferred_element_type=jnp.float32)      # (dh, dh)
        parts.append(jnp.dot(qh.astype(_BF16), ctxh.astype(_BF16),
                             preferred_element_type=jnp.float32))
    attn = jnp.concatenate(parts, axis=-1).astype(_BF16)        # (Sq, D)

    x = x + jnp.dot(attn, wo_ref[...], preferred_element_type=jnp.float32) + bo_ref[...]

    # ---- feed-forward residual sub-block (fused; no HBM round-trip of the residual) ----
    hf = _layernorm(x, flng_ref[...], flnb_ref[...]).astype(_BF16)
    y = jnp.dot(hf, w1_ref[...], preferred_element_type=jnp.float32) + b1_ref[...]
    y = _gelu(y).astype(_BF16)                                  # GELU in f32, cast after
    o_ref[0] = x + jnp.dot(y, w2_ref[...], preferred_element_type=jnp.float32) + b2_ref[...]


def layer_half_pallas(x, ap, fp, heads, te=None, context=None, context_mask=None):
    """One fused residual half-layer: (self|cross)-attention block followed by its FF block."""
    B, S, D = x.shape
    Dff = fp["w1"].shape[1]
    is_cross = context is not None
    has_mask = is_cross and (context_mask is not None)
    has_te = te is not None

    inputs = [x]
    in_specs = [pl.BlockSpec((1, S, D), lambda b: (b, 0, 0))]
    if is_cross:
        Sk = context.shape[1]
        inputs.append(context)
        in_specs.append(pl.BlockSpec((1, Sk, D), lambda b: (b, 0, 0)))
        if has_mask:
            inputs.append(context_mask.astype(jnp.float32).reshape(B, Sk, 1))
            in_specs.append(pl.BlockSpec((1, Sk, 1), lambda b: (b, 0, 0)))
    if has_te:
        inputs.append(te.reshape(B, 1, D))
        in_specs.append(pl.BlockSpec((1, 1, D), lambda b: (b, 0, 0)))

    const2 = lambda b: (0, 0)
    inputs += [ap["ln_g"].reshape(1, D), ap["ln_b"].reshape(1, D),
               ap["wq"].astype(_BF16), ap["wk"].astype(_BF16),
               ap["wv"].astype(_BF16), ap["wo"].astype(_BF16),
               ap["bo"].reshape(1, D),
               fp["ln_g"].reshape(1, D), fp["ln_b"].reshape(1, D),
               fp["w1"].astype(_BF16), fp["b1"].reshape(1, Dff),
               fp["w2"].astype(_BF16), fp["b2"].reshape(1, D)]
    in_specs += [pl.BlockSpec((1, D), const2), pl.BlockSpec((1, D), const2),
                 pl.BlockSpec((D, D), const2), pl.BlockSpec((D, D), const2),
                 pl.BlockSpec((D, D), const2), pl.BlockSpec((D, D), const2),
                 pl.BlockSpec((1, D), const2),
                 pl.BlockSpec((1, D), const2), pl.BlockSpec((1, D), const2),
                 pl.BlockSpec((D, Dff), const2), pl.BlockSpec((1, Dff), const2),
                 pl.BlockSpec((Dff, D), const2), pl.BlockSpec((1, D), const2)]

    kern = functools.partial(_layer_half_kernel, heads=heads,
                             is_cross=is_cross, has_mask=has_mask, has_te=has_te)
    return pl.pallas_call(
        kern,
        out_shape=jax.ShapeDtypeStruct((B, S, D), jnp.float32),
        grid=(B,),
        in_specs=in_specs,
        out_specs=pl.BlockSpec((1, S, D), lambda b: (b, 0, 0)),
        compiler_params=pltpu.CompilerParams(
            dimension_semantics=("parallel",),
            vmem_limit_bytes=_VMEM_LIMIT),
    )(*inputs)


# ----------------------------- fused output head: LN -> Linear -> permute -> Rezero --------

def _head_kernel(alpha_ref, x_ref, lng_ref, lnb_ref, w_ref, b_ref, o_ref):
    x = x_ref[0]                                                      # (S, D) f32
    h = _layernorm(x, lng_ref[...], lnb_ref[...]).astype(_BF16)
    # out^T = (h @ W)^T computed directly as dot_general(W, h) contracting D -> (C, S),
    # so the stored output is lane-dense along S (not the tiny num_classes axis).
    out_t = jax.lax.dot_general(w_ref[...], h, (((0,), (1,)), ((), ())),
                                preferred_element_type=jnp.float32)   # (C, S)
    o_ref[0] = alpha_ref[0, 0] * (out_t + b_ref[...])


def output_head_pallas(x, g, b, w_out, b_out, alpha):
    B, S, D = x.shape
    C = w_out.shape[1]
    const2 = lambda bb: (0, 0)
    return pl.pallas_call(
        _head_kernel,
        out_shape=jax.ShapeDtypeStruct((B, C, S), jnp.float32),
        grid=(B,),
        in_specs=[
            pl.BlockSpec(memory_space=pltpu.MemorySpace.SMEM),        # alpha scalar
            pl.BlockSpec((1, S, D), lambda bb: (bb, 0, 0)),
            pl.BlockSpec((1, D), const2), pl.BlockSpec((1, D), const2),
            pl.BlockSpec((D, C), const2), pl.BlockSpec((C, 1), const2),
        ],
        out_specs=pl.BlockSpec((1, C, S), lambda bb: (bb, 0, 0)),
        compiler_params=pltpu.CompilerParams(
            dimension_semantics=("parallel",),
            vmem_limit_bytes=_VMEM_LIMIT),
    )(alpha.reshape(1, 1).astype(jnp.float32), x,
      g.reshape(1, D), b.reshape(1, D),
      w_out.astype(_BF16), b_out.reshape(C, 1).astype(jnp.float32))


# ----------------------------- model glue (plain JAX) -----------------------------

def sinusoidal_time_emb(t, dim, num_steps, rescale_steps=4000.0):
    t = t.astype(jnp.float32) / float(num_steps) * float(rescale_steps)
    half = dim // 2
    emb = math.log(10000.0) / (half - 1)
    freqs = jnp.exp(jnp.arange(half, dtype=jnp.float32) * (-emb))
    arg = t[:, None] * freqs[None, :]
    return jnp.concatenate([jnp.sin(arg), jnp.cos(arg)], axis=-1)


def dynamics_transformer_forward(params, cfg, x, t, context_image, context_mask=None):
    B, S = x.shape
    D = cfg["dim"]
    nb, dep = cfg["n_blocks"], cfg["depth"]

    # time conditioning: sinusoidal -> Linear -> softplus -> Linear (tiled fused linears)
    te = sinusoidal_time_emb(t, D, cfg["num_timesteps"])                         # (B, D)
    te = linear_pallas(te, params["time_w1"], params["time_b1"], act="softplus")
    te = linear_pallas(te, params["time_w2"], params["time_b2"])                 # (B, D*nb*dep)
    te = te.reshape(B, D, nb, dep)

    h = params["input_emb"][x] + params["pos_emb"][None, :S, :]                  # (B, S, D)

    for i in range(nb):
        for j in range(dep):
            lp = params["layers"][i][j]
            # self-attention (+time-embedding add) fused with ff1 in one kernel
            h = layer_half_pallas(h, lp["self_attn"], lp["ff1"], cfg["heads"],
                                  te=te[:, :, i, j])
            # cross-attention (+optional context mask) fused with ff2 in one kernel
            h = layer_half_pallas(h, lp["cross_attn"], lp["ff2"], cfg["heads"],
                                  context=context_image, context_mask=context_mask)

    # final LN + output Linear + permute(0,2,1) + Rezero alpha, fused
    return output_head_pallas(h, params["norm_g"], params["norm_b"],
                              params["out_w"], params["out_b"], params["alpha"])


def init_params(key, cfg):
    D, C = cfg["dim"], cfg["num_classes"]
    nb, dep = cfg["n_blocks"], cfg["depth"]
    Smax, mult = cfg["max_seq_len"], 4
    keys = list(jax.random.split(key, 8 + 16 * nb * dep))
    kit = iter(keys)

    def nrm(shape, scale=0.02):
        return (scale * jax.random.normal(next(kit), shape)).astype(jnp.float32)

    zeros = lambda s: jnp.zeros(s, jnp.float32)
    ones = lambda s: jnp.ones(s, jnp.float32)

    def attn_params():
        return dict(ln_g=ones((D,)), ln_b=zeros((D,)),
                    wq=nrm((D, D)), wk=nrm((D, D)), wv=nrm((D, D)),
                    wo=nrm((D, D)), bo=zeros((D,)))

    def ff_params():
        return dict(ln_g=ones((D,)), ln_b=zeros((D,)),
                    w1=nrm((D, mult * D)), b1=zeros((mult * D,)),
                    w2=nrm((mult * D, D)), b2=zeros((D,)))

    layers = []
    for _ in range(nb):
        block = []
        for _ in range(dep):
            block.append(dict(self_attn=attn_params(), ff1=ff_params(),
                              cross_attn=attn_params(), ff2=ff_params()))
        layers.append(block)

    return dict(
        input_emb=nrm((C, D)),
        pos_emb=nrm((Smax, D)),
        time_w1=nrm((D, mult * D)), time_b1=zeros((mult * D,)),
        time_w2=nrm((mult * D, D * nb * dep)), time_b2=zeros((D * nb * dep,)),
        layers=layers,
        norm_g=ones((D,)), norm_b=zeros((D,)),
        out_w=nrm((D, C)), out_b=zeros((C,)),
        alpha=zeros((1,)),           # Rezero: torch.zeros(1) -> output is exactly 0 * x
    )


if __name__ == "__main__":
    cfg = dict(num_classes=4, dim=32, heads=4, depth=2, n_blocks=1,
               max_seq_len=8, num_timesteps=1000)
    B, S = 2, 8

    key = jax.random.PRNGKey(0)
    kp, kx, kt, kc = jax.random.split(key, 4)
    params = init_params(kp, cfg)

    x = jax.random.randint(kx, (B, S), 0, cfg["num_classes"], dtype=jnp.int32)
    t = jax.random.randint(kt, (B,), 0, cfg["num_timesteps"], dtype=jnp.int32)
    context_image = jax.random.normal(kc, (B, S, cfg["dim"]), dtype=jnp.float32)

    @jax.jit
    def run(x, t, ctx):
        return dynamics_transformer_forward(params, cfg, x, t, ctx, context_mask=None)

    out = run(x, t, context_image)
    out = jax.block_until_ready(out)

    assert out.shape == (B, cfg["num_classes"], S), out.shape
    assert bool(jnp.all(jnp.isfinite(out)))
    print("KERNEL_OK")
</pallas_src>

<mosaic_0001>
module attributes {stable_mosaic.version = 11 : i64} {
  func.func @_linear_kernel(%arg0: i32, %arg1: i32, %arg2: i32, %arg3: memref<2x32xf32, #tpu.memory_space<vmem>>, %arg4: memref<32x128xbf16, #tpu.memory_space<vmem>>, %arg5: memref<1x128xf32, #tpu.memory_space<vmem>>, %arg6: memref<2x128xf32, #tpu.memory_space<vmem>>, %arg7: memref<2x128xf32, #tpu.memory_space<vmem>>) attributes {dimension_semantics = [#tpu.dimension_semantics<parallel>, #tpu.dimension_semantics<parallel>, #tpu.dimension_semantics<arbitrary>], iteration_bounds = array<i64: 1, 1, 1>, scalar_prefetch = 0 : i64, scratch_operands = 1 : i64, tpu.core_type = #tpu.core_type<tc>, window_params = [{transform_indices = @transform_0, window_bounds = array<i64: 2, 32>}, {transform_indices = @transform_1, window_bounds = array<i64: 32, 128>}, {transform_indices = @transform_2, window_bounds = array<i64: 1, 128>}, {transform_indices = @transform_3, window_bounds = array<i64: 2, 128>}]} {
    %c0_i32 = arith.constant 0 : i32
    %0 = arith.cmpi eq, %arg2, %c0_i32 : i32
    %1 = arith.extui %0 : i1 to i32
    %c0_i32_0 = arith.constant 0 : i32
    %2 = arith.cmpi ne, %1, %c0_i32_0 : i32
    scf.if %2 {
      %cst_10 = arith.constant 0.000000e+00 : f32
      %13 = vector.broadcast %cst_10 : f32 to vector<2x128xf32>
      %c0_11 = arith.constant 0 : index
      %c0_12 = arith.constant 0 : index
      %14 = vector.load %arg7[%c0_11, %c0_12] : memref<2x128xf32, #tpu.memory_space<vmem>>, vector<2x128xf32>
      tpu.vector_store %arg7[%c0_11, %c0_12], %13 {strides = array<i32>} : memref<2x128xf32, #tpu.memory_space<vmem>>, vector<2x128xf32>,
    } else {
    }
    %c0 = arith.constant 0 : index
    %c0_1 = arith.constant 0 : index
    %3 = vector.load %arg7[%c0, %c0_1] : memref<2x128xf32, #tpu.memory_space<vmem>>, vector<2x128xf32>
    %c0_2 = arith.constant 0 : index
    %c0_3 = arith.constant 0 : index
    %4 = vector.load %arg3[%c0_2, %c0_3] : memref<2x32xf32, #tpu.memory_space<vmem>>, vector<2x32xf32>
    %5 = arith.truncf %4 : vector<2x32xf32> to vector<2x32xbf16>
    %c0_4 = arith.constant 0 : index
    %c0_5 = arith.constant 0 : index
    %6 = vector.load %arg4[%c0_4, %c0_5] : memref<32x128xbf16, #tpu.memory_space<vmem>>, vector<32x128xbf16>
    %cst = arith.constant dense<0.000000e+00> : vector<2x128xf32>
    %7 = tpu.matmul %5, %6, %cst {dimension_numbers = #tpu.dot_dimension_numbers<[1], [0], [0], [1], [0, 0, 1, 1], [], []>} : vector<2x32xbf16>, vector<32x128xbf16>, vector<2x128xf32> -> vector<2x128xf32>
    %8 = arith.addf %3, %7 : vector<2x128xf32>
    %c0_6 = arith.constant 0 : index
    %c0_7 = arith.constant 0 : index
    %9 = vector.load %arg7[%c0_6, %c0_7] : memref<2x128xf32, #tpu.memory_space<vmem>>, vector<2x128xf32>
    tpu.vector_store %arg7[%c0_6, %c0_7], %8 {strides = array<i32>} : memref<2x128xf32, #tpu.memory_space<vmem>>, vector<2x128xf32>,
    %c0_i32_8 = arith.constant 0 : i32
    %10 = arith.cmpi eq, %arg2, %c0_i32_8 : i32
    %11 = arith.extui %10 : i1 to i32
    %c0_i32_9 = arith.constant 0 : i32
    %12 = arith.cmpi ne, %11, %c0_i32_9 : i32
    scf.if %12 {
      %c0_10 = arith.constant 0 : index
      %c0_11 = arith.constant 0 : index
      %13 = vector.load %arg7[%c0_10, %c0_11] : memref<2x128xf32, #tpu.memory_space<vmem>>, vector<2x128xf32>
      %c0_12 = arith.constant 0 : index
      %c0_13 = arith.constant 0 : index
      %14 = vector.load %arg5[%c0_12, %c0_13] : memref<1x128xf32, #tpu.memory_space<vmem>>, vector<1x128xf32>
      %15 = vector.broadcast %14 : vector<1x128xf32> to vector<2x128xf32>
      %16 = arith.addf %13, %15 : vector<2x128xf32>
      %cst_14 = arith.constant 0.000000e+00 : f32
      %17 = vector.broadcast %cst_14 : f32 to vector<2x128xf32>
      %18 = arith.maximumf %16, %17 : vector<2x128xf32>
      %19 = math.absf %16 : vector<2x128xf32>
      %cst_15 = arith.constant 0.000000e+00 : f32
      %20 = vector.broadcast %cst_15 : f32 to vector<2x128xf32>
      %21 = arith.subf %20, %19 : vector<2x128xf32>
      %22 = math.exp %21 : vector<2x128xf32>
      %cst_16 = arith.constant 1.000000e+00 : f32
      %23 = vector.broadcast %cst_16 : f32 to vector<2x128xf32>
      %24 = arith.addf %23, %22 : vector<2x128xf32>
      %25 = math.log %24 : vector<2x128xf32>
      %26 = arith.addf %18, %25 : vector<2x128xf32>
      %c0_17 = arith.constant 0 : index
      %c0_18 = arith.constant 0 : index
      %27 = vector.load %arg6[%c0_17, %c0_18] : memref<2x128xf32, #tpu.memory_space<vmem>>, vector<2x128xf32>
      tpu.vector_store %arg6[%c0_17, %c0_18], %26 {strides = array<i32>} : memref<2x128xf32, #tpu.memory_space<vmem>>, vector<2x128xf32>,
    } else {
    }
    return
  }
  func.func @transform_0(%arg0: i32, %arg1: i32, %arg2: i32) -> (i32, i32) {
    %c0_i32 = arith.constant 0 : i32
    return %arg0, %arg2 : i32, i32
  }
  func.func @transform_1(%arg0: i32, %arg1: i32, %arg2: i32) -> (i32, i32) {
    %c0_i32 = arith.constant 0 : i32
    return %arg2, %arg1 : i32, i32
  }
  func.func @transform_2(%arg0: i32, %arg1: i32, %arg2: i32) -> (i32, i32) {
    %c0_i32 = arith.constant 0 : i32
    %c0_i32_0 = arith.constant 0 : i32
    return %c0_i32, %arg1 : i32, i32
  }
  func.func @transform_3(%arg0: i32, %arg1: i32, %arg2: i32) -> (i32, i32) {
    %c0_i32 = arith.constant 0 : i32
    return %arg0, %arg1 : i32, i32
  }
}

module attributes {stable_mosaic.version = 11 : i64} {
  func.func @_linear_kernel(%arg0: i32, %arg1: i32, %arg2: i32, %arg3: memref<2x128xf32, #tpu.memory_space<vmem>>, %arg4: memref<128x64xbf16, #tpu.memory_space<vmem>>, %arg5: memref<1x64xf32, #tpu.memory_space<vmem>>, %arg6: memref<2x64xf32, #tpu.memory_space<vmem>>, %arg7: memref<2x64xf32, #tpu.memory_space<vmem>>) attributes {dimension_semantics = [#tpu.dimension_semantics<parallel>, #tpu.dimension_semantics<parallel>, #tpu.dimension_semantics<arbitrary>], iteration_bounds = array<i64: 1, 1, 1>, scalar_prefetch = 0 : i64, scratch_operands = 1 : i64, tpu.core_type = #tpu.core_type<tc>, window_params = [{transform_indices = @transform_0, window_bounds = array<i64: 2, 128>}, {transform_indices = @transform_1, window_bounds = array<i64: 128, 64>}, {transform_indices = @transform_2, window_bounds = array<i64: 1, 64>}, {transform_indices = @transform_3, window_bounds = array<i64: 2, 64>}]} {
    %c0_i32 = arith.constant 0 : i32
    %0 = arith.cmpi eq, %arg2, %c0_i32 : i32
    %1 = arith.extui %0 : i1 to i32
    %c0_i32_0 = arith.constant 0 : i32
    %2 = arith.cmpi ne, %1, %c0_i32_0 : i32
    scf.if %2 {
      %cst_10 = arith.constant 0.000000e+00 : f32
      %13 = vector.broadcast %cst_10 : f32 to vector<2x64xf32>
      %c0_11 = arith.constant 0 : index
      %c0_12 = arith.constant 0 : index
      %14 = vector.load %arg7[%c0_11, %c0_12] : memref<2x64xf32, #tpu.memory_space<vmem>>, vector<2x64xf32>
      tpu.vector_store %arg7[%c0_11, %c0_12], %13 {strides = array<i32>} : memref<2x64xf32, #tpu.memory_space<vmem>>, vector<2x64xf32>,
    } else {
    }
    %c0 = arith.constant 0 : index
    %c0_1 = arith.constant 0 : index
    %3 = vector.load %arg7[%c0, %c0_1] : memref<2x64xf32, #tpu.memory_space<vmem>>, vector<2x64xf32>
    %c0_2 = arith.constant 0 : index
    %c0_3 = arith.constant 0 : index
    %4 = vector.load %arg3[%c0_2, %c0_3] : memref<2x128xf32, #tpu.memory_space<vmem>>, vector<2x128xf32>
    %5 = arith.truncf %4 : vector<2x128xf32> to vector<2x128xbf16>
    %c0_4 = arith.constant 0 : index
    %c0_5 = arith.constant 0 : index
    %6 = vector.load %arg4[%c0_4, %c0_5] : memref<128x64xbf16, #tpu.memory_space<vmem>>, vector<128x64xbf16>
    %cst = arith.constant dense<0.000000e+00> : vector<2x64xf32>
    %7 = tpu.matmul %5, %6, %cst {dimension_numbers = #tpu.dot_dimension_numbers<[1], [0], [0], [1], [0, 0, 1, 1], [], []>} : vector<2x128xbf16>, vector<128x64xbf16>, vector<2x64xf32> -> vector<2x64xf32>
    %8 = arith.addf %3, %7 : vector<2x64xf32>
    %c0_6 = arith.constant 0 : index
    %c0_7 = arith.constant 0 : index
    %9 = vector.load %arg7[%c0_6, %c0_7] : memref<2x64xf32, #tpu.memory_space<vmem>>, vector<2x64xf32>
    tpu.vector_store %arg7[%c0_6, %c0_7], %8 {strides = array<i32>} : memref<2x64xf32, #tpu.memory_space<vmem>>, vector<2x64xf32>,
    %c0_i32_8 = arith.constant 0 : i32
    %10 = arith.cmpi eq, %arg2, %c0_i32_8 : i32
    %11 = arith.extui %10 : i1 to i32
    %c0_i32_9 = arith.constant 0 : i32
    %12 = arith.cmpi ne, %11, %c0_i32_9 : i32
    scf.if %12 {
      %c0_10 = arith.constant 0 : index
      %c0_11 = arith.constant 0 : index
      %13 = vector.load %arg7[%c0_10, %c0_11] : memref<2x64xf32, #tpu.memory_space<vmem>>, vector<2x64xf32>
      %c0_12 = arith.constant 0 : index
      %c0_13 = arith.constant 0 : index
      %14 = vector.load %arg5[%c0_12, %c0_13] : memref<1x64xf32, #tpu.memory_space<vmem>>, vector<1x64xf32>
      %15 = vector.broadcast %14 : vector<1x64xf32> to vector<2x64xf32>
      %16 = arith.addf %13, %15 : vector<2x64xf32>
      %c0_14 = arith.constant 0 : index
      %c0_15 = arith.constant 0 : index
      %17 = vector.load %arg6[%c0_14, %c0_15] : memref<2x64xf32, #tpu.memory_space<vmem>>, vector<2x64xf32>
      tpu.vector_store %arg6[%c0_14, %c0_15], %16 {strides = array<i32>} : memref<2x64xf32, #tpu.memory_space<vmem>>, vector<2x64xf32>,
    } else {
    }
    return
  }
  func.func @transform_0(%arg0: i32, %arg1: i32, %arg2: i32) -> (i32, i32) {
    %c0_i32 = arith.constant 0 : i32
    return %arg0, %arg2 : i32, i32
  }
  func.func @transform_1(%arg0: i32, %arg1: i32, %arg2: i32) -> (i32, i32) {
    %c0_i32 = arith.constant 0 : i32
    return %arg2, %arg1 : i32, i32
  }
  func.func @transform_2(%arg0: i32, %arg1: i32, %arg2: i32) -> (i32, i32) {
    %c0_i32 = arith.constant 0 : i32
    %c0_i32_0 = arith.constant 0 : i32
    return %c0_i32, %arg1 : i32, i32
  }
  func.func @transform_3(%arg0: i32, %arg1: i32, %arg2: i32) -> (i32, i32) {
    %c0_i32 = arith.constant 0 : i32
    return %arg0, %arg1 : i32, i32
  }
}

module attributes {stable_mosaic.version = 11 : i64} {
  func.func @_layer_half_kernel(%arg0: i32, %arg1: memref<1x8x32xf32, #tpu.memory_space<vmem>>, %arg2: memref<1x1x32xf32, #tpu.memory_space<vmem>>, %arg3: memref<1x32xf32, #tpu.memory_space<vmem>>, %arg4: memref<1x32xf32, #tpu.memory_space<vmem>>, %arg5: memref<32x32xbf16, #tpu.memory_space<vmem>>, %arg6: memref<32x32xbf16, #tpu.memory_space<vmem>>, %arg7: memref<32x32xbf16, #tpu.memory_space<vmem>>, %arg8: memref<32x32xbf16, #tpu.memory_space<vmem>>, %arg9: memref<1x32xf32, #tpu.memory_space<vmem>>, %arg10: memref<1x32xf32, #tpu.memory_space<vmem>>, %arg11: memref<1x32xf32, #tpu.memory_space<vmem>>, %arg12: memref<32x128xbf16, #tpu.memory_space<vmem>>, %arg13: memref<1x128xf32, #tpu.memory_space<vmem>>, %arg14: memref<128x32xbf16, #tpu.memory_space<vmem>>, %arg15: memref<1x32xf32, #tpu.memory_space<vmem>>, %arg16: memref<1x8x32xf32, #tpu.memory_space<vmem>>) attributes {dimension_semantics = [#tpu.dimension_semantics<parallel>], iteration_bounds = array<i64: 2>, scalar_prefetch = 0 : i64, scratch_operands = 0 : i64, tpu.core_type = #tpu.core_type<tc>, window_params = [{transform_indices = @transform_0, window_bounds = array<i64: 1, 8, 32>}, {transform_indices = @transform_1, window_bounds = array<i64: 1, 1, 32>}, {pipeline_mode = #tpu.pipeline_mode<synchronous>, transform_indices = @transform_2, window_bounds = array<i64: 1, 32>}, {pipeline_mode = #tpu.pipeline_mode<synchronous>, transform_indices = @transform_3, window_bounds = array<i64: 1, 32>}, {pipeline_mode = #tpu.pipeline_mode<synchronous>, transform_indices = @transform_4, window_bounds = array<i64: 32, 32>}, {pipeline_mode = #tpu.pipeline_mode<synchronous>, transform_indices = @transform_5, window_bounds = array<i64: 32, 32>}, {pipeline_mode = #tpu.pipeline_mode<synchronous>, transform_indices = @transform_6, window_bounds = array<i64: 32, 32>}, {pipeline_mode = #tpu.pipeline_mode<synchronous>, transform_indices = @transform_7, window_bounds = array<i64: 32, 32>}, {pipeline_mode = #tpu.pipeline_mode<synchronous>, transform_indices = @transform_8, window_bounds = array<i64: 1, 32>}, {pipeline_mode = #tpu.pipeline_mode<synchronous>, transform_indices = @transform_9, window_bounds = array<i64: 1, 32>}, {pipeline_mode = #tpu.pipeline_mode<synchronous>, transform_indices = @transform_10, window_bounds = array<i64: 1, 32>}, {pipeline_mode = #tpu.pipeline_mode<synchronous>, transform_indices = @transform_11, window_bounds = array<i64: 32, 128>}, {pipeline_mode = #tpu.pipeline_mode<synchronous>, transform_indices = @transform_12, window_bounds = array<i64: 1, 128>}, {pipeline_mode = #tpu.pipeline_mode<synchronous>, transform_indices = @transform_13, window_bounds = array<i64: 128, 32>}, {pipeline_mode = #tpu.pipeline_mode<synchronous>, transform_indices = @transform_14, window_bounds = array<i64: 1, 32>}, {transform_indices = @transform_15, window_bounds = array<i64: 1, 8, 32>}]} {
    %c0 = arith.constant 0 : index
    %c0_0 = arith.constant 0 : index
    %c0_1 = arith.constant 0 : index
    %0 = vector.load %arg1[%c0, %c0_0, %c0_1] : memref<1x8x32xf32, #tpu.memory_space<vmem>>, vector<1x8x32xf32>
    %1 = vector.shape_cast %0 : vector<1x8x32xf32> to vector<8x32xf32>
    %c0_2 = arith.constant 0 : index
    %c0_3 = arith.constant 0 : index
    %c0_4 = arith.constant 0 : index
    %2 = vector.load %arg2[%c0_2, %c0_3, %c0_4] : memref<1x1x32xf32, #tpu.memory_space<vmem>>, vector<1x1x32xf32>
    %3 = vector.shape_cast %2 : vector<1x1x32xf32> to vector<1x32xf32>
    %4 = vector.broadcast %3 : vector<1x32xf32> to vector<8x32xf32>
    %5 = arith.addf %1, %4 : vector<8x32xf32>
    %c0_5 = arith.constant 0 : index
    %c0_6 = arith.constant 0 : index
    %6 = vector.load %arg3[%c0_5, %c0_6] : memref<1x32xf32, #tpu.memory_space<vmem>>, vector<1x32xf32>
    %c0_7 = arith.constant 0 : index
    %c0_8 = arith.constant 0 : index
    %7 = vector.load %arg4[%c0_7, %c0_8] : memref<1x32xf32, #tpu.memory_space<vmem>>, vector<1x32xf32>
    %cst = arith.constant dense<0.000000e+00> : vector<8xf32>
    %8 = vector.multi_reduction <add>, %5, %cst [1] : vector<8x32xf32> to vector<8xf32>
    %9 = vector.shape_cast %8 : vector<8xf32> to vector<8x1xf32>
    %cst_9 = arith.constant 3.200000e+01 : f32
    %10 = vector.broadcast %cst_9 : f32 to vector<8x1xf32>
    %11 = arith.divf %9, %10 : vector<8x1xf32>
    %12 = vector.broadcast %11 : vector<8x1xf32> to vector<8x32xf32>
    %13 = arith.subf %5, %12 : vector<8x32xf32>
    %14 = arith.mulf %13, %13 : vector<8x32xf32>
    %cst_10 = arith.constant dense<0.000000e+00> : vector<8xf32>
    %15 = vector.multi_reduction <add>, %14, %cst_10 [1] : vector<8x32xf32> to vector<8xf32>
    %16 = vector.shape_cast %15 : vector<8xf32> to vector<8x1xf32>
    %cst_11 = arith.constant 3.200000e+01 : f32
    %17 = vector.broadcast %cst_11 : f32 to vector<8x1xf32>
    %18 = arith.divf %16, %17 : vector<8x1xf32>
    %19 = vector.broadcast %11 : vector<8x1xf32> to vector<8x32xf32>
    %20 = arith.subf %5, %19 : vector<8x32xf32>
    %cst_12 = arith.constant 9.99999974E-6 : f32
    %21 = vector.broadcast %cst_12 : f32 to vector<8x1xf32>
    %22 = arith.addf %18, %21 : vector<8x1xf32>
    %23 = math.rsqrt %22 : vector<8x1xf32>
    %24 = vector.broadcast %23 : vector<8x1xf32> to vector<8x32xf32>
    %25 = arith.mulf %20, %24 : vector<8x32xf32>
    %26 = vector.broadcast %6 : vector<1x32xf32> to vector<8x32xf32>
    %27 = arith.mulf %25, %26 : vector<8x32xf32>
    %28 = vector.broadcast %7 : vector<1x32xf32> to vector<8x32xf32>
    %29 = arith.addf %27, %28 : vector<8x32xf32>
    %30 = arith.truncf %29 : vector<8x32xf32> to vector<8x32xbf16>
    %c0_13 = arith.constant 0 : index
    %c0_14 = arith.constant 0 : index
    %31 = vector.load %arg5[%c0_13, %c0_14] : memref<32x32xbf16, #tpu.memory_space<vmem>>, vector<32x32xbf16>
    %cst_15 = arith.constant dense<0.000000e+00> : vector<8x32xf32>
    %32 = tpu.matmul %30, %31, %cst_15 {dimension_numbers = #tpu.dot_dimension_numbers<[1], [0], [0], [1], [0, 0, 1, 1], [], []>} : vector<8x32xbf16>, vector<32x32xbf16>, vector<8x32xf32> -> vector<8x32xf32>
    %c0_16 = arith.constant 0 : index
    %c0_17 = arith.constant 0 : index
    %33 = vector.load %arg6[%c0_16, %c0_17] : memref<32x32xbf16, #tpu.memory_space<vmem>>, vector<32x32xbf16>
    %cst_18 = arith.constant dense<0.000000e+00> : vector<8x32xf32>
    %34 = tpu.matmul %30, %33, %cst_18 {dimension_numbers = #tpu.dot_dimension_numbers<[1], [0], [0], [1], [0, 0, 1, 1], [], []>} : vector<8x32xbf16>, vector<32x32xbf16>, vector<8x32xf32> -> vector<8x32xf32>
    %c0_19 = arith.constant 0 : index
    %c0_20 = arith.constant 0 : index
    %35 = vector.load %arg7[%c0_19, %c0_20] : memref<32x32xbf16, #tpu.memory_space<vmem>>, vector<32x32xbf16>
    %cst_21 = arith.constant dense<0.000000e+00> : vector<8x32xf32>
    %36 = tpu.matmul %30, %35, %cst_21 {dimension_numbers = #tpu.dot_dimension_numbers<[1], [0], [0], [1], [0, 0, 1, 1], [], []>} : vector<8x32xbf16>, vector<32x32xbf16>, vector<8x32xf32> -> vector<8x32xf32>
    %37 = vector.extract_strided_slice %32 {offsets = [0, 0], sizes = [8, 8], strides = [1, 1]} : vector<8x32xf32> to vector<8x8xf32>
    %cst_22 = arith.constant dense<0xFF800000> : vector<8xf32>
    %38 = vector.multi_reduction <maximumf>, %37, %cst_22 [1] : vector<8x8xf32> to vector<8xf32>
    %39 = vector.shape_cast %38 : vector<8xf32> to vector<8x1xf32>
    %40 = vector.broadcast %39 : vector<8x1xf32> to vector<8x8xf32>
    %41 = arith.subf %37, %40 : vector<8x8xf32>
    %42 = math.exp %41 : vector<8x8xf32>
    %cst_23 = arith.constant dense<0.000000e+00> : vector<8xf32>
    %43 = vector.multi_reduction <add>, %42, %cst_23 [1] : vector<8x8xf32> to vector<8xf32>
    %44 = vector.shape_cast %43 : vector<8xf32> to vector<8x1xf32>
    %45 = tpu.reciprocal %44 {approx = true} : vector<8x1xf32> -> vector<8x1xf32>
    %46 = vector.broadcast %45 : vector<8x1xf32> to vector<8x8xf32>
    %47 = arith.mulf %42, %46 : vector<8x8xf32>
    %cst_24 = arith.constant 0.353553385 : f32
    %48 = vector.broadcast %cst_24 : f32 to vector<8x8xf32>
    %49 = arith.mulf %47, %48 : vector<8x8xf32>
    %50 = vector.extract_strided_slice %34 {offsets = [0, 0], sizes = [8, 8], strides = [1, 1]} : vector<8x32xf32> to vector<8x8xf32>
    %cst_25 = arith.constant dense<0xFF800000> : vector<8xf32>
    %51 = vector.multi_reduction <maximumf>, %50, %cst_25 [0] : vector<8x8xf32> to vector<8xf32>
    %52 = vector.shape_cast %51 : vector<8xf32> to vector<1x8xf32>
    %53 = vector.broadcast %52 : vector<1x8xf32> to vector<8x8xf32>
    %54 = arith.subf %50, %53 : vector<8x8xf32>
    %55 = math.exp %54 : vector<8x8xf32>
    %cst_26 = arith.constant dense<0.000000e+00> : vector<8xf32>
    %56 = vector.multi_reduction <add>, %55, %cst_26 [0] : vector<8x8xf32> to vector<8xf32>
    %57 = vector.shape_cast %56 : vector<8xf32> to vector<1x8xf32>
    %58 = tpu.reciprocal %57 {approx = true} : vector<1x8xf32> -> vector<1x8xf32>
    %59 = vector.broadcast %58 : vector<1x8xf32> to vector<8x8xf32>
    %60 = arith.mulf %55, %59 : vector<8x8xf32>
    %61 = vector.extract_strided_slice %36 {offsets = [0, 0], sizes = [8, 8], strides = [1, 1]} : vector<8x32xf32> to vector<8x8xf32>
    %62 = tpu.transpose %60, [1, 0] : vector<8x8xf32> -> vector<8x8xf32>
    %63 = arith.truncf %62 : vector<8x8xf32> to vector<8x8xbf16>
    %64 = arith.truncf %61 : vector<8x8xf32> to vector<8x8xbf16>
    %cst_27 = arith.constant dense<0.000000e+00> : vector<8x8xf32>
    %65 = tpu.matmul %63, %64, %cst_27 {dimension_numbers = #tpu.dot_dimension_numbers<[1], [0], [0], [1], [0, 0, 1, 1], [], []>} : vector<8x8xbf16>, vector<8x8xbf16>, vector<8x8xf32> -> vector<8x8xf32>
    %66 = arith.truncf %49 : vector<8x8xf32> to vector<8x8xbf16>
    %67 = arith.truncf %65 : vector<8x8xf32> to vector<8x8xbf16>
    %cst_28 = arith.constant dense<0.000000e+00> : vector<8x8xf32>
    %68 = tpu.matmul %66, %67, %cst_28 {dimension_numbers = #tpu.dot_dimension_numbers<[1], [0], [0], [1], [0, 0, 1, 1], [], []>} : vector<8x8xbf16>, vector<8x8xbf16>, vector<8x8xf32> -> vector<8x8xf32>
    %69 = vector.extract_strided_slice %32 {offsets = [0, 8], sizes = [8, 8], strides = [1, 1]} : vector<8x32xf32> to vector<8x8xf32>
    %cst_29 = arith.constant dense<0xFF800000> : vector<8xf32>
    %70 = vector.multi_reduction <maximumf>, %69, %cst_29 [1] : vector<8x8xf32> to vector<8xf32>
    %71 = vector.shape_cast %70 : vector<8xf32> to vector<8x1xf32>
    %72 = vector.broadcast %71 : vector<8x1xf32> to vector<8x8xf32>
    %73 = arith.subf %69, %72 : vector<8x8xf32>
    %74 = math.exp %73 : vector<8x8xf32>
    %cst_30 = arith.constant dense<0.000000e+00> : vector<8xf32>
    %75 = vector.multi_reduction <add>, %74, %cst_30 [1] : vector<8x8xf32> to vector<8xf32>
    %76 = vector.shape_cast %75 : vector<8xf32> to vector<8x1xf32>
    %77 = tpu.reciprocal %76 {approx = true} : vector<8x1xf32> -> vector<8x1xf32>
    %78 = vector.broadcast %77 : vector<8x1xf32> to vector<8x8xf32>
    %79 = arith.mulf %74, %78 : vector<8x8xf32>
    %cst_31 = arith.constant 0.353553385 : f32
    %80 = vector.broadcast %cst_31 : f32 to vector<8x8xf32>
    %81 = arith.mulf %79, %80 : vector<8x8xf32>
    %82 = vector.extract_strided_slice %34 {offsets = [0, 8], sizes = [8, 8], strides = [1, 1]} : vector<8x32xf32> to vector<8x8xf32>
    %cst_32 = arith.constant dense<0xFF800000> : vector<8xf32>
    %83 = vector.multi_reduction <maximumf>, %82, %cst_32 [0] : vector<8x8xf32> to vector<8xf32>
    %84 = vector.shape_cast %83 : vector<8xf32> to vector<1x8xf32>
    %85 = vector.broadcast %84 : vector<1x8xf32> to vector<8x8xf32>
    %86 = arith.subf %82, %85 : vector<8x8xf32>
    %87 = math.exp %86 : vector<8x8xf32>
    %cst_33 = arith.constant dense<0.000000e+00> : vector<8xf32>
    %88 = vector.multi_reduction <add>, %87, %cst_33 [0] : vector<8x8xf32> to vector<8xf32>
    %89 = vector.shape_cast %88 : vector<8xf32> to vector<1x8xf32>
    %90 = tpu.reciprocal %89 {approx = true} : vector<1x8xf32> -> vector<1x8xf32>
    %91 = vector.broadcast %90 : vector<1x8xf32> to vector<8x8xf32>
    %92 = arith.mulf %87, %91 : vector<8x8xf32>
    %93 = vector.extract_strided_slice %36 {offsets = [0, 8], sizes = [8, 8], strides = [1, 1]} : vector<8x32xf32> to vector<8x8xf32>
    %94 = tpu.transpose %92, [1, 0] : vector<8x8xf32> -> vector<8x8xf32>
    %95 = arith.truncf %94 : vector<8x8xf32> to vector<8x8xbf16>
    %96 = arith.truncf %93 : vector<8x8xf32> to vector<8x8xbf16>
    %cst_34 = arith.constant dense<0.000000e+00> : vector<8x8xf32>
    %97 = tpu.matmul %95, %96, %cst_34 {dimension_numbers = #tpu.dot_dimension_numbers<[1], [0], [0], [1], [0, 0, 1, 1], [], []>} : vector<8x8xbf16>, vector<8x8xbf16>, vector<8x8xf32> -> vector<8x8xf32>
    %98 = arith.truncf %81 : vector<8x8xf32> to vector<8x8xbf16>
    %99 = arith.truncf %97 : vector<8x8xf32> to vector<8x8xbf16>
    %cst_35 = arith.constant dense<0.000000e+00> : vector<8x8xf32>
    %100 = tpu.matmul %98, %99, %cst_35 {dimension_numbers = #tpu.dot_dimension_numbers<[1], [0], [0], [1], [0, 0, 1, 1], [], []>} : vector<8x8xbf16>, vector<8x8xbf16>, vector<8x8xf32> -> vector<8x8xf32>
    %101 = vector.extract_strided_slice %32 {offsets = [0, 16], sizes = [8, 8], strides = [1, 1]} : vector<8x32xf32> to vector<8x8xf32>
    %cst_36 = arith.constant dense<0xFF800000> : vector<8xf32>
    %102 = vector.multi_reduction <maximumf>, %101, %cst_36 [1] : vector<8x8xf32> to vector<8xf32>
    %103 = vector.shape_cast %102 : vector<8xf32> to vector<8x1xf32>
    %104 = vector.broadcast %103 : vector<8x1xf32> to vector<8x8xf32>
    %105 = arith.subf %101, %104 : vector<8x8xf32>
    %106 = math.exp %105 : vector<8x8xf32>
    %cst_37 = arith.constant dense<0.000000e+00> : vector<8xf32>
    %107 = vector.multi_reduction <add>, %106, %cst_37 [1] : vector<8x8xf32> to vector<8xf32>
    %108 = vector.shape_cast %107 : vector<8xf32> to vector<8x1xf32>
    %109 = tpu.reciprocal %108 {approx = true} : vector<8x1xf32> -> vector<8x1xf32>
    %110 = vector.broadcast %109 : vector<8x1xf32> to vector<8x8xf32>
    %111 = arith.mulf %106, %110 : vector<8x8xf32>
    %cst_38 = arith.constant 0.353553385 : f32
    %112 = vector.broadcast %cst_38 : f32 to vector<8x8xf32>
    %113 = arith.mulf %111, %112 : vector<8x8xf32>
    %114 = vector.extract_strided_slice %34 {offsets = [0, 16], sizes = [8, 8], strides = [1, 1]} : vector<8x32xf32> to vector<8x8xf32>
    %cst_39 = arith.constant dense<0xFF800000> : vector<8xf32>
    %115 = vector.multi_reduction <maximumf>, %114, %cst_39 [0] : vector<8x8xf32> to vector<8xf32>
    %116 = vector.shape_cast %115 : vector<8xf32> to vector<1x8xf32>
    %117 = vector.broadcast %116 : vector<1x8xf32> to vector<8x8xf32>
    %118 = arith.subf %114, %117 : vector<8x8xf32>
    %119 = math.exp %118 : vector<8x8xf32>
    %cst_40 = arith.constant dense<0.000000e+00> : vector<8xf32>
    %120 = vector.multi_reduction <add>, %119, %cst_40 [0] : vector<8x8xf32> to vector<8xf32>
    %121 = vector.shape_cast %120 : vector<8xf32> to vector<1x8xf32>
    %122 = tpu.reciprocal %121 {approx = true} : vector<1x8xf32> -> vector<1x8xf32>
    %123 = vector.broadcast %122 : vector<1x8xf32> to vector<8x8xf32>
    %124 = arith.mulf %119, %123 : vector<8x8xf32>
    %125 = vector.extract_strided_slice %36 {offsets = [0, 16], sizes = [8, 8], strides = [1, 1]} : vector<8x32xf32> to vector<8x8xf32>
    %126 = tpu.transpose %124, [1, 0] : vector<8x8xf32> -> vector<8x8xf32>
    %127 = arith.truncf %126 : vector<8x8xf32> to vector<8x8xbf16>
    %128 = arith.truncf %125 : vector<8x8xf32> to vector<8x8xbf16>
    %cst_41 = arith.constant dense<0.000000e+00> : vector<8x8xf32>
    %129 = tpu.matmul %127, %128, %cst_41 {dimension_numbers = #tpu.dot_dimension_numbers<[1], [0], [0], [1], [0, 0, 1, 1], [], []>} : vector<8x8xbf16>, vector<8x8xbf16>, vector<8x8xf32> -> vector<8x8xf32>
    %130 = arith.truncf %113 : vector<8x8xf32> to vector<8x8xbf16>
    %131 = arith.truncf %129 : vector<8x8xf32> to vector<8x8xbf16>
    %cst_42 = arith.constant dense<0.000000e+00> : vector<8x8xf32>
    %132 = tpu.matmul %130, %131, %cst_42 {dimension_numbers = #tpu.dot_dimension_numbers<[1], [0], [0], [1], [0, 0, 1, 1], [], []>} : vector<8x8xbf16>, vector<8x8xbf16>, vector<8x8xf32> -> vector<8x8xf32>
    %133 = vector.extract_strided_slice %32 {offsets = [0, 24], sizes = [8, 8], strides = [1, 1]} : vector<8x32xf32> to vector<8x8xf32>
    %cst_43 = arith.constant dense<0xFF800000> : vector<8xf32>
    %134 = vector.multi_reduction <maximumf>, %133, %cst_43 [1] : vector<8x8xf32> to vector<8xf32>
    %135 = vector.shape_cast %134 : vector<8xf32> to vector<8x1xf32>
    %136 = vector.broadcast %135 : vector<8x1xf32> to vector<8x8xf32>
    %137 = arith.subf %133, %136 : vector<8x8xf32>
    %138 = math.exp %137 : vector<8x8xf32>
    %cst_44 = arith.constant dense<0.000000e+00> : vector<8xf32>
    %139 = vector.multi_reduction <add>, %138, %cst_44 [1] : vector<8x8xf32> to vector<8xf32>
    %140 = vector.shape_cast %139 : vector<8xf32> to vector<8x1xf32>
    %141 = tpu.reciprocal %140 {approx = true} : vector<8x1xf32> -> vector<8x1xf32>
    %142 = vector.broadcast %141 : vector<8x1xf32> to vector<8x8xf32>
    %143 = arith.mulf %138, %142 : vector<8x8xf32>
    %cst_45 = arith.constant 0.353553385 : f32
    %144 = vector.broadcast %cst_45 : f32 to vector<8x8xf32>
    %145 = arith.mulf %143, %144 : vector<8x8xf32>
    %146 = vector.extract_strided_slice %34 {offsets = [0, 24], sizes = [8, 8], strides = [1, 1]} : vector<8x32xf32> to vector<8x8xf32>
    %cst_46 = arith.constant dense<0xFF800000> : vector<8xf32>
    %147 = vector.multi_reduction <maximumf>, %146, %cst_46 [0] : vector<8x8xf32> to vector<8xf32>
    %148 = vector.shape_cast %147 : vector<8xf32> to vector<1x8xf32>
    %149 = vector.broadcast %148 : vector<1x8xf32> to vector<8x8xf32>
    %150 = arith.subf %146, %149 : vector<8x8xf32>
    %151 = math.exp %150 : vector<8x8xf32>
    %cst_47 = arith.constant dense<0.000000e+00> : vector<8xf32>
    %152 = vector.multi_reduction <add>, %151, %cst_47 [0] : vector<8x8xf32> to vector<8xf32>
    %153 = vector.shape_cast %152 : vector<8xf32> to vector<1x8xf32>
    %154 = tpu.reciprocal %153 {approx = true} : vector<1x8xf32> -> vector<1x8xf32>
    %155 = vector.broadcast %154 : vector<1x8xf32> to vector<8x8xf32>
    %156 = arith.mulf %151, %155 : vector<8x8xf32>
    %157 = vector.extract_strided_slice %36 {offsets = [0, 24], sizes = [8, 8], strides = [1, 1]} : vector<8x32xf32> to vector<8x8xf32>
    %158 = tpu.transpose %156, [1, 0] : vector<8x8xf32> -> vector<8x8xf32>
    %159 = arith.truncf %158 : vector<8x8xf32> to vector<8x8xbf16>
    %160 = arith.truncf %157 : vector<8x8xf32> to vector<8x8xbf16>
    %cst_48 = arith.constant dense<0.000000e+00> : vector<8x8xf32>
    %161 = tpu.matmul %159, %160, %cst_48 {dimension_numbers = #tpu.dot_dimension_numbers<[1], [0], [0], [1], [0, 0, 1, 1], [], []>} : vector<8x8xbf16>, vector<8x8xbf16>, vector<8x8xf32> -> vector<8x8xf32>
    %162 = arith.truncf %145 : vector<8x8xf32> to vector<8x8xbf16>
    %163 = arith.truncf %161 : vector<8x8xf32> to vector<8x8xbf16>
    %cst_49 = arith.constant dense<0.000000e+00> : vector<8x8xf32>
    %164 = tpu.matmul %162, %163, %cst_49 {dimension_numbers = #tpu.dot_dimension_numbers<[1], [0], [0], [1], [0, 0, 1, 1], [], []>} : vector<8x8xbf16>, vector<8x8xbf16>, vector<8x8xf32> -> vector<8x8xf32>
    %165 = tpu.concatenate %68, %100, %132, %164 in 1 : vector<8x8xf32>, vector<8x8xf32>, vector<8x8xf32>, vector<8x8xf32> -> vector<8x32xf32>
    %166 = arith.truncf %165 : vector<8x32xf32> to vector<8x32xbf16>
    %c0_50 = arith.constant 0 : index
    %c0_51 = arith.constant 0 : index
    %167 = vector.load %arg8[%c0_50, %c0_51] : memref<32x32xbf16, #tpu.memory_space<vmem>>, vector<32x32xbf16>
    %cst_52 = arith.constant dense<0.000000e+00> : vector<8x32xf32>
    %168 = tpu.matmul %166, %167, %cst_52 {dimension_numbers = #tpu.dot_dimension_numbers<[1], [0], [0], [1], [0, 0, 1, 1], [], []>} : vector<8x32xbf16>, vector<32x32xbf16>, vector<8x32xf32> -> vector<8x32xf32>
    %169 = arith.addf %5, %168 : vector<8x32xf32>
    %c0_53 = arith.constant 0 : index
    %c0_54 = arith.constant 0 : index
    %170 = vector.load %arg9[%c0_53, %c0_54] : memref<1x32xf32, #tpu.memory_space<vmem>>, vector<1x32xf32>
    %171 = vector.broadcast %170 : vector<1x32xf32> to vector<8x32xf32>
    %172 = arith.addf %169, %171 : vector<8x32xf32>
    %c0_55 = arith.constant 0 : index
    %c0_56 = arith.constant 0 : index
    %173 = vector.load %arg10[%c0_55, %c0_56] : memref<1x32xf32, #tpu.memory_space<vmem>>, vector<1x32xf32>
    %c0_57 = arith.constant 0 : index
    %c0_58 = arith.constant 0 : index
    %174 = vector.load %arg11[%c0_57, %c0_58] : memref<1x32xf32, #tpu.memory_space<vmem>>, vector<1x32xf32>
    %cst_59 = arith.constant dense<0.000000e+00> : vector<8xf32>
    %175 = vector.multi_reduction <add>, %172, %cst_59 [1] : vector<8x32xf32> to vector<8xf32>
    %176 = vector.shape_cast %175 : vector<8xf32> to vector<8x1xf32>
    %cst_60 = arith.constant 3.200000e+01 : f32
    %177 = vector.broadcast %cst_60 : f32 to vector<8x1xf32>
    %178 = arith.divf %176, %177 : vector<8x1xf32>
    %179 = vector.broadcast %178 : vector<8x1xf32> to vector<8x32xf32>
    %180 = arith.subf %172, %179 : vector<8x32xf32>
    %181 = arith.mulf %180, %180 : vector<8x32xf32>
    %cst_61 = arith.constant dense<0.000000e+00> : vector<8xf32>
    %182 = vector.multi_reduction <add>, %181, %cst_61 [1] : vector<8x32xf32> to vector<8xf32>
    %183 = vector.shape_cast %182 : vector<8xf32> to vector<8x1xf32>
    %cst_62 = arith.constant 3.200000e+01 : f32
    %184 = vector.broadcast %cst_62 : f32 to vector<8x1xf32>
    %185 = arith.divf %183, %184 : vector<8x1xf32>
    %186 = vector.broadcast %178 : vector<8x1xf32> to vector<8x32xf32>
    %187 = arith.subf %172, %186 : vector<8x32xf32>
    %cst_63 = arith.constant 9.99999974E-6 : f32
    %188 = vector.broadcast %cst_63 : f32 to vector<8x1xf32>
    %189 = arith.addf %185, %188 : vector<8x1xf32>
    %190 = math.rsqrt %189 : vector<8x1xf32>
    %191 = vector.broadcast %190 : vector<8x1xf32> to vector<8x32xf32>
    %192 = arith.mulf %187, %191 : vector<8x32xf32>
    %193 = vector.broadcast %173 : vector<1x32xf32> to vector<8x32xf32>
    %194 = arith.mulf %192, %193 : vector<8x32xf32>
    %195 = vector.broadcast %174 : vector<1x32xf32> to vector<8x32xf32>
    %196 = arith.addf %194, %195 : vector<8x32xf32>
    %197 = arith.truncf %196 : vector<8x32xf32> to vector<8x32xbf16>
    %c0_64 = arith.constant 0 : index
    %c0_65 = arith.constant 0 : index
    %198 = vector.load %arg12[%c0_64, %c0_65] : memref<32x128xbf16, #tpu.memory_space<vmem>>, vector<32x128xbf16>
    %cst_66 = arith.constant dense<0.000000e+00> : vector<8x128xf32>
    %199 = tpu.matmul %197, %198, %cst_66 {dimension_numbers = #tpu.dot_dimension_numbers<[1], [0], [0], [1], [0, 0, 1, 1], [], []>} : vector<8x32xbf16>, vector<32x128xbf16>, vector<8x128xf32> -> vector<8x128xf32>
    %c0_67 = arith.constant 0 : index
    %c0_68 = arith.constant 0 : index
    %200 = vector.load %arg13[%c0_67, %c0_68] : memref<1x128xf32, #tpu.memory_space<vmem>>, vector<1x128xf32>
    %201 = vector.broadcast %200 : vector<1x128xf32> to vector<8x128xf32>
    %202 = arith.addf %199, %201 : vector<8x128xf32>
    %203 = arith.mulf %202, %202 : vector<8x128xf32>
    %204 = arith.mulf %202, %203 : vector<8x128xf32>
    %cst_69 = arith.constant 4.471500e-02 : f32
    %205 = vector.broadcast %cst_69 : f32 to vector<8x128xf32>
    %206 = arith.mulf %205, %204 : vector<8x128xf32>
    %207 = arith.addf %202, %206 : vector<8x128xf32>
    %cst_70 = arith.constant 0.797884583 : f32
    %208 = vector.broadcast %cst_70 : f32 to vector<8x128xf32>
    %209 = arith.mulf %208, %207 : vector<8x128xf32>
    %210 = math.tanh %209 : vector<8x128xf32>
    %cst_71 = arith.constant 1.000000e+00 : f32
    %211 = vector.broadcast %cst_71 : f32 to vector<8x128xf32>
    %212 = arith.addf %211, %210 : vector<8x128xf32>
    %cst_72 = arith.constant 5.000000e-01 : f32
    %213 = vector.broadcast %cst_72 : f32 to vector<8x128xf32>
    %214 = arith.mulf %213, %212 : vector<8x128xf32>
    %215 = arith.mulf %202, %214 : vector<8x128xf32>
    %216 = arith.truncf %215 : vector<8x128xf32> to vector<8x128xbf16>
    %c0_73 = arith.constant 0 : index
    %c0_74 = arith.constant 0 : index
    %217 = vector.load %arg14[%c0_73, %c0_74] : memref<128x32xbf16, #tpu.memory_space<vmem>>, vector<128x32xbf16>
    %cst_75 = arith.constant dense<0.000000e+00> : vector<8x32xf32>
    %218 = tpu.matmul %216, %217, %cst_75 {dimension_numbers = #tpu.dot_dimension_numbers<[1], [0], [0], [1], [0, 0, 1, 1], [], []>} : vector<8x128xbf16>, vector<128x32xbf16>, vector<8x32xf32> -> vector<8x32xf32>
    %219 = arith.addf %172, %218 : vector<8x32xf32>
    %c0_76 = arith.constant 0 : index
    %c0_77 = arith.constant 0 : index
    %220 = vector.load %arg15[%c0_76, %c0_77] : memref<1x32xf32, #tpu.memory_space<vmem>>, vector<1x32xf32>
    %221 = vector.broadcast %220 : vector<1x32xf32> to vector<8x32xf32>
    %222 = arith.addf %219, %221 : vector<8x32xf32>
    %c0_78 = arith.constant 0 : index
    %c0_79 = arith.constant 0 : index
    %c0_80 = arith.constant 0 : index
    %223 = vector.load %arg16[%c0_78, %c0_79, %c0_80] : memref<1x8x32xf32, #tpu.memory_space<vmem>>, vector<1x8x32xf32>
    %224 = vector.shape_cast %223 : vector<1x8x32xf32> to vector<8x32xf32>
    %225 = vector.shape_cast %222 : vector<8x32xf32> to vector<1x8x32xf32>
    tpu.vector_store %arg16[%c0_78, %c0_79, %c0_80], %225 {strides = array<i32>} : memref<1x8x32xf32, #tpu.memory_space<vmem>>, vector<1x8x32xf32>,
    return
  }
  func.func @transform_0(%arg0: i32) -> (i32, i32, i32) {
    %c0_i32 = arith.constant 0 : i32
    %c0_i32_0 = arith.constant 0 : i32
    %c0_i32_1 = arith.constant 0 : i32
    return %arg0, %c0_i32, %c0_i32_0 : i32, i32, i32
  }
  func.func @transform_1(%arg0: i32) -> (i32, i32, i32) {
    %c0_i32 = arith.constant 0 : i32
    %c0_i32_0 = arith.constant 0 : i32
    %c0_i32_1 = arith.constant 0 : i32
    return %arg0, %c0_i32, %c0_i32_0 : i32, i32, i32
  }
  func.func @transform_2(%arg0: i32) -> (i32, i32) {
    %c0_i32 = arith.constant 0 : i32
    %c0_i32_0 = arith.constant 0 : i32
    %c0_i32_1 = arith.constant 0 : i32
    return %c0_i32, %c0_i32_0 : i32, i32
  }
  func.func @transform_3(%arg0: i32) -> (i32, i32) {
    %c0_i32 = arith.constant 0 : i32
    %c0_i32_0 = arith.constant 0 : i32
    %c0_i32_1 = arith.constant 0 : i32
    return %c0_i32, %c0_i32_0 : i32, i32
  }
  func.func @transform_4(%arg0: i32) -> (i32, i32) {
    %c0_i32 = arith.constant 0 : i32
    %c0_i32_0 = arith.constant 0 : i32
    %c0_i32_1 = arith.constant 0 : i32
    return %c0_i32, %c0_i32_0 : i32, i32
  }
  func.func @transform_5(%arg0: i32) -> (i32, i32) {
    %c0_i32 = arith.constant 0 : i32
    %c0_i32_0 = arith.constant 0 : i32
    %c0_i32_1 = arith.constant 0 : i32
    return %c0_i32, %c0_i32_0 : i32, i32
  }
  func.func @transform_6(%arg0: i32) -> (i32, i32) {
    %c0_i32 = arith.constant 0 : i32
    %c0_i32_0 = arith.constant 0 : i32
    %c0_i32_1 = arith.constant 0 : i32
    return %c0_i32, %c0_i32_0 : i32, i32
  }
  func.func @transform_7(%arg0: i32) -> (i32, i32) {
    %c0_i32 = arith.constant 0 : i32
    %c0_i32_0 = arith.constant 0 : i32
    %c0_i32_1 = arith.constant 0 : i32
    return %c0_i32, %c0_i32_0 : i32, i32
  }
  func.func @transform_8(%arg0: i32) -> (i32, i32) {
    %c0_i32 = arith.constant 0 : i32
    %c0_i32_0 = arith.constant 0 : i32
    %c0_i32_1 = arith.constant 0 : i32
    return %c0_i32, %c0_i32_0 : i32, i32
  }
  func.func @transform_9(%arg0: i32) -> (i32, i32) {
    %c0_i32 = arith.constant 0 : i32
    %c0_i32_0 = arith.constant 0 : i32
    %c0_i32_1 = arith.constant 0 : i32
    return %c0_i32, %c0_i32_0 : i32, i32
  }
  func.func @transform_10(%arg0: i32) -> (i32, i32) {
    %c0_i32 = arith.constant 0 : i32
    %c0_i32_0 = arith.constant 0 : i32
    %c0_i32_1 = arith.constant 0 : i32
    return %c0_i32, %c0_i32_0 : i32, i32
  }
  func.func @transform_11(%arg0: i32) -> (i32, i32) {
    %c0_i32 = arith.constant 0 : i32
    %c0_i32_0 = arith.constant 0 : i32
    %c0_i32_1 = arith.constant 0 : i32
    return %c0_i32, %c0_i32_0 : i32, i32
  }
  func.func @transform_12(%arg0: i32) -> (i32, i32) {
    %c0_i32 = arith.constant 0 : i32
    %c0_i32_0 = arith.constant 0 : i32
    %c0_i32_1 = arith.constant 0 : i32
    return %c0_i32, %c0_i32_0 : i32, i32
  }
  func.func @transform_13(%arg0: i32) -> (i32, i32) {
    %c0_i32 = arith.constant 0 : i32
    %c0_i32_0 = arith.constant 0 : i32
    %c0_i32_1 = arith.constant 0 : i32
    return %c0_i32, %c0_i32_0 : i32, i32
  }
  func.func @transform_14(%arg0: i32) -> (i32, i32) {
    %c0_i32 = arith.constant 0 : i32
    %c0_i32_0 = arith.constant 0 : i32
    %c0_i32_1 = arith.constant 0 : i32
    return %c0_i32, %c0_i32_0 : i32, i32
  }
  func.func @transform_15(%arg0: i32) -> (i32, i32, i32) {
    %c0_i32 = arith.constant 0 : i32
    %c0_i32_0 = arith.constant 0 : i32
    %c0_i32_1 = arith.constant 0 : i32
    return %arg0, %c0_i32, %c0_i32_0 : i32, i32, i32
  }
}

module attributes {stable_mosaic.version = 11 : i64} {
  func.func @_layer_half_kernel(%arg0: i32, %arg1: memref<1x8x32xf32, #tpu.memory_space<vmem>>, %arg2: memref<1x8x32xf32, #tpu.memory_space<vmem>>, %arg3: memref<1x32xf32, #tpu.memory_space<vmem>>, %arg4: memref<1x32xf32, #tpu.memory_space<vmem>>, %arg5: memref<32x32xbf16, #tpu.memory_space<vmem>>, %arg6: memref<32x32xbf16, #tpu.memory_space<vmem>>, %arg7: memref<32x32xbf16, #tpu.memory_space<vmem>>, %arg8: memref<32x32xbf16, #tpu.memory_space<vmem>>, %arg9: memref<1x32xf32, #tpu.memory_space<vmem>>, %arg10: memref<1x32xf32, #tpu.memory_space<vmem>>, %arg11: memref<1x32xf32, #tpu.memory_space<vmem>>, %arg12: memref<32x128xbf16, #tpu.memory_space<vmem>>, %arg13: memref<1x128xf32, #tpu.memory_space<vmem>>, %arg14: memref<128x32xbf16, #tpu.memory_space<vmem>>, %arg15: memref<1x32xf32, #tpu.memory_space<vmem>>, %arg16: memref<1x8x32xf32, #tpu.memory_space<vmem>>) attributes {dimension_semantics = [#tpu.dimension_semantics<parallel>], iteration_bounds = array<i64: 2>, scalar_prefetch = 0 : i64, scratch_operands = 0 : i64, tpu.core_type = #tpu.core_type<tc>, window_params = [{transform_indices = @transform_0, window_bounds = array<i64: 1, 8, 32>}, {transform_indices = @transform_1, window_bounds = array<i64: 1, 8, 32>}, {pipeline_mode = #tpu.pipeline_mode<synchronous>, transform_indices = @transform_2, window_bounds = array<i64: 1, 32>}, {pipeline_mode = #tpu.pipeline_mode<synchronous>, transform_indices = @transform_3, window_bounds = array<i64: 1, 32>}, {pipeline_mode = #tpu.pipeline_mode<synchronous>, transform_indices = @transform_4, window_bounds = array<i64: 32, 32>}, {pipeline_mode = #tpu.pipeline_mode<synchronous>, transform_indices = @transform_5, window_bounds = array<i64: 32, 32>}, {pipeline_mode = #tpu.pipeline_mode<synchronous>, transform_indices = @transform_6, window_bounds = array<i64: 32, 32>}, {pipeline_mode = #tpu.pipeline_mode<synchronous>, transform_indices = @transform_7, window_bounds = array<i64: 32, 32>}, {pipeline_mode = #tpu.pipeline_mode<synchronous>, transform_indices = @transform_8, window_bounds = array<i64: 1, 32>}, {pipeline_mode = #tpu.pipeline_mode<synchronous>, transform_indices = @transform_9, window_bounds = array<i64: 1, 32>}, {pipeline_mode = #tpu.pipeline_mode<synchronous>, transform_indices = @transform_10, window_bounds = array<i64: 1, 32>}, {pipeline_mode = #tpu.pipeline_mode<synchronous>, transform_indices = @transform_11, window_bounds = array<i64: 32, 128>}, {pipeline_mode = #tpu.pipeline_mode<synchronous>, transform_indices = @transform_12, window_bounds = array<i64: 1, 128>}, {pipeline_mode = #tpu.pipeline_mode<synchronous>, transform_indices = @transform_13, window_bounds = array<i64: 128, 32>}, {pipeline_mode = #tpu.pipeline_mode<synchronous>, transform_indices = @transform_14, window_bounds = array<i64: 1, 32>}, {transform_indices = @transform_15, window_bounds = array<i64: 1, 8, 32>}]} {
    %c0 = arith.constant 0 : index
    %c0_0 = arith.constant 0 : index
    %c0_1 = arith.constant 0 : index
    %0 = vector.load %arg1[%c0, %c0_0, %c0_1] : memref<1x8x32xf32, #tpu.memory_space<vmem>>, vector<1x8x32xf32>
    %1 = vector.shape_cast %0 : vector<1x8x32xf32> to vector<8x32xf32>
    %c0_2 = arith.constant 0 : index
    %c0_3 = arith.constant 0 : index
    %2 = vector.load %arg3[%c0_2, %c0_3] : memref<1x32xf32, #tpu.memory_space<vmem>>, vector<1x32xf32>
    %c0_4 = arith.constant 0 : index
    %c0_5 = arith.constant 0 : index
    %3 = vector.load %arg4[%c0_4, %c0_5] : memref<1x32xf32, #tpu.memory_space<vmem>>, vector<1x32xf32>
    %cst = arith.constant dense<0.000000e+00> : vector<8xf32>
    %4 = vector.multi_reduction <add>, %1, %cst [1] : vector<8x32xf32> to vector<8xf32>
    %5 = vector.shape_cast %4 : vector<8xf32> to vector<8x1xf32>
    %cst_6 = arith.constant 3.200000e+01 : f32
    %6 = vector.broadcast %cst_6 : f32 to vector<8x1xf32>
    %7 = arith.divf %5, %6 : vector<8x1xf32>
    %8 = vector.broadcast %7 : vector<8x1xf32> to vector<8x32xf32>
    %9 = arith.subf %1, %8 : vector<8x32xf32>
    %10 = arith.mulf %9, %9 : vector<8x32xf32>
    %cst_7 = arith.constant dense<0.000000e+00> : vector<8xf32>
    %11 = vector.multi_reduction <add>, %10, %cst_7 [1] : vector<8x32xf32> to vector<8xf32>
    %12 = vector.shape_cast %11 : vector<8xf32> to vector<8x1xf32>
    %cst_8 = arith.constant 3.200000e+01 : f32
    %13 = vector.broadcast %cst_8 : f32 to vector<8x1xf32>
    %14 = arith.divf %12, %13 : vector<8x1xf32>
    %15 = vector.broadcast %7 : vector<8x1xf32> to vector<8x32xf32>
    %16 = arith.subf %1, %15 : vector<8x32xf32>
    %cst_9 = arith.constant 9.99999974E-6 : f32
    %17 = vector.broadcast %cst_9 : f32 to vector<8x1xf32>
    %18 = arith.addf %14, %17 : vector<8x1xf32>
    %19 = math.rsqrt %18 : vector<8x1xf32>
    %20 = vector.broadcast %19 : vector<8x1xf32> to vector<8x32xf32>
    %21 = arith.mulf %16, %20 : vector<8x32xf32>
    %22 = vector.broadcast %2 : vector<1x32xf32> to vector<8x32xf32>
    %23 = arith.mulf %21, %22 : vector<8x32xf32>
    %24 = vector.broadcast %3 : vector<1x32xf32> to vector<8x32xf32>
    %25 = arith.addf %23, %24 : vector<8x32xf32>
    %26 = arith.truncf %25 : vector<8x32xf32> to vector<8x32xbf16>
    %c0_10 = arith.constant 0 : index
    %c0_11 = arith.constant 0 : index
    %27 = vector.load %arg5[%c0_10, %c0_11] : memref<32x32xbf16, #tpu.memory_space<vmem>>, vector<32x32xbf16>
    %cst_12 = arith.constant dense<0.000000e+00> : vector<8x32xf32>
    %28 = tpu.matmul %26, %27, %cst_12 {dimension_numbers = #tpu.dot_dimension_numbers<[1], [0], [0], [1], [0, 0, 1, 1], [], []>} : vector<8x32xbf16>, vector<32x32xbf16>, vector<8x32xf32> -> vector<8x32xf32>
    %c0_13 = arith.constant 0 : index
    %c0_14 = arith.constant 0 : index
    %c0_15 = arith.constant 0 : index
    %29 = vector.load %arg2[%c0_13, %c0_14, %c0_15] : memref<1x8x32xf32, #tpu.memory_space<vmem>>, vector<1x8x32xf32>
    %30 = vector.shape_cast %29 : vector<1x8x32xf32> to vector<8x32xf32>
    %31 = arith.truncf %30 : vector<8x32xf32> to vector<8x32xbf16>
    %c0_16 = arith.constant 0 : index
    %c0_17 = arith.constant 0 : index
    %32 = vector.load %arg6[%c0_16, %c0_17] : memref<32x32xbf16, #tpu.memory_space<vmem>>, vector<32x32xbf16>
    %cst_18 = arith.constant dense<0.000000e+00> : vector<8x32xf32>
    %33 = tpu.matmul %31, %32, %cst_18 {dimension_numbers = #tpu.dot_dimension_numbers<[1], [0], [0], [1], [0, 0, 1, 1], [], []>} : vector<8x32xbf16>, vector<32x32xbf16>, vector<8x32xf32> -> vector<8x32xf32>
    %c0_19 = arith.constant 0 : index
    %c0_20 = arith.constant 0 : index
    %34 = vector.load %arg7[%c0_19, %c0_20] : memref<32x32xbf16, #tpu.memory_space<vmem>>, vector<32x32xbf16>
    %cst_21 = arith.constant dense<0.000000e+00> : vector<8x32xf32>
    %35 = tpu.matmul %31, %34, %cst_21 {dimension_numbers = #tpu.dot_dimension_numbers<[1], [0], [0], [1], [0, 0, 1, 1], [], []>} : vector<8x32xbf16>, vector<32x32xbf16>, vector<8x32xf32> -> vector<8x32xf32>
    %36 = vector.extract_strided_slice %28 {offsets = [0, 0], sizes = [8, 8], strides = [1, 1]} : vector<8x32xf32> to vector<8x8xf32>
    %cst_22 = arith.constant dense<0xFF800000> : vector<8xf32>
    %37 = vector.multi_reduction <maximumf>, %36, %cst_22 [1] : vector<8x8xf32> to vector<8xf32>
    %38 = vector.shape_cast %37 : vector<8xf32> to vector<8x1xf32>
    %39 = vector.broadcast %38 : vector<8x1xf32> to vector<8x8xf32>
    %40 = arith.subf %36, %39 : vector<8x8xf32>
    %41 = math.exp %40 : vector<8x8xf32>
    %cst_23 = arith.constant dense<0.000000e+00> : vector<8xf32>
    %42 = vector.multi_reduction <add>, %41, %cst_23 [1] : vector<8x8xf32> to vector<8xf32>
    %43 = vector.shape_cast %42 : vector<8xf32> to vector<8x1xf32>
    %44 = tpu.reciprocal %43 {approx = true} : vector<8x1xf32> -> vector<8x1xf32>
    %45 = vector.broadcast %44 : vector<8x1xf32> to vector<8x8xf32>
    %46 = arith.mulf %41, %45 : vector<8x8xf32>
    %cst_24 = arith.constant 0.353553385 : f32
    %47 = vector.broadcast %cst_24 : f32 to vector<8x8xf32>
    %48 = arith.mulf %46, %47 : vector<8x8xf32>
    %49 = vector.extract_strided_slice %33 {offsets = [0, 0], sizes = [8, 8], strides = [1, 1]} : vector<8x32xf32> to vector<8x8xf32>
    %cst_25 = arith.constant dense<0xFF800000> : vector<8xf32>
    %50 = vector.multi_reduction <maximumf>, %49, %cst_25 [0] : vector<8x8xf32> to vector<8xf32>
    %51 = vector.shape_cast %50 : vector<8xf32> to vector<1x8xf32>
    %52 = vector.broadcast %51 : vector<1x8xf32> to vector<8x8xf32>
    %53 = arith.subf %49, %52 : vector<8x8xf32>
    %54 = math.exp %53 : vector<8x8xf32>
    %cst_26 = arith.constant dense<0.000000e+00> : vector<8xf32>
    %55 = vector.multi_reduction <add>, %54, %cst_26 [0] : vector<8x8xf32> to vector<8xf32>
    %56 = vector.shape_cast %55 : vector<8xf32> to vector<1x8xf32>
    %57 = tpu.reciprocal %56 {approx = true} : vector<1x8xf32> -> vector<1x8xf32>
    %58 = vector.broadcast %57 : vector<1x8xf32> to vector<8x8xf32>
    %59 = arith.mulf %54, %58 : vector<8x8xf32>
    %60 = vector.extract_strided_slice %35 {offsets = [0, 0], sizes = [8, 8], strides = [1, 1]} : vector<8x32xf32> to vector<8x8xf32>
    %61 = tpu.transpose %59, [1, 0] : vector<8x8xf32> -> vector<8x8xf32>
    %62 = arith.truncf %61 : vector<8x8xf32> to vector<8x8xbf16>
    %63 = arith.truncf %60 : vector<8x8xf32> to vector<8x8xbf16>
    %cst_27 = arith.constant dense<0.000000e+00> : vector<8x8xf32>
    %64 = tpu.matmul %62, %63, %cst_27 {dimension_numbers = #tpu.dot_dimension_numbers<[1], [0], [0], [1], [0, 0, 1, 1], [], []>} : vector<8x8xbf16>, vector<8x8xbf16>, vector<8x8xf32> -> vector<8x8xf32>
    %65 = arith.truncf %48 : vector<8x8xf32> to vector<8x8xbf16>
    %66 = arith.truncf %64 : vector<8x8xf32> to vector<8x8xbf16>
    %cst_28 = arith.constant dense<0.000000e+00> : vector<8x8xf32>
    %67 = tpu.matmul %65, %66, %cst_28 {dimension_numbers = #tpu.dot_dimension_numbers<[1], [0], [0], [1], [0, 0, 1, 1], [], []>} : vector<8x8xbf16>, vector<8x8xbf16>, vector<8x8xf32> -> vector<8x8xf32>
    %68 = vector.extract_strided_slice %28 {offsets = [0, 8], sizes = [8, 8], strides = [1, 1]} : vector<8x32xf32> to vector<8x8xf32>
    %cst_29 = arith.constant dense<0xFF800000> : vector<8xf32>
    %69 = vector.multi_reduction <maximumf>, %68, %cst_29 [1] : vector<8x8xf32> to vector<8xf32>
    %70 = vector.shape_cast %69 : vector<8xf32> to vector<8x1xf32>
    %71 = vector.broadcast %70 : vector<8x1xf32> to vector<8x8xf32>
    %72 = arith.subf %68, %71 : vector<8x8xf32>
    %73 = math.exp %72 : vector<8x8xf32>
    %cst_30 = arith.constant dense<0.000000e+00> : vector<8xf32>
    %74 = vector.multi_reduction <add>, %73, %cst_30 [1] : vector<8x8xf32> to vector<8xf32>
    %75 = vector.shape_cast %74 : vector<8xf32> to vector<8x1xf32>
    %76 = tpu.reciprocal %75 {approx = true} : vector<8x1xf32> -> vector<8x1xf32>
    %77 = vector.broadcast %76 : vector<8x1xf32> to vector<8x8xf32>
    %78 = arith.mulf %73, %77 : vector<8x8xf32>
    %cst_31 = arith.constant 0.353553385 : f32
    %79 = vector.broadcast %cst_31 : f32 to vector<8x8xf32>
    %80 = arith.mulf %78, %79 : vector<8x8xf32>
    %81 = vector.extract_strided_slice %33 {offsets = [0, 8], sizes = [8, 8], strides = [1, 1]} : vector<8x32xf32> to vector<8x8xf32>
    %cst_32 = arith.constant dense<0xFF800000> : vector<8xf32>
    %82 = vector.multi_reduction <maximumf>, %81, %cst_32 [0] : vector<8x8xf32> to vector<8xf32>
    %83 = vector.shape_cast %82 : vector<8xf32> to vector<1x8xf32>
    %84 = vector.broadcast %83 : vector<1x8xf32> to vector<8x8xf32>
    %85 = arith.subf %81, %84 : vector<8x8xf32>
    %86 = math.exp %85 : vector<8x8xf32>
    %cst_33 = arith.constant dense<0.000000e+00> : vector<8xf32>
    %87 = vector.multi_reduction <add>, %86, %cst_33 [0] : vector<8x8xf32> to vector<8xf32>
    %88 = vector.shape_cast %87 : vector<8xf32> to vector<1x8xf32>
    %89 = tpu.reciprocal %88 {approx = true} : vector<1x8xf32> -> vector<1x8xf32>
    %90 = vector.broadcast %89 : vector<1x8xf32> to vector<8x8xf32>
    %91 = arith.mulf %86, %90 : vector<8x8xf32>
    %92 = vector.extract_strided_slice %35 {offsets = [0, 8], sizes = [8, 8], strides = [1, 1]} : vector<8x32xf32> to vector<8x8xf32>
    %93 = tpu.transpose %91, [1, 0] : vector<8x8xf32> -> vector<8x8xf32>
    %94 = arith.truncf %93 : vector<8x8xf32> to vector<8x8xbf16>
    %95 = arith.truncf %92 : vector<8x8xf32> to vector<8x8xbf16>
    %cst_34 = arith.constant dense<0.000000e+00> : vector<8x8xf32>
    %96 = tpu.matmul %94, %95, %cst_34 {dimension_numbers = #tpu.dot_dimension_numbers<[1], [0], [0], [1], [0, 0, 1, 1], [], []>} : vector<8x8xbf16>, vector<8x8xbf16>, vector<8x8xf32> -> vector<8x8xf32>
    %97 = arith.truncf %80 : vector<8x8xf32> to vector<8x8xbf16>
    %98 = arith.truncf %96 : vector<8x8xf32> to vector<8x8xbf16>
    %cst_35 = arith.constant dense<0.000000e+00> : vector<8x8xf32>
    %99 = tpu.matmul %97, %98, %cst_35 {dimension_numbers = #tpu.dot_dimension_numbers<[1], [0], [0], [1], [0, 0, 1, 1], [], []>} : vector<8x8xbf16>, vector<8x8xbf16>, vector<8x8xf32> -> vector<8x8xf32>
    %100 = vector.extract_strided_slice %28 {offsets = [0, 16], sizes = [8, 8], strides = [1, 1]} : vector<8x32xf32> to vector<8x8xf32>
    %cst_36 = arith.constant dense<0xFF800000> : vector<8xf32>
    %101 = vector.multi_reduction <maximumf>, %100, %cst_36 [1] : vector<8x8xf32> to vector<8xf32>
    %102 = vector.shape_cast %101 : vector<8xf32> to vector<8x1xf32>
    %103 = vector.broadcast %102 : vector<8x1xf32> to vector<8x8xf32>
    %104 = arith.subf %100, %103 : vector<8x8xf32>
    %105 = math.exp %104 : vector<8x8xf32>
    %cst_37 = arith.constant dense<0.000000e+00> : vector<8xf32>
    %106 = vector.multi_reduction <add>, %105, %cst_37 [1] : vector<8x8xf32> to vector<8xf32>
    %107 = vector.shape_cast %106 : vector<8xf32> to vector<8x1xf32>
    %108 = tpu.reciprocal %107 {approx = true} : vector<8x1xf32> -> vector<8x1xf32>
    %109 = vector.broadcast %108 : vector<8x1xf32> to vector<8x8xf32>
    %110 = arith.mulf %105, %109 : vector<8x8xf32>
    %cst_38 = arith.constant 0.353553385 : f32
    %111 = vector.broadcast %cst_38 : f32 to vector<8x8xf32>
    %112 = arith.mulf %110, %111 : vector<8x8xf32>
    %113 = vector.extract_strided_slice %33 {offsets = [0, 16], sizes = [8, 8], strides = [1, 1]} : vector<8x32xf32> to vector<8x8xf32>
    %cst_39 = arith.constant dense<0xFF800000> : vector<8xf32>
    %114 = vector.multi_reduction <maximumf>, %113, %cst_39 [0] : vector<8x8xf32> to vector<8xf32>
    %115 = vector.shape_cast %114 : vector<8xf32> to vector<1x8xf32>
    %116 = vector.broadcast %115 : vector<1x8xf32> to vector<8x8xf32>
    %117 = arith.subf %113, %116 : vector<8x8xf32>
    %118 = math.exp %117 : vector<8x8xf32>
    %cst_40 = arith.constant dense<0.000000e+00> : vector<8xf32>
    %119 = vector.multi_reduction <add>, %118, %cst_40 [0] : vector<8x8xf32> to vector<8xf32>
    %120 = vector.shape_cast %119 : vector<8xf32> to vector<1x8xf32>
    %121 = tpu.reciprocal %120 {approx = true} : vector<1x8xf32> -> vector<1x8xf32>
    %122 = vector.broadcast %121 : vector<1x8xf32> to vector<8x8xf32>
    %123 = arith.mulf %118, %122 : vector<8x8xf32>
    %124 = vector.extract_strided_slice %35 {offsets = [0, 16], sizes = [8, 8], strides = [1, 1]} : vector<8x32xf32> to vector<8x8xf32>
    %125 = tpu.transpose %123, [1, 0] : vector<8x8xf32> -> vector<8x8xf32>
    %126 = arith.truncf %125 : vector<8x8xf32> to vector<8x8xbf16>
    %127 = arith.truncf %124 : vector<8x8xf32> to vector<8x8xbf16>
    %cst_41 = arith.constant dense<0.000000e+00> : vector<8x8xf32>
    %128 = tpu.matmul %126, %127, %cst_41 {dimension_numbers = #tpu.dot_dimension_numbers<[1], [0], [0], [1], [0, 0, 1, 1], [], []>} : vector<8x8xbf16>, vector<8x8xbf16>, vector<8x8xf32> -> vector<8x8xf32>
    %129 = arith.truncf %112 : vector<8x8xf32> to vector<8x8xbf16>
    %130 = arith.truncf %128 : vector<8x8xf32> to vector<8x8xbf16>
    %cst_42 = arith.constant dense<0.000000e+00> : vector<8x8xf32>
    %131 = tpu.matmul %129, %130, %cst_42 {dimension_numbers = #tpu.dot_dimension_numbers<[1], [0], [0], [1], [0, 0, 1, 1], [], []>} : vector<8x8xbf16>, vector<8x8xbf16>, vector<8x8xf32> -> vector<8x8xf32>
    %132 = vector.extract_strided_slice %28 {offsets = [0, 24], sizes = [8, 8], strides = [1, 1]} : vector<8x32xf32> to vector<8x8xf32>
    %cst_43 = arith.constant dense<0xFF800000> : vector<8xf32>
    %133 = vector.multi_reduction <maximumf>, %132, %cst_43 [1] : vector<8x8xf32> to vector<8xf32>
    %134 = vector.shape_cast %133 : vector<8xf32> to vector<8x1xf32>
    %135 = vector.broadcast %134 : vector<8x1xf32> to vector<8x8xf32>
    %136 = arith.subf %132, %135 : vector<8x8xf32>
    %137 = math.exp %136 : vector<8x8xf32>
    %cst_44 = arith.constant dense<0.000000e+00> : vector<8xf32>
    %138 = vector.multi_reduction <add>, %137, %cst_44 [1] : vector<8x8xf32> to vector<8xf32>
    %139 = vector.shape_cast %138 : vector<8xf32> to vector<8x1xf32>
    %140 = tpu.reciprocal %139 {approx = true} : vector<8x1xf32> -> vector<8x1xf32>
    %141 = vector.broadcast %140 : vector<8x1xf32> to vector<8x8xf32>
    %142 = arith.mulf %137, %141 : vector<8x8xf32>
    %cst_45 = arith.constant 0.353553385 : f32
    %143 = vector.broadcast %cst_45 : f32 to vector<8x8xf32>
    %144 = arith.mulf %142, %143 : vector<8x8xf32>
    %145 = vector.extract_strided_slice %33 {offsets = [0, 24], sizes = [8, 8], strides = [1, 1]} : vector<8x32xf32> to vector<8x8xf32>
    %cst_46 = arith.constant dense<0xFF800000> : vector<8xf32>
    %146 = vector.multi_reduction <maximumf>, %145, %cst_46 [0] : vector<8x8xf32> to vector<8xf32>
    %147 = vector.shape_cast %146 : vector<8xf32> to vector<1x8xf32>
    %148 = vector.broadcast %147 : vector<1x8xf32> to vector<8x8xf32>
    %149 = arith.subf %145, %148 : vector<8x8xf32>
    %150 = math.exp %149 : vector<8x8xf32>
    %cst_47 = arith.constant dense<0.000000e+00> : vector<8xf32>
    %151 = vector.multi_reduction <add>, %150, %cst_47 [0] : vector<8x8xf32> to vector<8xf32>
    %152 = vector.shape_cast %151 : vector<8xf32> to vector<1x8xf32>
    %153 = tpu.reciprocal %152 {approx = true} : vector<1x8xf32> -> vector<1x8xf32>
    %154 = vector.broadcast %153 : vector<1x8xf32> to vector<8x8xf32>
    %155 = arith.mulf %150, %154 : vector<8x8xf32>
    %156 = vector.extract_strided_slice %35 {offsets = [0, 24], sizes = [8, 8], strides = [1, 1]} : vector<8x32xf32> to vector<8x8xf32>
    %157 = tpu.transpose %155, [1, 0] : vector<8x8xf32> -> vector<8x8xf32>
    %158 = arith.truncf %157 : vector<8x8xf32> to vector<8x8xbf16>
    %159 = arith.truncf %156 : vector<8x8xf32> to vector<8x8xbf16>
    %cst_48 = arith.constant dense<0.000000e+00> : vector<8x8xf32>
    %160 = tpu.matmul %158, %159, %cst_48 {dimension_numbers = #tpu.dot_dimension_numbers<[1], [0], [0], [1], [0, 0, 1, 1], [], []>} : vector<8x8xbf16>, vector<8x8xbf16>, vector<8x8xf32> -> vector<8x8xf32>
    %161 = arith.truncf %144 : vector<8x8xf32> to vector<8x8xbf16>
    %162 = arith.truncf %160 : vector<8x8xf32> to vector<8x8xbf16>
    %cst_49 = arith.constant dense<0.000000e+00> : vector<8x8xf32>
    %163 = tpu.matmul %161, %162, %cst_49 {dimension_numbers = #tpu.dot_dimension_numbers<[1], [0], [0], [1], [0, 0, 1, 1], [], []>} : vector<8x8xbf16>, vector<8x8xbf16>, vector<8x8xf32> -> vector<8x8xf32>
    %164 = tpu.concatenate %67, %99, %131, %163 in 1 : vector<8x8xf32>, vector<8x8xf32>, vector<8x8xf32>, vector<8x8xf32> -> vector<8x32xf32>
    %165 = arith.truncf %164 : vector<8x32xf32> to vector<8x32xbf16>
    %c0_50 = arith.constant 0 : index
    %c0_51 = arith.constant 0 : index
    %166 = vector.load %arg8[%c0_50, %c0_51] : memref<32x32xbf16, #tpu.memory_space<vmem>>, vector<32x32xbf16>
    %cst_52 = arith.constant dense<0.000000e+00> : vector<8x32xf32>
    %167 = tpu.matmul %165, %166, %cst_52 {dimension_numbers = #tpu.dot_dimension_numbers<[1], [0], [0], [1], [0, 0, 1, 1], [], []>} : vector<8x32xbf16>, vector<32x32xbf16>, vector<8x32xf32> -> vector<8x32xf32>
    %168 = arith.addf %1, %167 : vector<8x32xf32>
    %c0_53 = arith.constant 0 : index
    %c0_54 = arith.constant 0 : index
    %169 = vector.load %arg9[%c0_53, %c0_54] : memref<1x32xf32, #tpu.memory_space<vmem>>, vector<1x32xf32>
    %170 = vector.broadcast %169 : vector<1x32xf32> to vector<8x32xf32>
    %171 = arith.addf %168, %170 : vector<8x32xf32>
    %c0_55 = arith.constant 0 : index
    %c0_56 = arith.constant 0 : index
    %172 = vector.load %arg10[%c0_55, %c0_56] : memref<1x32xf32, #tpu.memory_space<vmem>>, vector<1x32xf32>
    %c0_57 = arith.constant 0 : index
    %c0_58 = arith.constant 0 : index
    %173 = vector.load %arg11[%c0_57, %c0_58] : memref<1x32xf32, #tpu.memory_space<vmem>>, vector<1x32xf32>
    %cst_59 = arith.constant dense<0.000000e+00> : vector<8xf32>
    %174 = vector.multi_reduction <add>, %171, %cst_59 [1] : vector<8x32xf32> to vector<8xf32>
    %175 = vector.shape_cast %174 : vector<8xf32> to vector<8x1xf32>
    %cst_60 = arith.constant 3.200000e+01 : f32
    %176 = vector.broadcast %cst_60 : f32 to vector<8x1xf32>
    %177 = arith.divf %175, %176 : vector<8x1xf32>
    %178 = vector.broadcast %177 : vector<8x1xf32> to vector<8x32xf32>
    %179 = arith.subf %171, %178 : vector<8x32xf32>
    %180 = arith.mulf %179, %179 : vector<8x32xf32>
    %cst_61 = arith.constant dense<0.000000e+00> : vector<8xf32>
    %181 = vector.multi_reduction <add>, %180, %cst_61 [1] : vector<8x32xf32> to vector<8xf32>
    %182 = vector.shape_cast %181 : vector<8xf32> to vector<8x1xf32>
    %cst_62 = arith.constant 3.200000e+01 : f32
    %183 = vector.broadcast %cst_62 : f32 to vector<8x1xf32>
    %184 = arith.divf %182, %183 : vector<8x1xf32>
    %185 = vector.broadcast %177 : vector<8x1xf32> to vector<8x32xf32>
    %186 = arith.subf %171, %185 : vector<8x32xf32>
    %cst_63 = arith.constant 9.99999974E-6 : f32
    %187 = vector.broadcast %cst_63 : f32 to vector<8x1xf32>
    %188 = arith.addf %184, %187 : vector<8x1xf32>
    %189 = math.rsqrt %188 : vector<8x1xf32>
    %190 = vector.broadcast %189 : vector<8x1xf32> to vector<8x32xf32>
    %191 = arith.mulf %186, %190 : vector<8x32xf32>
    %192 = vector.broadcast %172 : vector<1x32xf32> to vector<8x32xf32>
    %193 = arith.mulf %191, %192 : vector<8x32xf32>
    %194 = vector.broadcast %173 : vector<1x32xf32> to vector<8x32xf32>
    %195 = arith.addf %193, %194 : vector<8x32xf32>
    %196 = arith.truncf %195 : vector<8x32xf32> to vector<8x32xbf16>
    %c0_64 = arith.constant 0 : index
    %c0_65 = arith.constant 0 : index
    %197 = vector.load %arg12[%c0_64, %c0_65] : memref<32x128xbf16, #tpu.memory_space<vmem>>, vector<32x128xbf16>
    %cst_66 = arith.constant dense<0.000000e+00> : vector<8x128xf32>
    %198 = tpu.matmul %196, %197, %cst_66 {dimension_numbers = #tpu.dot_dimension_numbers<[1], [0], [0], [1], [0, 0, 1, 1], [], []>} : vector<8x32xbf16>, vector<32x128xbf16>, vector<8x128xf32> -> vector<8x128xf32>
    %c0_67 = arith.constant 0 : index
    %c0_68 = arith.constant 0 : index
    %199 = vector.load %arg13[%c0_67, %c0_68] : memref<1x128xf32, #tpu.memory_space<vmem>>, vector<1x128xf32>
    %200 = vector.broadcast %199 : vector<1x128xf32> to vector<8x128xf32>
    %201 = arith.addf %198, %200 : vector<8x128xf32>
    %202 = arith.mulf %201, %201 : vector<8x128xf32>
    %203 = arith.mulf %201, %202 : vector<8x128xf32>
    %cst_69 = arith.constant 4.471500e-02 : f32
    %204 = vector.broadcast %cst_69 : f32 to vector<8x128xf32>
    %205 = arith.mulf %204, %203 : vector<8x128xf32>
    %206 = arith.addf %201, %205 : vector<8x128xf32>
    %cst_70 = arith.constant 0.797884583 : f32
    %207 = vector.broadcast %cst_70 : f32 to vector<8x128xf32>
    %208 = arith.mulf %207, %206 : vector<8x128xf32>
    %209 = math.tanh %208 : vector<8x128xf32>
    %cst_71 = arith.constant 1.000000e+00 : f32
    %210 = vector.broadcast %cst_71 : f32 to vector<8x128xf32>
    %211 = arith.addf %210, %209 : vector<8x128xf32>
    %cst_72 = arith.constant 5.000000e-01 : f32
    %212 = vector.broadcast %cst_72 : f32 to vector<8x128xf32>
    %213 = arith.mulf %212, %211 : vector<8x128xf32>
    %214 = arith.mulf %201, %213 : vector<8x128xf32>
    %215 = arith.truncf %214 : vector<8x128xf32> to vector<8x128xbf16>
    %c0_73 = arith.constant 0 : index
    %c0_74 = arith.constant 0 : index
    %216 = vector.load %arg14[%c0_73, %c0_74] : memref<128x32xbf16, #tpu.memory_space<vmem>>, vector<128x32xbf16>
    %cst_75 = arith.constant dense<0.000000e+00> : vector<8x32xf32>
    %217 = tpu.matmul %215, %216, %cst_75 {dimension_numbers = #tpu.dot_dimension_numbers<[1], [0], [0], [1], [0, 0, 1, 1], [], []>} : vector<8x128xbf16>, vector<128x32xbf16>, vector<8x32xf32> -> vector<8x32xf32>
    %218 = arith.addf %171, %217 : vector<8x32xf32>
    %c0_76 = arith.constant 0 : index
    %c0_77 = arith.constant 0 : index
    %219 = vector.load %arg15[%c0_76, %c0_77] : memref<1x32xf32, #tpu.memory_space<vmem>>, vector<1x32xf32>
    %220 = vector.broadcast %219 : vector<1x32xf32> to vector<8x32xf32>
    %221 = arith.addf %218, %220 : vector<8x32xf32>
    %c0_78 = arith.constant 0 : index
    %c0_79 = arith.constant 0 : index
    %c0_80 = arith.constant 0 : index
    %222 = vector.load %arg16[%c0_78, %c0_79, %c0_80] : memref<1x8x32xf32, #tpu.memory_space<vmem>>, vector<1x8x32xf32>
    %223 = vector.shape_cast %222 : vector<1x8x32xf32> to vector<8x32xf32>
    %224 = vector.shape_cast %221 : vector<8x32xf32> to vector<1x8x32xf32>
    tpu.vector_store %arg16[%c0_78, %c0_79, %c0_80], %224 {strides = array<i32>} : memref<1x8x32xf32, #tpu.memory_space<vmem>>, vector<1x8x32xf32>,
    return
  }
  func.func @transform_0(%arg0: i32) -> (i32, i32, i32) {
    %c0_i32 = arith.constant 0 : i32
    %c0_i32_0 = arith.constant 0 : i32
    %c0_i32_1 = arith.constant 0 : i32
    return %arg0, %c0_i32, %c0_i32_0 : i32, i32, i32
  }
  func.func @transform_1(%arg0: i32) -> (i32, i32, i32) {
    %c0_i32 = arith.constant 0 : i32
    %c0_i32_0 = arith.constant 0 : i32
    %c0_i32_1 = arith.constant 0 : i32
    return %arg0, %c0_i32, %c0_i32_0 : i32, i32, i32
  }
  func.func @transform_2(%arg0: i32) -> (i32, i32) {
    %c0_i32 = arith.constant 0 : i32
    %c0_i32_0 = arith.constant 0 : i32
    %c0_i32_1 = arith.constant 0 : i32
    return %c0_i32, %c0_i32_0 : i32, i32
  }
  func.func @transform_3(%arg0: i32) -> (i32, i32) {
    %c0_i32 = arith.constant 0 : i32
    %c0_i32_0 = arith.constant 0 : i32
    %c0_i32_1 = arith.constant 0 : i32
    return %c0_i32, %c0_i32_0 : i32, i32
  }
  func.func @transform_4(%arg0: i32) -> (i32, i32) {
    %c0_i32 = arith.constant 0 : i32
    %c0_i32_0 = arith.constant 0 : i32
    %c0_i32_1 = arith.constant 0 : i32
    return %c0_i32, %c0_i32_0 : i32, i32
  }
  func.func @transform_5(%arg0: i32) -> (i32, i32) {
    %c0_i32 = arith.constant 0 : i32
    %c0_i32_0 = arith.constant 0 : i32
    %c0_i32_1 = arith.constant 0 : i32
    return %c0_i32, %c0_i32_0 : i32, i32
  }
  func.func @transform_6(%arg0: i32) -> (i32, i32) {
    %c0_i32 = arith.constant 0 : i32
    %c0_i32_0 = arith.constant 0 : i32
    %c0_i32_1 = arith.constant 0 : i32
    return %c0_i32, %c0_i32_0 : i32, i32
  }
  func.func @transform_7(%arg0: i32) -> (i32, i32) {
    %c0_i32 = arith.constant 0 : i32
    %c0_i32_0 = arith.constant 0 : i32
    %c0_i32_1 = arith.constant 0 : i32
    return %c0_i32, %c0_i32_0 : i32, i32
  }
  func.func @transform_8(%arg0: i32) -> (i32, i32) {
    %c0_i32 = arith.constant 0 : i32
    %c0_i32_0 = arith.constant 0 : i32
    %c0_i32_1 = arith.constant 0 : i32
    return %c0_i32, %c0_i32_0 : i32, i32
  }
  func.func @transform_9(%arg0: i32) -> (i32, i32) {
    %c0_i32 = arith.constant 0 : i32
    %c0_i32_0 = arith.constant 0 : i32
    %c0_i32_1 = arith.constant 0 : i32
    return %c0_i32, %c0_i32_0 : i32, i32
  }
  func.func @transform_10(%arg0: i32) -> (i32, i32) {
    %c0_i32 = arith.constant 0 : i32
    %c0_i32_0 = arith.constant 0 : i32
    %c0_i32_1 = arith.constant 0 : i32
    return %c0_i32, %c0_i32_0 : i32, i32
  }
  func.func @transform_11(%arg0: i32) -> (i32, i32) {
    %c0_i32 = arith.constant 0 : i32
    %c0_i32_0 = arith.constant 0 : i32
    %c0_i32_1 = arith.constant 0 : i32
    return %c0_i32, %c0_i32_0 : i32, i32
  }
  func.func @transform_12(%arg0: i32) -> (i32, i32) {
    %c0_i32 = arith.constant 0 : i32
    %c0_i32_0 = arith.constant 0 : i32
    %c0_i32_1 = arith.constant 0 : i32
    return %c0_i32, %c0_i32_0 : i32, i32
  }
  func.func @transform_13(%arg0: i32) -> (i32, i32) {
    %c0_i32 = arith.constant 0 : i32
    %c0_i32_0 = arith.constant 0 : i32
    %c0_i32_1 = arith.constant 0 : i32
    return %c0_i32, %c0_i32_0 : i32, i32
  }
  func.func @transform_14(%arg0: i32) -> (i32, i32) {
    %c0_i32 = arith.constant 0 : i32
    %c0_i32_0 = arith.constant 0 : i32
    %c0_i32_1 = arith.constant 0 : i32
    return %c0_i32, %c0_i32_0 : i32, i32
  }
  func.func @transform_15(%arg0: i32) -> (i32, i32, i32) {
    %c0_i32 = arith.constant 0 : i32
    %c0_i32_0 = arith.constant 0 : i32
    %c0_i32_1 = arith.constant 0 : i32
    return %arg0, %c0_i32, %c0_i32_0 : i32, i32, i32
  }
}

module attributes {stable_mosaic.version = 11 : i64} {
  func.func @_head_kernel(%arg0: i32, %arg1: memref<1x1xf32, #tpu.memory_space<smem>>, %arg2: memref<1x8x32xf32, #tpu.memory_space<vmem>>, %arg3: memref<1x32xf32, #tpu.memory_space<vmem>>, %arg4: memref<1x32xf32, #tpu.memory_space<vmem>>, %arg5: memref<32x4xbf16, #tpu.memory_space<vmem>>, %arg6: memref<4x1xf32, #tpu.memory_space<vmem>>, %arg7: memref<1x4x8xf32, #tpu.memory_space<vmem>>) attributes {dimension_semantics = [#tpu.dimension_semantics<parallel>], iteration_bounds = array<i64: 2>, scalar_prefetch = 0 : i64, scratch_operands = 0 : i64, tpu.core_type = #tpu.core_type<tc>, window_params = [{transform_indices = @transform_0, window_bounds = array<i64: 1, 1>}, {transform_indices = @transform_1, window_bounds = array<i64: 1, 8, 32>}, {pipeline_mode = #tpu.pipeline_mode<synchronous>, transform_indices = @transform_2, window_bounds = array<i64: 1, 32>}, {pipeline_mode = #tpu.pipeline_mode<synchronous>, transform_indices = @transform_3, window_bounds = array<i64: 1, 32>}, {pipeline_mode = #tpu.pipeline_mode<synchronous>, transform_indices = @transform_4, window_bounds = array<i64: 32, 4>}, {pipeline_mode = #tpu.pipeline_mode<synchronous>, transform_indices = @transform_5, window_bounds = array<i64: 4, 1>}, {transform_indices = @transform_6, window_bounds = array<i64: 1, 4, 8>}]} {
    %c0 = arith.constant 0 : index
    %c0_0 = arith.constant 0 : index
    %c0_1 = arith.constant 0 : index
    %0 = vector.load %arg2[%c0, %c0_0, %c0_1] : memref<1x8x32xf32, #tpu.memory_space<vmem>>, vector<1x8x32xf32>
    %1 = vector.shape_cast %0 : vector<1x8x32xf32> to vector<8x32xf32>
    %c0_2 = arith.constant 0 : index
    %c0_3 = arith.constant 0 : index
    %2 = vector.load %arg3[%c0_2, %c0_3] : memref<1x32xf32, #tpu.memory_space<vmem>>, vector<1x32xf32>
    %c0_4 = arith.constant 0 : index
    %c0_5 = arith.constant 0 : index
    %3 = vector.load %arg4[%c0_4, %c0_5] : memref<1x32xf32, #tpu.memory_space<vmem>>, vector<1x32xf32>
    %cst = arith.constant dense<0.000000e+00> : vector<8xf32>
    %4 = vector.multi_reduction <add>, %1, %cst [1] : vector<8x32xf32> to vector<8xf32>
    %5 = vector.shape_cast %4 : vector<8xf32> to vector<8x1xf32>
    %cst_6 = arith.constant 3.200000e+01 : f32
    %6 = vector.broadcast %cst_6 : f32 to vector<8x1xf32>
    %7 = arith.divf %5, %6 : vector<8x1xf32>
    %8 = vector.broadcast %7 : vector<8x1xf32> to vector<8x32xf32>
    %9 = arith.subf %1, %8 : vector<8x32xf32>
    %10 = arith.mulf %9, %9 : vector<8x32xf32>
    %cst_7 = arith.constant dense<0.000000e+00> : vector<8xf32>
    %11 = vector.multi_reduction <add>, %10, %cst_7 [1] : vector<8x32xf32> to vector<8xf32>
    %12 = vector.shape_cast %11 : vector<8xf32> to vector<8x1xf32>
    %cst_8 = arith.constant 3.200000e+01 : f32
    %13 = vector.broadcast %cst_8 : f32 to vector<8x1xf32>
    %14 = arith.divf %12, %13 : vector<8x1xf32>
    %15 = vector.broadcast %7 : vector<8x1xf32> to vector<8x32xf32>
    %16 = arith.subf %1, %15 : vector<8x32xf32>
    %cst_9 = arith.constant 9.99999974E-6 : f32
    %17 = vector.broadcast %cst_9 : f32 to vector<8x1xf32>
    %18 = arith.addf %14, %17 : vector<8x1xf32>
    %19 = math.rsqrt %18 : vector<8x1xf32>
    %20 = vector.broadcast %19 : vector<8x1xf32> to vector<8x32xf32>
    %21 = arith.mulf %16, %20 : vector<8x32xf32>
    %22 = vector.broadcast %2 : vector<1x32xf32> to vector<8x32xf32>
    %23 = arith.mulf %21, %22 : vector<8x32xf32>
    %24 = vector.broadcast %3 : vector<1x32xf32> to vector<8x32xf32>
    %25 = arith.addf %23, %24 : vector<8x32xf32>
    %26 = arith.truncf %25 : vector<8x32xf32> to vector<8x32xbf16>
    %c0_10 = arith.constant 0 : index
    %c0_11 = arith.constant 0 : index
    %27 = vector.load %arg5[%c0_10, %c0_11] : memref<32x4xbf16, #tpu.memory_space<vmem>>, vector<32x4xbf16>
    %cst_12 = arith.constant dense<0.000000e+00> : vector<4x8xf32>
    %28 = tpu.matmul %27, %26, %cst_12 {dimension_numbers = #tpu.dot_dimension_numbers<[0], [1], [1], [0], [0, 1, 1, 0], [], []>} : vector<32x4xbf16>, vector<8x32xbf16>, vector<4x8xf32> -> vector<4x8xf32>
    %c0_13 = arith.constant 0 : index
    %c0_14 = arith.constant 0 : index
    %29 = memref.load %arg1[%c0_13, %c0_14] : memref<1x1xf32, #tpu.memory_space<smem>>
    %c0_15 = arith.constant 0 : index
    %c0_16 = arith.constant 0 : index
    %30 = vector.load %arg6[%c0_15, %c0_16] : memref<4x1xf32, #tpu.memory_space<vmem>>, vector<4x1xf32>
    %31 = vector.broadcast %30 : vector<4x1xf32> to vector<4x8xf32>
    %32 = arith.addf %28, %31 : vector<4x8xf32>
    %33 = vector.broadcast %29 : f32 to vector<4x8xf32>
    %34 = arith.mulf %33, %32 : vector<4x8xf32>
    %c0_17 = arith.constant 0 : index
    %c0_18 = arith.constant 0 : index
    %c0_19 = arith.constant 0 : index
    %35 = vector.load %arg7[%c0_17, %c0_18, %c0_19] : memref<1x4x8xf32, #tpu.memory_space<vmem>>, vector<1x4x8xf32>
    %36 = vector.shape_cast %35 : vector<1x4x8xf32> to vector<4x8xf32>
    %37 = vector.shape_cast %34 : vector<4x8xf32> to vector<1x4x8xf32>
    tpu.vector_store %arg7[%c0_17, %c0_18, %c0_19], %37 {strides = array<i32>} : memref<1x4x8xf32, #tpu.memory_space<vmem>>, vector<1x4x8xf32>,
    return
  }
  func.func @transform_0(%arg0: i32) -> (i32, i32) {
    %c0_i32 = arith.constant 0 : i32
    %c0_i32_0 = arith.constant 0 : i32
    %c0_i32_1 = arith.constant 0 : i32
    return %c0_i32, %c0_i32_0 : i32, i32
  }
  func.func @transform_1(%arg0: i32) -> (i32, i32, i32) {
    %c0_i32 = arith.constant 0 : i32
    %c0_i32_0 = arith.constant 0 : i32
    %c0_i32_1 = arith.constant 0 : i32
    return %arg0, %c0_i32, %c0_i32_0 : i32, i32, i32
  }
  func.func @transform_2(%arg0: i32) -> (i32, i32) {
    %c0_i32 = arith.constant 0 : i32
    %c0_i32_0 = arith.constant 0 : i32
    %c0_i32_1 = arith.constant 0 : i32
    return %c0_i32, %c0_i32_0 : i32, i32
  }
  func.func @transform_3(%arg0: i32) -> (i32, i32) {
    %c0_i32 = arith.constant 0 : i32
    %c0_i32_0 = arith.constant 0 : i32
    %c0_i32_1 = arith.constant 0 : i32
    return %c0_i32, %c0_i32_0 : i32, i32
  }
  func.func @transform_4(%arg0: i32) -> (i32, i32) {
    %c0_i32 = arith.constant 0 : i32
    %c0_i32_0 = arith.constant 0 : i32
    %c0_i32_1 = arith.constant 0 : i32
    return %c0_i32, %c0_i32_0 : i32, i32
  }
  func.func @transform_5(%arg0: i32) -> (i32, i32) {
    %c0_i32 = arith.constant 0 : i32
    %c0_i32_0 = arith.constant 0 : i32
    %c0_i32_1 = arith.constant 0 : i32
    return %c0_i32, %c0_i32_0 : i32, i32
  }
  func.func @transform_6(%arg0: i32) -> (i32, i32, i32) {
    %c0_i32 = arith.constant 0 : i32
    %c0_i32_0 = arith.constant 0 : i32
    %c0_i32_1 = arith.constant 0 : i32
    return %arg0, %c0_i32, %c0_i32_0 : i32, i32, i32
  }
}

</mosaic_0001>

<llo_original>
// kernel: run.7
$region0: #{run.7}
  #allocation0 [shape = 'u32[]', space=smem, size = 0x4, offset = 0x4, fixed_abs, tag = 'smem constant byte address 0x4 - core index']
  #allocation1 [shape = 'u32[144,128]{1,0:T(1,128)}', space=vmem, size = 0x12000, scoped, tag = 'internal scratch']
  #allocation2 [shape = 'f32[2,128]{1,0:T(2,128)}', space=vmem, size = 0x400, scoped, tag = 'scratch operand']
  %s0 = inlined_call_operand.vmem [shape: f32[2,32], index: 0, kind: input, shape index: {}]
  %s1 = inlined_call_operand.vmem [shape: bf16[32,128], index: 1, kind: input, shape index: {}]
  %s2 = inlined_call_operand.vmem [shape: f32[1,128], index: 2, kind: input, shape index: {}]
  %s3 = inlined_call_operand.vmem [shape: f32[2,128], index: 3, kind: output, shape index: {}]
  %s4 = sld [smem:[#allocation0]]
  $region30: #{run.7} parent=0
    _
  %s6 = ssub.s32 1, %s4
  %s7 = scalar_select 0, %s6, %s4
  // Predicated region
  $region2: #{run.7} parent=0 // pred_check
    _
  $region3: #{run.7} parent=0 // pred_check_branch
    %9 = sbr.rel (0) target = $region5
  $region4: #{run.7} parent=0 // pred_region
    _
  $region5: #{run.7} parent=0 // pred_fallthru
    _
  // Predicated region
  $region6: #{run.7} parent=0 // pred_check
    _
  $region7: #{run.7} parent=0 // pred_check_branch
    %11 = sbr.rel (0) target = $region9
  $region8: #{run.7} parent=0 // pred_region
    _
  $region9: #{run.7} parent=0 // pred_fallthru
    _
  // Predicated region
  $region10: #{run.7} parent=0 // pred_check
    _
  $region11: #{run.7} parent=0 // pred_check_branch
    %13 = sbr.rel (0) target = $region13
  $region12: #{run.7} parent=0 // pred_region
    _
  $region13: #{run.7} parent=0 // pred_fallthru
    _
  %p15 = scmp.eq.s32.totalorder 0, 0
  // Predicated region
  $region14: #{run.7} parent=0 // pred_check
    %p16 = pneg %p15
  $region15: #{run.7} parent=0 // pred_check_branch
    %18 = sbr.rel (%p16) target = $region17
  $region16: #{run.7} parent=0 // pred_region
    %19 = vst [vmem:[#allocation2] sm:$0x3] 0.0
  $region17: #{run.7} parent=0 // pred_fallthru
    _
  %v20 = vld [vmem:[#allocation2] sm:$0x3]
  %v21 = vld [vmem:[%s0] sm:$0x3]
  %v22 = vpack.c.bf16 %v21, %v21
  %v23 = vld [vmem:[%s1] sm:$0xf]
  %v24 = vld [vmem:[%s1 + $0x4] sm:$0xf]
  %v25 = vld [vmem:[%s1 + $0x8] sm:$0xf]
  %v26 = vld [vmem:[%s1 + $0xc] sm:$0xf]
  %v31 = vunpack.c.l.b16 %v23
  %v32 = vunpack.c.l.b16 %v24
  %v33 = vunpack.c.l.b16 %v25
  %v34 = vunpack.c.l.b16 %v26
  %v35 = vpack.c.b16 %v32, %v31
  %v36 = vpack.c.b16 %v34, %v33
  %vm39 = vcmask 261120
  %v41 = vsel %vm39, %v22, 0
  %43 = vmatprep.subr.bf16.mxu0 0
  %44 = vmatpush1.bf16.msra.mxu0 %v35
  %45 = vmatprep.subr.bf16.mxu0 0
  %46 = vmatpush1.bf16.msra.mxu0 %v36
  %47 = vmatprep.subr.bf16.mxu0 0
  %48 = vmatpush1.bf16.msra.mxu0 0
  %49 = vmatprep.subr.bf16.mxu0 0
  %50 = vmatpush1.bf16.msra.mxu0 0
  %51 = vmatprep.subr.bf16.mxu0 0
  %52 = vmatpush1.bf16.msra.mxu0 0
  %53 = vmatprep.subr.bf16.mxu0 0
  %54 = vmatpush1.bf16.msra.mxu0 0
  %55 = vmatprep.subr.bf16.mxu0 0
  %56 = vmatpush1.bf16.msra.mxu0 0
  %57 = vmatprep.subr.bf16.mxu0 0
  %58 = vmatpush1.bf16.msra.mxu0 0
  %59 = vmatprep.subr.bf16.mxu0 0
  %60 = vmatpush1.bf16.msra.mxu0 0
  %61 = vmatprep.subr.bf16.mxu0 0
  %62 = vmatpush1.bf16.msra.mxu0 0
  %63 = vmatprep.subr.bf16.mxu0 0
  %64 = vmatpush1.bf16.msra.mxu0 0
  %65 = vmatprep.subr.bf16.mxu0 0
  %66 = vmatpush1.bf16.msra.mxu0 0
  %67 = vmatprep.subr.bf16.mxu0 0
  %68 = vmatpush1.bf16.msra.mxu0 0
  %69 = vmatprep.subr.bf16.mxu0 0
  %70 = vmatpush1.bf16.msra.mxu0 0
  %71 = vmatprep.subr.bf16.mxu0 0
  %72 = vmatpush1.bf16.msra.mxu0 0
  %73 = vmatprep.subr.bf16.mxu0 0
  %74 = vmatpush1.bf16.msra.mxu0 0
  %75 = vmatprep.mubr.bf16.mxu0 0
  %76 = vmatmul.mubr.bf16.gmra.mrb[0].mxu0 %v41
  %v77 = vpop.f32.mrb[0].mxu0
  %v78 = vadd.f32 0.0, %v77
  %v79 = vpop.f32.mrb[0].mxu0
  %v80 = vpop.f32.mrb[0].mxu0
  %v81 = vpop.f32.mrb[0].mxu0
  %82 = vdwg.mxu0
  %v83 = vadd.f32 %v20, %v78
  %84 = vst [vmem:[#allocation2] sm:$0x3] %v83
  // Predicated region
  $region18: #{run.7} parent=0 // pred_check
    %p85 = pneg %p15
  $region19: #{run.7} parent=0 // pred_check_branch
    %87 = sbr.rel (%p85) target = $region21
  $region20: #{run.7} parent=0 // pred_region
    %v88 = vld [vmem:[#allocation2] sm:$0x3]
    %v89 = vld [vmem:[%s2] sm:$0x1]
    %v91 = vlaneseq
    %v92 = vshrl.u32 %v91, 7
    %v93 = vsub.s32 0, %v92
    %v94 = vrot.slane %v89, %v93
    %v96 = vadd.f32 %v88, %v94
    %v97 = vmax.f32 %v96, 0.0
    %v98 = vand.u32 2147483647, %v96
    %v99 = vsub.f32 0.0, %v98
    %v100 = vmul.f32 %v99, 1.442695
    %v101 = vpow.pop %v100
    %v102 = vadd.f32 %v101, 1.0
    %v103 = vlog2.pop %v102
    %v104 = vmul.f32 %v103, 0.6931472
    %v105 = vadd.f32 %v97, %v104
    %106 = vst [vmem:[%s3] sm:$0x3] %v105
  $region21: #{run.7} parent=0 // pred_fallthru
    _
  // Predicated region
  $region22: #{run.7} parent=0 // pred_check
    _
  $region23: #{run.7} parent=0 // pred_check_branch
    %108 = sbr.rel (0) target = $region25
  $region24: #{run.7} parent=0 // pred_region
    _
  $region25: #{run.7} parent=0 // pred_fallthru
    _
  // Predicated region
  $region26: #{run.7} parent=0 // pred_check
    _
  $region27: #{run.7} parent=0 // pred_check_branch
    %110 = sbr.rel (0) target = $region29
  $region28: #{run.7} parent=0 // pred_region
    _
  $region29: #{run.7} parent=0 // pred_fallthru
    _

// kernel: run.8
$region0: #{run.8}
  #allocation0 [shape = 'u32[]', space=smem, size = 0x4, offset = 0x4, fixed_abs, tag = 'smem constant byte address 0x4 - core index']
  #allocation1 [shape = 'u32[144,128]{1,0:T(1,128)}', space=vmem, size = 0x12000, scoped, tag = 'internal scratch']
  #allocation2 [shape = 'f32[2,64]{1,0:T(2,128)}', space=vmem, size = 0x400, scoped, tag = 'scratch operand']
  %s0 = inlined_call_operand.vmem [shape: f32[2,128], index: 0, kind: input, shape index: {}]
  %s1 = inlined_call_operand.vmem [shape: bf16[128,64], index: 1, kind: input, shape index: {}]
  %s2 = inlined_call_operand.vmem [shape: f32[1,64], index: 2, kind: input, shape index: {}]
  %s3 = inlined_call_operand.vmem [shape: f32[2,64], index: 3, kind: output, shape index: {}]
  %s4 = sld [smem:[#allocation0]]
  $region30: #{run.8} parent=0
    _
  %s6 = ssub.s32 1, %s4
  %s7 = scalar_select 0, %s6, %s4
  // Predicated region
  $region2: #{run.8} parent=0 // pred_check
    _
  $region3: #{run.8} parent=0 // pred_check_branch
    %9 = sbr.rel (0) target = $region5
  $region4: #{run.8} parent=0 // pred_region
    _
  $region5: #{run.8} parent=0 // pred_fallthru
    _
  // Predicated region
  $region6: #{run.8} parent=0 // pred_check
    _
  $region7: #{run.8} parent=0 // pred_check_branch
    %11 = sbr.rel (0) target = $region9
  $region8: #{run.8} parent=0 // pred_region
    _
  $region9: #{run.8} parent=0 // pred_fallthru
    _
  // Predicated region
  $region10: #{run.8} parent=0 // pred_check
    _
  $region11: #{run.8} parent=0 // pred_check_branch
    %13 = sbr.rel (0) target = $region13
  $region12: #{run.8} parent=0 // pred_region
    _
  $region13: #{run.8} parent=0 // pred_fallthru
    _
  %p15 = scmp.eq.s32.totalorder 0, 0
  // Predicated region
  $region14: #{run.8} parent=0 // pred_check
    %p16 = pneg %p15
  $region15: #{run.8} parent=0 // pred_check_branch
    %18 = sbr.rel (%p16) target = $region17
  $region16: #{run.8} parent=0 // pred_region
    %vm19 = vcmask 517120
    %20 = vst.msk [vmem:[#allocation2] sm:$0x3] %vm19, 0.0
  $region17: #{run.8} parent=0 // pred_fallthru
    _
  %v21 = vld [vmem:[#allocation2] sm:$0x3]
  %v22 = vld [vmem:[%s0] sm:$0x3]
  %v23 = vpack.c.bf16 %v22, %v22
  %v24 = vld [vmem:[%s1] sm:$0xf]
  %v25 = vld [vmem:[%s1 + $0x4] sm:$0xf]
  %v26 = vld [vmem:[%s1 + $0x8] sm:$0xf]
  %v27 = vld [vmem:[%s1 + $0xc] sm:$0xf]
  %v28 = vld [vmem:[%s1 + $0x10] sm:$0xf]
  %v29 = vld [vmem:[%s1 + $0x14] sm:$0xf]
  %v30 = vld [vmem:[%s1 + $0x18] sm:$0xf]
  %v31 = vld [vmem:[%s1 + $0x1c] sm:$0xf]
  %v32 = vld [vmem:[%s1 + $0x20] sm:$0xf]
  %v33 = vld [vmem:[%s1 + $0x24] sm:$0xf]
  %v34 = vld [vmem:[%s1 + $0x28] sm:$0xf]
  %v35 = vld [vmem:[%s1 + $0x2c] sm:$0xf]
  %v36 = vld [vmem:[%s1 + $0x30] sm:$0xf]
  %v37 = vld [vmem:[%s1 + $0x34] sm:$0xf]
  %v38 = vld [vmem:[%s1 + $0x38] sm:$0xf]
  %v39 = vld [vmem:[%s1 + $0x3c] sm:$0xf]
  %v56 = vunpack.c.l.b16 %v24
  %v57 = vunpack.c.l.b16 %v25
  %v58 = vunpack.c.l.b16 %v26
  %v59 = vunpack.c.l.b16 %v27
  %v60 = vunpack.c.l.b16 %v28
  %v61 = vunpack.c.l.b16 %v29
  %v62 = vunpack.c.l.b16 %v30
  %v63 = vunpack.c.l.b16 %v31
  %v64 = vunpack.c.l.b16 %v32
  %v65 = vunpack.c.l.b16 %v33
  %v66 = vunpack.c.l.b16 %v34
  %v67 = vunpack.c.l.b16 %v35
  %v68 = vunpack.c.l.b16 %v36
  %v69 = vunpack.c.l.b16 %v37
  %v70 = vunpack.c.l.b16 %v38
  %v71 = vunpack.c.l.b16 %v39
  %v72 = vpack.c.b16 %v57, %v56
  %v73 = vpack.c.b16 %v59, %v58
  %v74 = vpack.c.b16 %v61, %v60
  %v75 = vpack.c.b16 %v63, %v62
  %v76 = vpack.c.b16 %v65, %v64
  %v77 = vpack.c.b16 %v67, %v66
  %v78 = vpack.c.b16 %v69, %v68
  %v79 = vpack.c.b16 %v71, %v70
  %88 = vmatprep.subr.bf16.mxu0 0
  %89 = vmatpush1.bf16.msra.mxu0 %v72
  %90 = vmatprep.subr.bf16.mxu0 0
  %91 = vmatpush1.bf16.msra.mxu0 %v73
  %92 = vmatprep.subr.bf16.mxu0 0
  %93 = vmatpush1.bf16.msra.mxu0 %v74
  %94 = vmatprep.subr.bf16.mxu0 0
  %95 = vmatpush1.bf16.msra.mxu0 %v75
  %96 = vmatprep.subr.bf16.mxu0 0
  %97 = vmatpush1.bf16.msra.mxu0 %v76
  %98 = vmatprep.subr.bf16.mxu0 0
  %99 = vmatpush1.bf16.msra.mxu0 %v77
  %100 = vmatprep.subr.bf16.mxu0 0
  %101 = vmatpush1.bf16.msra.mxu0 %v78
  %102 = vmatprep.subr.bf16.mxu0 0
  %103 = vmatpush1.bf16.msra.mxu0 %v79
  %104 = vmatprep.subr.bf16.mxu0 0
  %105 = vmatpush1.bf16.msra.mxu0 0
  %106 = vmatprep.subr.bf16.mxu0 0
  %107 = vmatpush1.bf16.msra.mxu0 0
  %108 = vmatprep.subr.bf16.mxu0 0
  %109 = vmatpush1.bf16.msra.mxu0 0
  %110 = vmatprep.subr.bf16.mxu0 0
  %111 = vmatpush1.bf16.msra.mxu0 0
  %112 = vmatprep.subr.bf16.mxu0 0
  %113 = vmatpush1.bf16.msra.mxu0 0
  %114 = vmatprep.subr.bf16.mxu0 0
  %115 = vmatpush1.bf16.msra.mxu0 0
  %116 = vmatprep.subr.bf16.mxu0 0
  %117 = vmatpush1.bf16.msra.mxu0 0
  %118 = vmatprep.subr.bf16.mxu0 0
  %119 = vmatpush1.bf16.msra.mxu0 0
  %120 = vmatprep.mubr.bf16.mxu0 0
  %121 = vmatmul.mubr.bf16.gmra.mrb[0].mxu0 %v23
  %v122 = vpop.f32.mrb[0].mxu0
  %v123 = vadd.f32 0.0, %v122
  %v124 = vpop.f32.mrb[0].mxu0
  %v125 = vpop.f32.mrb[0].mxu0
  %v126 = vpop.f32.mrb[0].mxu0
  %127 = vdwg.mxu0
  %v128 = vadd.f32 %v21, %v123
  %vm129 = vcmask 517120
  %130 = vst.msk [vmem:[#allocation2] sm:$0x3] %vm129, %v128
  // Predicated region
  $region18: #{run.8} parent=0 // pred_check
    %p131 = pneg %p15
  $region19: #{run.8} parent=0 // pred_check_branch
    %133 = sbr.rel (%p131) target = $region21
  $region20: #{run.8} parent=0 // pred_region
    %v134 = vld [vmem:[#allocation2] sm:$0x3]
    %v135 = vld [vmem:[%s2] sm:$0x1]
    %v137 = vlaneseq
    %v138 = vshrl.u32 %v137, 7
    %v139 = vsub.s32 0, %v138
    %v140 = vrot.slane %v135, %v139
    %v142 = vadd.f32 %v134, %v140
    %143 = vst.msk [vmem:[%s3] sm:$0x3] %vm129, %v142
  $region21: #{run.8} parent=0 // pred_fallthru
    _
  // Predicated region
  $region22: #{run.8} parent=0 // pred_check
    _
  $region23: #{run.8} parent=0 // pred_check_branch
    %145 = sbr.rel (0) target = $region25
  $region24: #{run.8} parent=0 // pred_region
    _
  $region25: #{run.8} parent=0 // pred_fallthru
    _
  // Predicated region
  $region26: #{run.8} parent=0 // pred_check
    _
  $region27: #{run.8} parent=0 // pred_check_branch
    %147 = sbr.rel (0) target = $region29
  $region28: #{run.8} parent=0 // pred_region
    _
  $region29: #{run.8} parent=0 // pred_fallthru
    _

// kernel: run.13
$region0: #{run.13}
  #allocation0 [shape = 'u32[]', space=smem, size = 0x4, offset = 0x4, fixed_abs, tag = 'smem constant byte address 0x4 - core index']
  #allocation1 [shape = 'u32[144,128]{1,0:T(1,128)}', space=vmem, size = 0x12000, scoped, tag = 'internal scratch']
  #allocation2 [shape = 'f32[1,1]{1,0:T(1,128)S(6)}', space=smem, size = 0x200, scoped, tag = 'scoped memory for run.13']
  %s0 = inlined_call_operand.<no memory space> [shape: f32[1,1], index: 0, kind: input, shape index: {}]
  %s1 = inlined_call_operand.vmem [shape: f32[2,8,32], index: 1, kind: input, shape index: {}]
  %s2 = inlined_call_operand.vmem [shape: f32[1,32], index: 2, kind: input, shape index: {}]
  %s3 = inlined_call_operand.vmem [shape: f32[1,32], index: 3, kind: input, shape index: {}]
  %s4 = inlined_call_operand.vmem [shape: bf16[32,4], index: 4, kind: input, shape index: {}]
  %s5 = inlined_call_operand.vmem [shape: f32[4,1], index: 5, kind: input, shape index: {}]
  %s6 = inlined_call_operand.hbm [shape: f32[2,4,8], index: 6, kind: output, shape index: {}]
  %s7 = sld [smem:[#allocation0]]
  $region57: #{run.13} parent=0
    _
  %s9 = ssub.s32 1, %s7
  %s10 = scalar_select 0, %s9, %s7
  %11 = sst [smem:[#allocation2]] %s0
  $region1: #{run.13} parent=0
    #allocation3 [shape = 'u8[4096]{0}', space=vmem, size = 0x1000, scoped, tag = 'output window, operand 0']
    #allocation4 [shape = 's32[2]{0}', space=sflag, size = 0x8, scoped, tag = 'scoped memory for run.13']
    %12 = vsyncpa [#allocation4], 0
    %s13 = scalar_lea.sflag [#allocation4], 1
    %14 = vsyncpa %s13, 0
    loop: start=0, step=1, limit=4
    $region2: #{run.13} parent=1 // loop_pre_header
      _
    $region3: #{run.13} parent=1 // loop_header
      %s16 = sphi 0, %s20
      %p17 = scmp.ge.s32.totalorder %s16, 4
      %s24 = sphi 0, %s24
      %s26 = sphi 0, %s24
      %s27 = sphi 0, %s26
      %s41 = sphi 0, %s27
      %s47 = sphi 0, %s49
      %s50 = sphi 0, %s47
      %s51 = sphi 0, %s50
      %s67 = sphi 0, %s51
      %s71 = sphi 0, %s71
      %s73 = sphi 0, %s71
      %s74 = sphi 0, %s73
      %s88 = sphi 0, %s74
      %s92 = sphi 0, %s92
      %s94 = sphi 0, %s92
      %s95 = sphi 0, %s94
      %s109 = sphi 0, %s95
      %s113 = sphi 0, %s113
      %s115 = sphi 0, %s113
      %s116 = sphi 0, %s115
      %s130 = sphi 0, %s116
      %s134 = sphi 0, %s134
      %s136 = sphi 0, %s134
      %s137 = sphi 0, %s136
      %s151 = sphi 0, %s137
      %s157 = sphi 0, %s159
      %s160 = sphi 0, %s157
      %s161 = sphi 0, %s160
      %s177 = sphi 0, %s161
    $region4: #{run.13} parent=1 // loop_header_branch
      %19 = sbr.rel (%p17) target = $region8
    $region5: #{run.13} parent=1 // loop_body
      %s21 = ssub.s32 %s16, 1
      %s22 = ssub.s32 %s16, 2
      %s23 = sadd.s32 %s16, 1
      %s25 = sadd.s32 %s24, 1
      %p28 = scmp.eq.s32.totalorder %s16, 1
      %p29 = scmp.ne.s32.totalorder %s24, %s26
      %p30 = scmp.eq.s32.totalorder %s16, 0
      %p31 = por %p29, %p30
      %p32 = scmp.ne.s32.totalorder %s24, %s26
      %p33 = scmp.eq.s32.totalorder %s21, 1
      %p34 = por %p32, %p33
      %p35 = scmp.ne.s32.totalorder %s26, %s27
      %p36 = scmp.eq.s32.totalorder %s21, 0
      %p37 = por %p35, %p36
      %p38 = scmp.ne.s32.totalorder %s26, %s27
      %p39 = scmp.eq.s32.totalorder %s22, 1
      %p40 = por %p38, %p39
      %p42 = scmp.ne.s32.totalorder %s27, %s41
      %p43 = scmp.eq.s32.totalorder %s22, 0
      %p44 = por %p42, %p43
      %s45 = ssub.s32 %s16, %s23
      %p46 = scmp.eq.s32.totalorder %s45, 0
      %s48 = sadd.s32 %s47, 1
      %s49 = scalar_select %p46, %s47, %s48
      %p52 = pneg %p46
      %p53 = scmp.eq.s32.totalorder %s16, 1
      %p54 = por %p52, %p53
      %p55 = scmp.ne.s32.totalorder %s47, %s50
      %p56 = scmp.eq.s32.totalorder %s16, 0
      %p57 = por %p55, %p56
      %p58 = scmp.ne.s32.totalorder %s47, %s50
      %p59 = scmp.eq.s32.totalorder %s21, 1
      %p60 = por %p58, %p59
      %p61 = scmp.ne.s32.totalorder %s50, %s51
      %p62 = scmp.eq.s32.totalorder %s21, 0
      %p63 = por %p61, %p62
      %p64 = scmp.ne.s32.totalorder %s50, %s51
      %p65 = scmp.eq.s32.totalorder %s22, 1
      %p66 = por %p64, %p65
      %p68 = scmp.ne.s32.totalorder %s51, %s67
      %p69 = scmp.eq.s32.totalorder %s22, 0
      %p70 = por %p68, %p69
      %s72 = sadd.s32 %s71, 1
      %p75 = scmp.eq.s32.totalorder %s16, 1
      %p76 = scmp.ne.s32.totalorder %s71, %s73
      %p77 = scmp.eq.s32.totalorder %s16, 0
      %p78 = por %p76, %p77
      %p79 = scmp.ne.s32.totalorder %s71, %s73
      %p80 = scmp.eq.s32.totalorder %s21, 1
      %p81 = por %p79, %p80
      %p82 = scmp.ne.s32.totalorder %s73, %s74
      %p83 = scmp.eq.s32.totalorder %s21, 0
      %p84 = por %p82, %p83
      %p85 = scmp.ne.s32.totalorder %s73, %s74
      %p86 = scmp.eq.s32.totalorder %s22, 1
      %p87 = por %p85, %p86
      %p89 = scmp.ne.s32.totalorder %s74, %s88
      %p90 = scmp.eq.s32.totalorder %s22, 0
      %p91 = por %p89, %p90
      %s93 = sadd.s32 %s92, 1
      %p96 = scmp.eq.s32.totalorder %s16, 1
      %p97 = scmp.ne.s32.totalorder %s92, %s94
      %p98 = scmp.eq.s32.totalorder %s16, 0
      %p99 = por %p97, %p98
      %p100 = scmp.ne.s32.totalorder %s92, %s94
      %p101 = scmp.eq.s32.totalorder %s21, 1
      %p102 = por %p100, %p101
      %p103 = scmp.ne.s32.totalorder %s94, %s95
      %p104 = scmp.eq.s32.totalorder %s21, 0
      %p105 = por %p103, %p104
      %p106 = scmp.ne.s32.totalorder %s94, %s95
      %p107 = scmp.eq.s32.totalorder %s22, 1
      %p108 = por %p106, %p107
      %p110 = scmp.ne.s32.totalorder %s95, %s109
      %p111 = scmp.eq.s32.totalorder %s22, 0
      %p112 = por %p110, %p111
      %s114 = sadd.s32 %s113, 1
      %p117 = scmp.eq.s32.totalorder %s16, 1
      %p118 = scmp.ne.s32.totalorder %s113, %s115
      %p119 = scmp.eq.s32.totalorder %s16, 0
      %p120 = por %p118, %p119
      %p121 = scmp.ne.s32.totalorder %s113, %s115
      %p122 = scmp.eq.s32.totalorder %s21, 1
      %p123 = por %p121, %p122
      %p124 = scmp.ne.s32.totalorder %s115, %s116
      %p125 = scmp.eq.s32.totalorder %s21, 0
      %p126 = por %p124, %p125
      %p127 = scmp.ne.s32.totalorder %s115, %s116
      %p128 = scmp.eq.s32.totalorder %s22, 1
      %p129 = por %p127, %p128
      %p131 = scmp.ne.s32.totalorder %s116, %s130
      %p132 = scmp.eq.s32.totalorder %s22, 0
      %p133 = por %p131, %p132
      %s135 = sadd.s32 %s134, 1
      %p138 = scmp.eq.s32.totalorder %s16, 1
      %p139 = scmp.ne.s32.totalorder %s134, %s136
      %p140 = scmp.eq.s32.totalorder %s16, 0
      %p141 = por %p139, %p140
      %p142 = scmp.ne.s32.totalorder %s134, %s136
      %p143 = scmp.eq.s32.totalorder %s21, 1
      %p144 = por %p142, %p143
      %p145 = scmp.ne.s32.totalorder %s136, %s137
      %p146 = scmp.eq.s32.totalorder %s21, 0
      %p147 = por %p145, %p146
      %p148 = scmp.ne.s32.totalorder %s136, %s137
      %p149 = scmp.eq.s32.totalorder %s22, 1
      %p150 = por %p148, %p149
      %p152 = scmp.ne.s32.totalorder %s137, %s151
      %p153 = scmp.eq.s32.totalorder %s22, 0
      %p154 = por %p152, %p153
      %s155 = ssub.s32 %s16, %s23
      %p156 = scmp.eq.s32.totalorder %s155, 0
      %s158 = sadd.s32 %s157, 1
      %s159 = scalar_select %p156, %s157, %s158
      %p162 = pneg %p156
      %p163 = scmp.eq.s32.totalorder %s16, 1
      %p164 = por %p162, %p163
      %p165 = scmp.ne.s32.totalorder %s157, %s160
      %p166 = scmp.eq.s32.totalorder %s16, 0
      %p167 = por %p165, %p166
      %p168 = scmp.ne.s32.totalorder %s157, %s160
      %p169 = scmp.eq.s32.totalorder %s21, 1
      %p170 = por %p168, %p169
      %p171 = scmp.ne.s32.totalorder %s160, %s161
      %p172 = scmp.eq.s32.totalorder %s21, 0
      %p173 = por %p171, %p172
      %p174 = scmp.ne.s32.totalorder %s160, %s161
      %p175 = scmp.eq.s32.totalorder %s22, 1
      %p176 = por %p174, %p175
      %p178 = scmp.ne.s32.totalorder %s161, %s177
      %p179 = scmp.eq.s32.totalorder %s22, 0
      %p180 = por %p178, %p179
      %p181 = scmp.le.s32.totalorder 1, %s16
      %p182 = scmp.lt.s32.totalorder %s16, 3
      %p183 = pnand %p181, %p182
      %p184 = pneg %p183
      // Predicated region
      $region9: #{run.13} parent=5 // pred_check
        _
      $region10: #{run.13} parent=5 // pred_check_branch
        %186 = sbr.rel (%p183) target = $region12
      $region11: #{run.13} parent=5 // pred_region
        %s187 = ssub.s32 %s16, 1
        // Predicated region
        $region13: #{run.13} parent=11 // pred_check
          %p188 = pneg %p37
        $region14: #{run.13} parent=11 // pred_check_branch
          %190 = sbr.rel (%p188) target = $region16
        $region15: #{run.13} parent=11 // pred_region
          _
        $region16: #{run.13} parent=11 // pred_fallthru
          _
        // Predicated region
        $region17: #{run.13} parent=11 // pred_check
          %p191 = pneg %p84
        $region18: #{run.13} parent=11 // pred_check_branch
          %193 = sbr.rel (%p191) target = $region20
        $region19: #{run.13} parent=11 // pred_region
          _
        $region20: #{run.13} parent=11 // pred_fallthru
          _
        // Predicated region
        $region21: #{run.13} parent=11 // pred_check
          %p194 = pneg %p105
        $region22: #{run.13} parent=11 // pred_check_branch
          %196 = sbr.rel (%p194) target = $region24
        $region23: #{run.13} parent=11 // pred_region
          _
        $region24: #{run.13} parent=11 // pred_fallthru
          _
        // Predicated region
        $region25: #{run.13} parent=11 // pred_check
          %p197 = pneg %p126
        $region26: #{run.13} parent=11 // pred_check_branch
          %199 = sbr.rel (%p197) target = $region28
        $region27: #{run.13} parent=11 // pred_region
          _
        $region28: #{run.13} parent=11 // pred_fallthru
          _
        // Predicated region
        $region29: #{run.13} parent=11 // pred_check
          %p200 = pneg %p147
        $region30: #{run.13} parent=11 // pred_check_branch
          %202 = sbr.rel (%p200) target = $region32
        $region31: #{run.13} parent=11 // pred_region
          _
        $region32: #{run.13} parent=11 // pred_fallthru
          _
      $region12: #{run.13} parent=5 // pred_fallthru
        _
      %p203 = scmp.lt.s32.totalorder %s16, 2
      // Predicated region
      $region33: #{run.13} parent=5 // pred_check
        %p204 = pneg %p203
      $region34: #{run.13} parent=5 // pred_check_branch
        %206 = sbr.rel (%p204) target = $region36
      $region35: #{run.13} parent=5 // pred_region
        // Predicated region
        $region37: #{run.13} parent=35 // pred_check
          %p207 = pneg %p57
        $region38: #{run.13} parent=35 // pred_check_branch
          %209 = sbr.rel (%p207) target = $region40
        $region39: #{run.13} parent=35 // pred_region
          %p210 = scmp.lt.s32.totalorder %s16, 1
          %s211 = scalar_select %p210, %s16, 1
          %s212 = smul.addr %s211, 8
          %s213 = scalar_lea.vmem %s1, %s212
        $region40: #{run.13} parent=35 // pred_fallthru
          _
      $region36: #{run.13} parent=5 // pred_fallthru
        _
      %p214 = scmp.le.s32.totalorder 1, %s16
      %p215 = scmp.lt.s32.totalorder %s16, 3
      %p216 = pnand %p214, %p215
      %p217 = pneg %p216
      // Predicated region
      $region41: #{run.13} parent=5 // pred_check
        _
      $region42: #{run.13} parent=5 // pred_check_branch
        %219 = sbr.rel (%p216) target = $region44
      $region43: #{run.13} parent=5 // pred_region
        %s220 = ssub.s32 %s16, 1
        %p221 = pneg %p37
        %p222 = pneg %p34
        %p223 = scmp.lt.s32.totalorder %s21, 1
        %s224 = scalar_select %p223, %s21, 1
        %s225 = smul.addr %s224, 8
        %s226 = scalar_lea.vmem %s1, %s225
        %p227 = pneg %p63
        %p228 = pneg %p60
        %p229 = pneg %p84
        %p230 = pneg %p81
        %p231 = pneg %p105
        %p232 = pneg %p102
        %p233 = pneg %p126
        %p234 = pneg %p123
        %p235 = pneg %p147
        %p236 = pneg %p144
        %p237 = pneg %p173
        %p238 = pneg %p170
        %s239 = sand.u32 %s160, 1
        %s240 = scalar_lea.sflag [#allocation4], %s239
        %s241 = sand.u32 %s160, 1
        %s242 = smul.addr %s241, 4
        %s243 = scalar_lea.vmem [#allocation3], %s242
        %p244 = scmp.lt.s32.totalorder %s21, 1
        %s245 = scalar_select %p244, %s21, 1
        %s246 = smul.addr %s245, 8
        %s247 = scalar_lea.vmem %s1, %s246
        %v249 = vld [vmem:[%s247] sm:$0xff]
        %v250 = vld [vmem:[%s2] sm:$0x1]
        %v251 = vld [vmem:[%s3] sm:$0x1]
        %vm252 = vcmask 261120
        %v253 = vsel %vm252, %v249, 0.0
        %254 = vadd.xlane.f32.xlu0 %v253
        %v255 = vpop.xlane.xlu0 %254
        %v256 = vrcp.pop 32.0
        %v257 = vmul.f32 %v255, %v256
        %v258 = vsub.f32 %v249, %v257
        %v259 = vmul.f32 %v258, %v258
        %v260 = vsel %vm252, %v259, 0.0
        %261 = vadd.xlane.f32.xlu0 %v260
        %v262 = vpop.xlane.xlu0 %261
        %v263 = vmul.f32 %v262, %v256
        %v264 = vadd.f32 %v263, 1e-05
        %v265 = vrsqrt.pop %v264
        %v266 = vmul.f32 %v258, %v265
        %v268 = vlaneseq
        %v269 = vshrl.u32 %v268, 7
        %v270 = vsub.s32 0, %v269
        %v271 = vrot.slane %v250, %v270
        %v273 = vmul.f32 %v266, %v271
        %v275 = vlaneseq
        %v276 = vshrl.u32 %v275, 7
        %v277 = vsub.s32 0, %v276
        %v278 = vrot.slane %v251, %v277
        %v280 = vadd.f32 %v273, %v278
        %v281 = vpack.c.bf16 %v280, %v280
        %v282 = vld [vmem:[%s4] sm:$0xf]
        %v283 = vld [vmem:[%s4 + $0x4] sm:$0xf]
        %v284 = vld [vmem:[%s4 + $0x8] sm:$0xf]
        %v285 = vld [vmem:[%s4 + $0xc] sm:$0xf]
        %s286 = sld [smem:[#allocation2]]
        %v287 = vld [vmem:[%s5] sm:$0xf]
        %289 = vset.pattern.permute.xlu0 0
        %290 = vperm.xlu0 %289, %v287
        %v291 = vpop.permute.xlu0 %290
        %v297 = vunpack.c.l.b16 %v282
        %v298 = vunpack.c.l.b16 %v283
        %v299 = vunpack.c.l.b16 %v284
        %v300 = vunpack.c.l.b16 %v285
        %v301 = vpack.c.b16 %v298, %v297
        %v302 = vpack.c.b16 %v300, %v299
        %305 = vxpose.xlu0.c.b16.start [1/8] %v301, 128
        %306 = vxpose.xlu0.c.b16.cont [2/8] %v302, 128
        %307 = vxpose.xlu0.c.b16.cont [3/8] 0, 128
        %308 = vxpose.xlu0.c.b16.cont [4/8] 0, 128
        %309 = vxpose.xlu0.c.b16.cont [5/8] 0, 128
        %310 = vxpose.xlu0.c.b16.cont [6/8] 0, 128
        %311 = vxpose.xlu0.c.b16.cont [7/8] 0, 128
        %312 = vxpose.xlu0.c.b16.end [8/8] 0, 128
        %v313 = vpop.trf.xlu0
        %v314 = vpop.trf.xlu0
        %v315 = vpop.trf.xlu0
        %v316 = vpop.trf.xlu0
        %v317 = vpop.trf.xlu0
        %v318 = vpop.trf.xlu0
        %v319 = vpop.trf.xlu0
        %v320 = vpop.trf.xlu0
        %v322 = vsel %vm252, %v313, 0
        %v325 = vsel %vm252, %v281, 0
        %327 = vmatprep.subr.bf16.mxu0 0
        %328 = vmatpush1.bf16.xpose.msra.mxu0 %v325
        %329 = vmatprep.subr.bf16.mxu0 0
        %330 = vmatpush1.bf16.xpose.msra.mxu0 0
        %331 = vmatprep.subr.bf16.mxu0 0
        %332 = vmatpush1.bf16.xpose.msra.mxu0 0
        %333 = vmatprep.subr.bf16.mxu0 0
        %334 = vmatpush1.bf16.xpose.msra.mxu0 0
        %335 = vmatprep.subr.bf16.mxu0 0
        %336 = vmatpush1.bf16.xpose.msra.mxu0 0
        %337 = vmatprep.subr.bf16.mxu0 0
        %338 = vmatpush1.bf16.xpose.msra.mxu0 0
        %339 = vmatprep.subr.bf16.mxu0 0
        %340 = vmatpush1.bf16.xpose.msra.mxu0 0
        %341 = vmatprep.subr.bf16.mxu0 0
        %342 = vmatpush1.bf16.xpose.msra.mxu0 0
        %343 = vmatprep.subr.bf16.mxu0 0
        %344 = vmatpush1.bf16.xpose.msra.mxu0 0
        %345 = vmatprep.subr.bf16.mxu0 0
        %346 = vmatpush1.bf16.xpose.msra.mxu0 0
        %347 = vmatprep.subr.bf16.mxu0 0
        %348 = vmatpush1.bf16.xpose.msra.mxu0 0
        %349 = vmatprep.subr.bf16.mxu0 0
        %350 = vmatpush1.bf16.xpose.msra.mxu0 0
        %351 = vmatprep.subr.bf16.mxu0 0
        %352 = vmatpush1.bf16.xpose.msra.mxu0 0
        %353 = vmatprep.subr.bf16.mxu0 0
        %354 = vmatpush1.bf16.xpose.msra.mxu0 0
        %355 = vmatprep.subr.bf16.mxu0 0
        %356 = vmatpush1.bf16.xpose.msra.mxu0 0
        %357 = vmatprep.subr.bf16.mxu0 0
        %358 = vmatpush1.bf16.xpose.msra.mxu0 0
        %359 = vmatprep.mubr.bf16.mxu0 0
        %360 = vmatmul.mubr.bf16.gmra.mrb[0].mxu0 %v322
        %v361 = vpop.f32.mrb[0].mxu0
        %v362 = vadd.f32 %v291, %v361
        %v363 = vpop.f32.mrb[0].mxu0
        %v364 = vpop.f32.mrb[0].mxu0
        %v365 = vpop.f32.mrb[0].mxu0
        %366 = vdwg.mxu0
        %v367 = vstv %s286
        %v368 = vmul.f32 %v367, %v362
        %vm369 = vcmask 60416
        %370 = vst.msk [vmem:[%s243] sm:$0xf] %vm369, %v368
        %s371 = sand.u32 %s160, 1
        %s372 = scalar_lea.sflag [#allocation4], %s371
        %s373 = sand.u32 %s160, 1
        %s374 = smul.addr %s373, 4
        %s375 = scalar_lea.vmem [#allocation3], %s374
        // Predicated region
        $region45: #{run.13} parent=43 // pred_check
          %p376 = pneg %p170
        $region46: #{run.13} parent=43 // pred_check_branch
          %378 = sbr.rel (%p376) target = $region48
        $region47: #{run.13} parent=43 // pred_region
          %s380 = ssub.s32 64, 64
          %381 = vsyncadd %s372, %s380
          %s382 = smul.addr %s21, 64
          %s383 = scalar_lea.hbm %s6, %s382
          %s385 = sshll.u32 %s375, 4
          %s386 = int_to_ptr.vmem [resolvable:$true] %s385
          %388 = dma.vmem_to_hbm [thread:$0]  %s386, 64, %s383, %s372
        $region48: #{run.13} parent=43 // pred_fallthru
          _
      $region44: #{run.13} parent=5 // pred_fallthru
        _
      %p389 = scmp.le.s32.totalorder 2, %s16
      // Predicated region
      $region49: #{run.13} parent=5 // pred_check
        %p390 = pneg %p389
      $region50: #{run.13} parent=5 // pred_check_branch
        %392 = sbr.rel (%p390) target = $region52
      $region51: #{run.13} parent=5 // pred_region
        %s393 = ssub.s32 %s16, 2
        // Predicated region
        $region53: #{run.13} parent=51 // pred_check
          %p394 = pneg %p176
        $region54: #{run.13} parent=51 // pred_check_branch
          %396 = sbr.rel (%p394) target = $region56
        $region55: #{run.13} parent=51 // pred_region
          %s397 = sand.u32 %s161, 1
          %s398 = scalar_lea.sflag [#allocation4], %s397
          %s399 = sand.u32 %s161, 1
          %s400 = smul.addr %s399, 4
          %s401 = scalar_lea.vmem [#allocation3], %s400
          %402 = dma.done %s398, 64
        $region56: #{run.13} parent=51 // pred_fallthru
          _
      $region52: #{run.13} parent=5 // pred_fallthru
        _
    $region6: #{run.13} parent=1 // loop_footer
      %s20 = sadd.s32 1, %s16
    $region7: #{run.13} parent=1 // loop_footer_branch
      %15 = sbr.rel target = $region3
    $region8: #{run.13} parent=1 // loop_exit
      _
    %403 = vsyncpa [#allocation4], 1
    %s404 = scalar_lea.sflag [#allocation4], 1
    %405 = vsyncpa %s404, 1

// kernel: run.9
$region0: #{run.9}
  #allocation0 [shape = 'u32[]', space=smem, size = 0x4, offset = 0x4, fixed_abs, tag = 'smem constant byte address 0x4 - core index']
  #allocation1 [shape = 'u32[144,128]{1,0:T(1,128)}', space=vmem, size = 0x12000, scoped, tag = 'internal scratch']
  %s0 = inlined_call_operand.vmem [shape: f32[2,8,32], index: 0, kind: input, shape index: {}]
  %s1 = inlined_call_operand.vmem [shape: f32[2,1,32], index: 1, kind: input, shape index: {}]
  %s2 = inlined_call_operand.vmem [shape: f32[1,32], index: 2, kind: input, shape index: {}, may-alias: {2,9}]
  %s3 = inlined_call_operand.vmem [shape: f32[1,32], index: 3, kind: input, shape index: {}, may-alias: {3,8,10,14}]
  %s4 = inlined_call_operand.vmem [shape: bf16[32,32], index: 4, kind: input, shape index: {}]
  %s5 = inlined_call_operand.vmem [shape: bf16[32,32], index: 5, kind: input, shape index: {}]
  %s6 = inlined_call_operand.vmem [shape: bf16[32,32], index: 6, kind: input, shape index: {}]
  %s7 = inlined_call_operand.vmem [shape: bf16[32,32], index: 7, kind: input, shape index: {}]
  %s8 = inlined_call_operand.vmem [shape: f32[1,32], index: 8, kind: input, shape index: {}, may-alias: {3,8,10,14}]
  %s9 = inlined_call_operand.vmem [shape: f32[1,32], index: 9, kind: input, shape index: {}, may-alias: {2,9}]
  %s10 = inlined_call_operand.vmem [shape: f32[1,32], index: 10, kind: input, shape index: {}, may-alias: {3,8,10,14}]
  %s11 = inlined_call_operand.vmem [shape: bf16[32,128], index: 11, kind: input, shape index: {}]
  %s12 = inlined_call_operand.vmem [shape: f32[1,128], index: 12, kind: input, shape index: {}]
  %s13 = inlined_call_operand.vmem [shape: bf16[128,32], index: 13, kind: input, shape index: {}]
  %s14 = inlined_call_operand.vmem [shape: f32[1,32], index: 14, kind: input, shape index: {}, may-alias: {3,8,10,14}]
  %s15 = inlined_call_operand.vmem [shape: f32[2,8,32], index: 15, kind: output, shape index: {}]
  %s16 = sld [smem:[#allocation0]]
  $region93: #{run.9} parent=0
    _
  %s18 = ssub.s32 1, %s16
  %s19 = scalar_select 0, %s18, %s16
  loop: start=0, step=1, limit=4
  $region2: #{run.9} parent=0 // loop_pre_header
    _
  $region3: #{run.9} parent=0 // loop_header
    %s21 = sphi 0, %s25
    %p22 = scmp.ge.s32.totalorder %s21, 4
    %s31 = sphi 0, %s33
    %s34 = sphi 0, %s31
    %s35 = sphi 0, %s34
    %s51 = sphi 0, %s35
    %s57 = sphi 0, %s59
    %s60 = sphi 0, %s57
    %s61 = sphi 0, %s60
    %s77 = sphi 0, %s61
    %s81 = sphi 0, %s81
    %s83 = sphi 0, %s81
    %s84 = sphi 0, %s83
    %s98 = sphi 0, %s84
    %s102 = sphi 0, %s102
    %s104 = sphi 0, %s102
    %s105 = sphi 0, %s104
    %s119 = sphi 0, %s105
    %s123 = sphi 0, %s123
    %s125 = sphi 0, %s123
    %s126 = sphi 0, %s125
    %s140 = sphi 0, %s126
    %s144 = sphi 0, %s144
    %s146 = sphi 0, %s144
    %s147 = sphi 0, %s146
    %s161 = sphi 0, %s147
    %s165 = sphi 0, %s165
    %s167 = sphi 0, %s165
    %s168 = sphi 0, %s167
    %s182 = sphi 0, %s168
    %s186 = sphi 0, %s186
    %s188 = sphi 0, %s186
    %s189 = sphi 0, %s188
    %s203 = sphi 0, %s189
    %s207 = sphi 0, %s207
    %s209 = sphi 0, %s207
    %s210 = sphi 0, %s209
    %s224 = sphi 0, %s210
    %s228 = sphi 0, %s228
    %s230 = sphi 0, %s228
    %s231 = sphi 0, %s230
    %s245 = sphi 0, %s231
    %s249 = sphi 0, %s249
    %s251 = sphi 0, %s249
    %s252 = sphi 0, %s251
    %s266 = sphi 0, %s252
    %s270 = sphi 0, %s270
    %s272 = sphi 0, %s270
    %s273 = sphi 0, %s272
    %s287 = sphi 0, %s273
    %s291 = sphi 0, %s291
    %s293 = sphi 0, %s291
    %s294 = sphi 0, %s293
    %s308 = sphi 0, %s294
    %s312 = sphi 0, %s312
    %s314 = sphi 0, %s312
    %s315 = sphi 0, %s314
    %s329 = sphi 0, %s315
    %s333 = sphi 0, %s333
    %s335 = sphi 0, %s333
    %s336 = sphi 0, %s335
    %s350 = sphi 0, %s336
    %s356 = sphi 0, %s358
    %s359 = sphi 0, %s356
    %s360 = sphi 0, %s359
    %s376 = sphi 0, %s360
  $region4: #{run.9} parent=0 // loop_header_branch
    %24 = sbr.rel (%p22) target = $region8
  $region5: #{run.9} parent=0 // loop_body
    %s26 = ssub.s32 %s21, 1
    %s27 = ssub.s32 %s21, 2
    %s28 = sadd.s32 %s21, 1
    %s29 = ssub.s32 %s21, %s28
    %p30 = scmp.eq.s32.totalorder %s29, 0
    %s32 = sadd.s32 %s31, 1
    %s33 = scalar_select %p30, %s31, %s32
    %p36 = pneg %p30
    %p37 = scmp.eq.s32.totalorder %s21, 1
    %p38 = por %p36, %p37
    %p39 = scmp.ne.s32.totalorder %s31, %s34
    %p40 = scmp.eq.s32.totalorder %s21, 0
    %p41 = por %p39, %p40
    %p42 = scmp.ne.s32.totalorder %s31, %s34
    %p43 = scmp.eq.s32.totalorder %s26, 1
    %p44 = por %p42, %p43
    %p45 = scmp.ne.s32.totalorder %s34, %s35
    %p46 = scmp.eq.s32.totalorder %s26, 0
    %p47 = por %p45, %p46
    %p48 = scmp.ne.s32.totalorder %s34, %s35
    %p49 = scmp.eq.s32.totalorder %s27, 1
    %p50 = por %p48, %p49
    %p52 = scmp.ne.s32.totalorder %s35, %s51
    %p53 = scmp.eq.s32.totalorder %s27, 0
    %p54 = por %p52, %p53
    %s55 = ssub.s32 %s21, %s28
    %p56 = scmp.eq.s32.totalorder %s55, 0
    %s58 = sadd.s32 %s57, 1
    %s59 = scalar_select %p56, %s57, %s58
    %p62 = pneg %p56
    %p63 = scmp.eq.s32.totalorder %s21, 1
    %p64 = por %p62, %p63
    %p65 = scmp.ne.s32.totalorder %s57, %s60
    %p66 = scmp.eq.s32.totalorder %s21, 0
    %p67 = por %p65, %p66
    %p68 = scmp.ne.s32.totalorder %s57, %s60
    %p69 = scmp.eq.s32.totalorder %s26, 1
    %p70 = por %p68, %p69
    %p71 = scmp.ne.s32.totalorder %s60, %s61
    %p72 = scmp.eq.s32.totalorder %s26, 0
    %p73 = por %p71, %p72
    %p74 = scmp.ne.s32.totalorder %s60, %s61
    %p75 = scmp.eq.s32.totalorder %s27, 1
    %p76 = por %p74, %p75
    %p78 = scmp.ne.s32.totalorder %s61, %s77
    %p79 = scmp.eq.s32.totalorder %s27, 0
    %p80 = por %p78, %p79
    %s82 = sadd.s32 %s81, 1
    %p85 = scmp.eq.s32.totalorder %s21, 1
    %p86 = scmp.ne.s32.totalorder %s81, %s83
    %p87 = scmp.eq.s32.totalorder %s21, 0
    %p88 = por %p86, %p87
    %p89 = scmp.ne.s32.totalorder %s81, %s83
    %p90 = scmp.eq.s32.totalorder %s26, 1
    %p91 = por %p89, %p90
    %p92 = scmp.ne.s32.totalorder %s83, %s84
    %p93 = scmp.eq.s32.totalorder %s26, 0
    %p94 = por %p92, %p93
    %p95 = scmp.ne.s32.totalorder %s83, %s84
    %p96 = scmp.eq.s32.totalorder %s27, 1
    %p97 = por %p95, %p96
    %p99 = scmp.ne.s32.totalorder %s84, %s98
    %p100 = scmp.eq.s32.totalorder %s27, 0
    %p101 = por %p99, %p100
    %s103 = sadd.s32 %s102, 1
    %p106 = scmp.eq.s32.totalorder %s21, 1
    %p107 = scmp.ne.s32.totalorder %s102, %s104
    %p108 = scmp.eq.s32.totalorder %s21, 0
    %p109 = por %p107, %p108
    %p110 = scmp.ne.s32.totalorder %s102, %s104
    %p111 = scmp.eq.s32.totalorder %s26, 1
    %p112 = por %p110, %p111
    %p113 = scmp.ne.s32.totalorder %s104, %s105
    %p114 = scmp.eq.s32.totalorder %s26, 0
    %p115 = por %p113, %p114
    %p116 = scmp.ne.s32.totalorder %s104, %s105
    %p117 = scmp.eq.s32.totalorder %s27, 1
    %p118 = por %p116, %p117
    %p120 = scmp.ne.s32.totalorder %s105, %s119
    %p121 = scmp.eq.s32.totalorder %s27, 0
    %p122 = por %p120, %p121
    %s124 = sadd.s32 %s123, 1
    %p127 = scmp.eq.s32.totalorder %s21, 1
    %p128 = scmp.ne.s32.totalorder %s123, %s125
    %p129 = scmp.eq.s32.totalorder %s21, 0
    %p130 = por %p128, %p129
    %p131 = scmp.ne.s32.totalorder %s123, %s125
    %p132 = scmp.eq.s32.totalorder %s26, 1
    %p133 = por %p131, %p132
    %p134 = scmp.ne.s32.totalorder %s125, %s126
    %p135 = scmp.eq.s32.totalorder %s26, 0
    %p136 = por %p134, %p135
    %p137 = scmp.ne.s32.totalorder %s125, %s126
    %p138 = scmp.eq.s32.totalorder %s27, 1
    %p139 = por %p137, %p138
    %p141 = scmp.ne.s32.totalorder %s126, %s140
    %p142 = scmp.eq.s32.totalorder %s27, 0
    %p143 = por %p141, %p142
    %s145 = sadd.s32 %s144, 1
    %p148 = scmp.eq.s32.totalorder %s21, 1
    %p149 = scmp.ne.s32.totalorder %s144, %s146
    %p150 = scmp.eq.s32.totalorder %s21, 0
    %p151 = por %p149, %p150
    %p152 = scmp.ne.s32.totalorder %s144, %s146
    %p153 = scmp.eq.s32.totalorder %s26, 1
    %p154 = por %p152, %p153
    %p155 = scmp.ne.s32.totalorder %s146, %s147
    %p156 = scmp.eq.s32.totalorder %s26, 0
    %p157 = por %p155, %p156
    %p158 = scmp.ne.s32.totalorder %s146, %s147
    %p159 = scmp.eq.s32.totalorder %s27, 1
    %p160 = por %p158, %p159
    %p162 = scmp.ne.s32.totalorder %s147, %s161
    %p163 = scmp.eq.s32.totalorder %s27, 0
    %p164 = por %p162, %p163
    %s166 = sadd.s32 %s165, 1
    %p169 = scmp.eq.s32.totalorder %s21, 1
    %p170 = scmp.ne.s32.totalorder %s165, %s167
    %p171 = scmp.eq.s32.totalorder %s21, 0
    %p172 = por %p170, %p171
    %p173 = scmp.ne.s32.totalorder %s165, %s167
    %p174 = scmp.eq.s32.totalorder %s26, 1
    %p175 = por %p173, %p174
    %p176 = scmp.ne.s32.totalorder %s167, %s168
    %p177 = scmp.eq.s32.totalorder %s26, 0
    %p178 = por %p176, %p177
    %p179 = scmp.ne.s32.totalorder %s167, %s168
    %p180 = scmp.eq.s32.totalorder %s27, 1
    %p181 = por %p179, %p180
    %p183 = scmp.ne.s32.totalorder %s168, %s182
    %p184 = scmp.eq.s32.totalorder %s27, 0
    %p185 = por %p183, %p184
    %s187 = sadd.s32 %s186, 1
    %p190 = scmp.eq.s32.totalorder %s21, 1
    %p191 = scmp.ne.s32.totalorder %s186, %s188
    %p192 = scmp.eq.s32.totalorder %s21, 0
    %p193 = por %p191, %p192
    %p194 = scmp.ne.s32.totalorder %s186, %s188
    %p195 = scmp.eq.s32.totalorder %s26, 1
    %p196 = por %p194, %p195
    %p197 = scmp.ne.s32.totalorder %s188, %s189
    %p198 = scmp.eq.s32.totalorder %s26, 0
    %p199 = por %p197, %p198
    %p200 = scmp.ne.s32.totalorder %s188, %s189
    %p201 = scmp.eq.s32.totalorder %s27, 1
    %p202 = por %p200, %p201
    %p204 = scmp.ne.s32.totalorder %s189, %s203
    %p205 = scmp.eq.s32.totalorder %s27, 0
    %p206 = por %p204, %p205
    %s208 = sadd.s32 %s207, 1
    %p211 = scmp.eq.s32.totalorder %s21, 1
    %p212 = scmp.ne.s32.totalorder %s207, %s209
    %p213 = scmp.eq.s32.totalorder %s21, 0
    %p214 = por %p212, %p213
    %p215 = scmp.ne.s32.totalorder %s207, %s209
    %p216 = scmp.eq.s32.totalorder %s26, 1
    %p217 = por %p215, %p216
    %p218 = scmp.ne.s32.totalorder %s209, %s210
    %p219 = scmp.eq.s32.totalorder %s26, 0
    %p220 = por %p218, %p219
    %p221 = scmp.ne.s32.totalorder %s209, %s210
    %p222 = scmp.eq.s32.totalorder %s27, 1
    %p223 = por %p221, %p222
    %p225 = scmp.ne.s32.totalorder %s210, %s224
    %p226 = scmp.eq.s32.totalorder %s27, 0
    %p227 = por %p225, %p226
    %s229 = sadd.s32 %s228, 1
    %p232 = scmp.eq.s32.totalorder %s21, 1
    %p233 = scmp.ne.s32.totalorder %s228, %s230
    %p234 = scmp.eq.s32.totalorder %s21, 0
    %p235 = por %p233, %p234
    %p236 = scmp.ne.s32.totalorder %s228, %s230
    %p237 = scmp.eq.s32.totalorder %s26, 1
    %p238 = por %p236, %p237
    %p239 = scmp.ne.s32.totalorder %s230, %s231
    %p240 = scmp.eq.s32.totalorder %s26, 0
    %p241 = por %p239, %p240
    %p242 = scmp.ne.s32.totalorder %s230, %s231
    %p243 = scmp.eq.s32.totalorder %s27, 1
    %p244 = por %p242, %p243
    %p246 = scmp.ne.s32.totalorder %s231, %s245
    %p247 = scmp.eq.s32.totalorder %s27, 0
    %p248 = por %p246, %p247
    %s250 = sadd.s32 %s249, 1
    %p253 = scmp.eq.s32.totalorder %s21, 1
    %p254 = scmp.ne.s32.totalorder %s249, %s251
    %p255 = scmp.eq.s32.totalorder %s21, 0
    %p256 = por %p254, %p255
    %p257 = scmp.ne.s32.totalorder %s249, %s251
    %p258 = scmp.eq.s32.totalorder %s26, 1
    %p259 = por %p257, %p258
    %p260 = scmp.ne.s32.totalorder %s251, %s252
    %p261 = scmp.eq.s32.totalorder %s26, 0
    %p262 = por %p260, %p261
    %p263 = scmp.ne.s32.totalorder %s251, %s252
    %p264 = scmp.eq.s32.totalorder %s27, 1
    %p265 = por %p263, %p264
    %p267 = scmp.ne.s32.totalorder %s252, %s266
    %p268 = scmp.eq.s32.totalorder %s27, 0
    %p269 = por %p267, %p268
    %s271 = sadd.s32 %s270, 1
    %p274 = scmp.eq.s32.totalorder %s21, 1
    %p275 = scmp.ne.s32.totalorder %s270, %s272
    %p276 = scmp.eq.s32.totalorder %s21, 0
    %p277 = por %p275, %p276
    %p278 = scmp.ne.s32.totalorder %s270, %s272
    %p279 = scmp.eq.s32.totalorder %s26, 1
    %p280 = por %p278, %p279
    %p281 = scmp.ne.s32.totalorder %s272, %s273
    %p282 = scmp.eq.s32.totalorder %s26, 0
    %p283 = por %p281, %p282
    %p284 = scmp.ne.s32.totalorder %s272, %s273
    %p285 = scmp.eq.s32.totalorder %s27, 1
    %p286 = por %p284, %p285
    %p288 = scmp.ne.s32.totalorder %s273, %s287
    %p289 = scmp.eq.s32.totalorder %s27, 0
    %p290 = por %p288, %p289
    %s292 = sadd.s32 %s291, 1
    %p295 = scmp.eq.s32.totalorder %s21, 1
    %p296 = scmp.ne.s32.totalorder %s291, %s293
    %p297 = scmp.eq.s32.totalorder %s21, 0
    %p298 = por %p296, %p297
    %p299 = scmp.ne.s32.totalorder %s291, %s293
    %p300 = scmp.eq.s32.totalorder %s26, 1
    %p301 = por %p299, %p300
    %p302 = scmp.ne.s32.totalorder %s293, %s294
    %p303 = scmp.eq.s32.totalorder %s26, 0
    %p304 = por %p302, %p303
    %p305 = scmp.ne.s32.totalorder %s293, %s294
    %p306 = scmp.eq.s32.totalorder %s27, 1
    %p307 = por %p305, %p306
    %p309 = scmp.ne.s32.totalorder %s294, %s308
    %p310 = scmp.eq.s32.totalorder %s27, 0
    %p311 = por %p309, %p310
    %s313 = sadd.s32 %s312, 1
    %p316 = scmp.eq.s32.totalorder %s21, 1
    %p317 = scmp.ne.s32.totalorder %s312, %s314
    %p318 = scmp.eq.s32.totalorder %s21, 0
    %p319 = por %p317, %p318
    %p320 = scmp.ne.s32.totalorder %s312, %s314
    %p321 = scmp.eq.s32.totalorder %s26, 1
    %p322 = por %p320, %p321
    %p323 = scmp.ne.s32.totalorder %s314, %s315
    %p324 = scmp.eq.s32.totalorder %s26, 0
    %p325 = por %p323, %p324
    %p326 = scmp.ne.s32.totalorder %s314, %s315
    %p327 = scmp.eq.s32.totalorder %s27, 1
    %p328 = por %p326, %p327
    %p330 = scmp.ne.s32.totalorder %s315, %s329
    %p331 = scmp.eq.s32.totalorder %s27, 0
    %p332 = por %p330, %p331
    %s334 = sadd.s32 %s333, 1
    %p337 = scmp.eq.s32.totalorder %s21, 1
    %p338 = scmp.ne.s32.totalorder %s333, %s335
    %p339 = scmp.eq.s32.totalorder %s21, 0
    %p340 = por %p338, %p339
    %p341 = scmp.ne.s32.totalorder %s333, %s335
    %p342 = scmp.eq.s32.totalorder %s26, 1
    %p343 = por %p341, %p342
    %p344 = scmp.ne.s32.totalorder %s335, %s336
    %p345 = scmp.eq.s32.totalorder %s26, 0
    %p346 = por %p344, %p345
    %p347 = scmp.ne.s32.totalorder %s335, %s336
    %p348 = scmp.eq.s32.totalorder %s27, 1
    %p349 = por %p347, %p348
    %p351 = scmp.ne.s32.totalorder %s336, %s350
    %p352 = scmp.eq.s32.totalorder %s27, 0
    %p353 = por %p351, %p352
    %s354 = ssub.s32 %s21, %s28
    %p355 = scmp.eq.s32.totalorder %s354, 0
    %s357 = sadd.s32 %s356, 1
    %s358 = scalar_select %p355, %s356, %s357
    %p361 = pneg %p355
    %p362 = scmp.eq.s32.totalorder %s21, 1
    %p363 = por %p361, %p362
    %p364 = scmp.ne.s32.totalorder %s356, %s359
    %p365 = scmp.eq.s32.totalorder %s21, 0
    %p366 = por %p364, %p365
    %p367 = scmp.ne.s32.totalorder %s356, %s359
    %p368 = scmp.eq.s32.totalorder %s26, 1
    %p369 = por %p367, %p368
    %p370 = scmp.ne.s32.totalorder %s359, %s360
    %p371 = scmp.eq.s32.totalorder %s26, 0
    %p372 = por %p370, %p371
    %p373 = scmp.ne.s32.totalorder %s359, %s360
    %p374 = scmp.eq.s32.totalorder %s27, 1
    %p375 = por %p373, %p374
    %p377 = scmp.ne.s32.totalorder %s360, %s376
    %p378 = scmp.eq.s32.totalorder %s27, 0
    %p379 = por %p377, %p378
    %p380 = scmp.le.s32.totalorder 1, %s21
    %p381 = scmp.lt.s32.totalorder %s21, 3
    %p382 = pnand %p380, %p381
    %p383 = pneg %p382
    // Predicated region
    $region9: #{run.9} parent=5 // pred_check
      _
    $region10: #{run.9} parent=5 // pred_check_branch
      %385 = sbr.rel (%p382) target = $region12
    $region11: #{run.9} parent=5 // pred_region
      %s386 = ssub.s32 %s21, 1
      // Predicated region
      $region13: #{run.9} parent=11 // pred_check
        %p387 = pneg %p94
      $region14: #{run.9} parent=11 // pred_check_branch
        %389 = sbr.rel (%p387) target = $region16
      $region15: #{run.9} parent=11 // pred_region
        _
      $region16: #{run.9} parent=11 // pred_fallthru
        _
      // Predicated region
      $region17: #{run.9} parent=11 // pred_check
        %p390 = pneg %p115
      $region18: #{run.9} parent=11 // pred_check_branch
        %392 = sbr.rel (%p390) target = $region20
      $region19: #{run.9} parent=11 // pred_region
        _
      $region20: #{run.9} parent=11 // pred_fallthru
        _
      // Predicated region
      $region21: #{run.9} parent=11 // pred_check
        %p393 = pneg %p136
      $region22: #{run.9} parent=11 // pred_check_branch
        %395 = sbr.rel (%p393) target = $region24
      $region23: #{run.9} parent=11 // pred_region
        _
      $region24: #{run.9} parent=11 // pred_fallthru
        _
      // Predicated region
      $region25: #{run.9} parent=11 // pred_check
        %p396 = pneg %p157
      $region26: #{run.9} parent=11 // pred_check_branch
        %398 = sbr.rel (%p396) target = $region28
      $region27: #{run.9} parent=11 // pred_region
        _
      $region28: #{run.9} parent=11 // pred_fallthru
        _
      // Predicated region
      $region29: #{run.9} parent=11 // pred_check
        %p399 = pneg %p178
      $region30: #{run.9} parent=11 // pred_check_branch
        %401 = sbr.rel (%p399) target = $region32
      $region31: #{run.9} parent=11 // pred_region
        _
      $region32: #{run.9} parent=11 // pred_fallthru
        _
      // Predicated region
      $region33: #{run.9} parent=11 // pred_check
        %p402 = pneg %p199
      $region34: #{run.9} parent=11 // pred_check_branch
        %404 = sbr.rel (%p402) target = $region36
      $region35: #{run.9} parent=11 // pred_region
        _
      $region36: #{run.9} parent=11 // pred_fallthru
        _
      // Predicated region
      $region37: #{run.9} parent=11 // pred_check
        %p405 = pneg %p220
      $region38: #{run.9} parent=11 // pred_check_branch
        %407 = sbr.rel (%p405) target = $region40
      $region39: #{run.9} parent=11 // pred_region
        _
      $region40: #{run.9} parent=11 // pred_fallthru
        _
      // Predicated region
      $region41: #{run.9} parent=11 // pred_check
        %p408 = pneg %p241
      $region42: #{run.9} parent=11 // pred_check_branch
        %410 = sbr.rel (%p408) target = $region44
      $region43: #{run.9} parent=11 // pred_region
        _
      $region44: #{run.9} parent=11 // pred_fallthru
        _
      // Predicated region
      $region45: #{run.9} parent=11 // pred_check
        %p411 = pneg %p262
      $region46: #{run.9} parent=11 // pred_check_branch
        %413 = sbr.rel (%p411) target = $region48
      $region47: #{run.9} parent=11 // pred_region
        _
      $region48: #{run.9} parent=11 // pred_fallthru
        _
      // Predicated region
      $region49: #{run.9} parent=11 // pred_check
        %p414 = pneg %p283
      $region50: #{run.9} parent=11 // pred_check_branch
        %416 = sbr.rel (%p414) target = $region52
      $region51: #{run.9} parent=11 // pred_region
        _
      $region52: #{run.9} parent=11 // pred_fallthru
        _
      // Predicated region
      $region53: #{run.9} parent=11 // pred_check
        %p417 = pneg %p304
      $region54: #{run.9} parent=11 // pred_check_branch
        %419 = sbr.rel (%p417) target = $region56
      $region55: #{run.9} parent=11 // pred_region
        _
      $region56: #{run.9} parent=11 // pred_fallthru
        _
      // Predicated region
      $region57: #{run.9} parent=11 // pred_check
        %p420 = pneg %p325
      $region58: #{run.9} parent=11 // pred_check_branch
        %422 = sbr.rel (%p420) target = $region60
      $region59: #{run.9} parent=11 // pred_region
        _
      $region60: #{run.9} parent=11 // pred_fallthru
        _
      // Predicated region
      $region61: #{run.9} parent=11 // pred_check
        %p423 = pneg %p346
      $region62: #{run.9} parent=11 // pred_check_branch
        %425 = sbr.rel (%p423) target = $region64
      $region63: #{run.9} parent=11 // pred_region
        _
      $region64: #{run.9} parent=11 // pred_fallthru
        _
    $region12: #{run.9} parent=5 // pred_fallthru
      _
    %p426 = scmp.lt.s32.totalorder %s21, 2
    // Predicated region
    $region65: #{run.9} parent=5 // pred_check
      %p427 = pneg %p426
    $region66: #{run.9} parent=5 // pred_check_branch
      %429 = sbr.rel (%p427) target = $region68
    $region67: #{run.9} parent=5 // pred_region
      // Predicated region
      $region69: #{run.9} parent=67 // pred_check
        %p430 = pneg %p41
      $region70: #{run.9} parent=67 // pred_check_branch
        %432 = sbr.rel (%p430) target = $region72
      $region71: #{run.9} parent=67 // pred_region
        %p433 = scmp.lt.s32.totalorder %s21, 1
        %s434 = scalar_select %p433, %s21, 1
        %s435 = smul.addr %s434, 8
        %s436 = scalar_lea.vmem %s0, %s435
      $region72: #{run.9} parent=67 // pred_fallthru
        _
      // Predicated region
      $region73: #{run.9} parent=67 // pred_check
        %p437 = pneg %p67
      $region74: #{run.9} parent=67 // pred_check_branch
        %439 = sbr.rel (%p437) target = $region76
      $region75: #{run.9} parent=67 // pred_region
        %p440 = scmp.lt.s32.totalorder %s21, 1
        %s441 = scalar_select %p440, %s21, 1
        %s442 = scalar_lea.vmem %s1, %s441
      $region76: #{run.9} parent=67 // pred_fallthru
        _
    $region68: #{run.9} parent=5 // pred_fallthru
      _
    %p443 = scmp.le.s32.totalorder 1, %s21
    %p444 = scmp.lt.s32.totalorder %s21, 3
    %p445 = pnand %p443, %p444
    %p446 = pneg %p445
    // Predicated region
    $region77: #{run.9} parent=5 // pred_check
      _
    $region78: #{run.9} parent=5 // pred_check_branch
      %448 = sbr.rel (%p445) target = $region80
    $region79: #{run.9} parent=5 // pred_region
      %s449 = ssub.s32 %s21, 1
      %p450 = scmp.lt.s32.totalorder %s26, 1
      %s451 = scalar_select %p450, %s26, 1
      %s452 = smul.addr %s451, 8
      %s453 = scalar_lea.vmem %s0, %s452
      %p454 = pneg %p47
      %p455 = pneg %p44
      %p456 = scmp.lt.s32.totalorder %s26, 1
      %s457 = scalar_select %p456, %s26, 1
      %s458 = scalar_lea.vmem %s1, %s457
      %p459 = pneg %p73
      %p460 = pneg %p70
      %p461 = pneg %p94
      %p462 = pneg %p91
      %p463 = pneg %p115
      %p464 = pneg %p112
      %p465 = pneg %p136
      %p466 = pneg %p133
      %p467 = pneg %p157
      %p468 = pneg %p154
      %p469 = pneg %p178
      %p470 = pneg %p175
      %p471 = pneg %p199
      %p472 = pneg %p196
      %p473 = pneg %p220
      %p474 = pneg %p217
      %p475 = pneg %p241
      %p476 = pneg %p238
      %p477 = pneg %p262
      %p478 = pneg %p259
      %p479 = pneg %p283
      %p480 = pneg %p280
      %p481 = pneg %p304
      %p482 = pneg %p301
      %p483 = pneg %p325
      %p484 = pneg %p322
      %p485 = pneg %p346
      %p486 = pneg %p343
      %p487 = pneg %p372
      %p488 = pneg %p369
      %p489 = scmp.lt.s32.totalorder %s26, 1
      %s490 = scalar_select %p489, %s26, 1
      %s491 = smul.addr %s490, 8
      %s492 = scalar_lea.vmem %s15, %s491
      %p493 = scmp.lt.s32.totalorder %s26, 1
      %s494 = scalar_select %p493, %s26, 1
      %s495 = smul.addr %s494, 8
      %s496 = scalar_lea.vmem %s0, %s495
      %p497 = scmp.lt.s32.totalorder %s26, 1
      %s498 = scalar_select %p497, %s26, 1
      %s499 = scalar_lea.vmem %s1, %s498
      %p500 = scmp.lt.s32.totalorder %s26, 1
      %s501 = scalar_select %p500, %s26, 1
      %s502 = smul.addr %s501, 8
      %s503 = scalar_lea.vmem %s15, %s502
      %v505 = vld [vmem:[%s496] sm:$0xff]
      %v506 = vld [vmem:[%s499] sm:$0x1]
      %v508 = vlaneseq
      %v509 = vshrl.u32 %v508, 7
      %v510 = vsub.s32 0, %v509
      %v511 = vrot.slane %v506, %v510
      %v513 = vadd.f32 %v505, %v511
      %v514 = vld [vmem:[%s2] sm:$0x1]
      %v515 = vld [vmem:[%s3] sm:$0x1]
      %vm516 = vcmask 261120
      %v517 = vsel %vm516, %v513, 0.0
      %518 = vadd.xlane.f32.xlu0 %v517
      %v519 = vpop.xlane.xlu0 %518
      %v520 = vrcp.pop 32.0
      %v521 = vmul.f32 %v519, %v520
      %v522 = vsub.f32 %v513, %v521
      %v523 = vmul.f32 %v522, %v522
      %v524 = vsel %vm516, %v523, 0.0
      %525 = vadd.xlane.f32.xlu0 %v524
      %v526 = vpop.xlane.xlu0 %525
      %v527 = vmul.f32 %v526, %v520
      %v528 = vadd.f32 %v527, 1e-05
      %v529 = vrsqrt.pop %v528
      %v530 = vmul.f32 %v522, %v529
      %v532 = vlaneseq
      %v533 = vshrl.u32 %v532, 7
      %v534 = vsub.s32 0, %v533
      %v535 = vrot.slane %v514, %v534
      %v537 = vmul.f32 %v530, %v535
      %v539 = vlaneseq
      %v540 = vshrl.u32 %v539, 7
      %v541 = vsub.s32 0, %v540
      %v542 = vrot.slane %v515, %v541
      %v544 = vadd.f32 %v537, %v542
      %v545 = vpack.c.bf16 %v544, %v544
      %v546 = vld [vmem:[%s4] sm:$0xf]
      %v547 = vld [vmem:[%s4 + $0x4] sm:$0xf]
      %v548 = vld [vmem:[%s4 + $0x8] sm:$0xf]
      %v549 = vld [vmem:[%s4 + $0xc] sm:$0xf]
      %v554 = vunpack.c.l.b16 %v546
      %v555 = vunpack.c.l.b16 %v547
      %v556 = vunpack.c.l.b16 %v548
      %v557 = vunpack.c.l.b16 %v549
      %v558 = vpack.c.b16 %v555, %v554
      %v559 = vpack.c.b16 %v557, %v556
      %v563 = vsel %vm516, %v545, 0
      %565 = vmatprep.subr.bf16.mxu0 0
      %566 = vmatpush1.bf16.msra.mxu0 %v558
      %567 = vmatprep.subr.bf16.mxu0 0
      %568 = vmatpush1.bf16.msra.mxu0 %v559
      %569 = vmatprep.subr.bf16.mxu0 0
      %570 = vmatpush1.bf16.msra.mxu0 0
      %571 = vmatprep.subr.bf16.mxu0 0
      %572 = vmatpush1.bf16.msra.mxu0 0
      %573 = vmatprep.subr.bf16.mxu0 0
      %574 = vmatpush1.bf16.msra.mxu0 0
      %575 = vmatprep.subr.bf16.mxu0 0
      %576 = vmatpush1.bf16.msra.mxu0 0
      %577 = vmatprep.subr.bf16.mxu0 0
      %578 = vmatpush1.bf16.msra.mxu0 0
      %579 = vmatprep.subr.bf16.mxu0 0
      %580 = vmatpush1.bf16.msra.mxu0 0
      %581 = vmatprep.subr.bf16.mxu0 0
      %582 = vmatpush1.bf16.msra.mxu0 0
      %583 = vmatprep.subr.bf16.mxu0 0
      %584 = vmatpush1.bf16.msra.mxu0 0
      %585 = vmatprep.subr.bf16.mxu0 0
      %586 = vmatpush1.bf16.msra.mxu0 0
      %587 = vmatprep.subr.bf16.mxu0 0
      %588 = vmatpush1.bf16.msra.mxu0 0
      %589 = vmatprep.subr.bf16.mxu0 0
      %590 = vmatpush1.bf16.msra.mxu0 0
      %591 = vmatprep.subr.bf16.mxu0 0
      %592 = vmatpush1.bf16.msra.mxu0 0
      %593 = vmatprep.subr.bf16.mxu0 0
      %594 = vmatpush1.bf16.msra.mxu0 0
      %595 = vmatprep.subr.bf16.mxu0 0
      %596 = vmatpush1.bf16.msra.mxu0 0
      %597 = vmatprep.mubr.bf16.mxu0 0
      %598 = vmatmul.mubr.bf16.gmra.mrb[0].mxu0 %v563
      %v599 = vpop.f32.mrb[0].mxu0
      %v600 = vadd.f32 0.0, %v599
      %v601 = vpop.f32.mrb[0].mxu0
      %v602 = vpop.f32.mrb[0].mxu0
      %v603 = vpop.f32.mrb[0].mxu0
      %604 = vdwg.mxu0
      %v605 = vld [vmem:[%s5] sm:$0xf]
      %v606 = vld [vmem:[%s5 + $0x4] sm:$0xf]
      %v607 = vld [vmem:[%s5 + $0x8] sm:$0xf]
      %v608 = vld [vmem:[%s5 + $0xc] sm:$0xf]
      %v613 = vunpack.c.l.b16 %v605
      %v614 = vunpack.c.l.b16 %v606
      %v615 = vunpack.c.l.b16 %v607
      %v616 = vunpack.c.l.b16 %v608
      %v617 = vpack.c.b16 %v614, %v613
      %v618 = vpack.c.b16 %v616, %v615
      %621 = vmatprep.subr.bf16.mxu0 0
      %622 = vmatpush1.bf16.msra.mxu0 %v617
      %623 = vmatprep.subr.bf16.mxu0 0
      %624 = vmatpush1.bf16.msra.mxu0 %v618
      %625 = vmatprep.subr.bf16.mxu0 0
      %626 = vmatpush1.bf16.msra.mxu0 0
      %627 = vmatprep.subr.bf16.mxu0 0
      %628 = vmatpush1.bf16.msra.mxu0 0
      %629 = vmatprep.subr.bf16.mxu0 0
      %630 = vmatpush1.bf16.msra.mxu0 0
      %631 = vmatprep.subr.bf16.mxu0 0
      %632 = vmatpush1.bf16.msra.mxu0 0
      %633 = vmatprep.subr.bf16.mxu0 0
      %634 = vmatpush1.bf16.msra.mxu0 0
      %635 = vmatprep.subr.bf16.mxu0 0
      %636 = vmatpush1.bf16.msra.mxu0 0
      %637 = vmatprep.subr.bf16.mxu0 0
      %638 = vmatpush1.bf16.msra.mxu0 0
      %639 = vmatprep.subr.bf16.mxu0 0
      %640 = vmatpush1.bf16.msra.mxu0 0
      %641 = vmatprep.subr.bf16.mxu0 0
      %642 = vmatpush1.bf16.msra.mxu0 0
      %643 = vmatprep.subr.bf16.mxu0 0
      %644 = vmatpush1.bf16.msra.mxu0 0
      %645 = vmatprep.subr.bf16.mxu0 0
      %646 = vmatpush1.bf16.msra.mxu0 0
      %647 = vmatprep.subr.bf16.mxu0 0
      %648 = vmatpush1.bf16.msra.mxu0 0
      %649 = vmatprep.subr.bf16.mxu0 0
      %650 = vmatpush1.bf16.msra.mxu0 0
      %651 = vmatprep.subr.bf16.mxu0 0
      %652 = vmatpush1.bf16.msra.mxu0 0
      %653 = vmatprep.mubr.bf16.mxu0 0
      %654 = vmatmul.mubr.bf16.gmra.mrb[0].mxu0 %v563
      %v655 = vpop.f32.mrb[0].mxu0
      %v656 = vadd.f32 0.0, %v655
      %v657 = vpop.f32.mrb[0].mxu0
      %v658 = vpop.f32.mrb[0].mxu0
      %v659 = vpop.f32.mrb[0].mxu0
      %660 = vdwg.mxu0
      %v661 = vld [vmem:[%s6] sm:$0xf]
      %v662 = vld [vmem:[%s6 + $0x4] sm:$0xf]
      %v663 = vld [vmem:[%s6 + $0x8] sm:$0xf]
      %v664 = vld [vmem:[%s6 + $0xc] sm:$0xf]
      %v669 = vunpack.c.l.b16 %v661
      %v670 = vunpack.c.l.b16 %v662
      %v671 = vunpack.c.l.b16 %v663
      %v672 = vunpack.c.l.b16 %v664
      %v673 = vpack.c.b16 %v670, %v669
      %v674 = vpack.c.b16 %v672, %v671
      %677 = vmatprep.subr.bf16.mxu0 0
      %678 = vmatpush1.bf16.msra.mxu0 %v673
      %679 = vmatprep.subr.bf16.mxu0 0
      %680 = vmatpush1.bf16.msra.mxu0 %v674
      %681 = vmatprep.subr.bf16.mxu0 0
      %682 = vmatpush1.bf16.msra.mxu0 0
      %683 = vmatprep.subr.bf16.mxu0 0
      %684 = vmatpush1.bf16.msra.mxu0 0
      %685 = vmatprep.subr.bf16.mxu0 0
      %686 = vmatpush1.bf16.msra.mxu0 0
      %687 = vmatprep.subr.bf16.mxu0 0
      %688 = vmatpush1.bf16.msra.mxu0 0
      %689 = vmatprep.subr.bf16.mxu0 0
      %690 = vmatpush1.bf16.msra.mxu0 0
      %691 = vmatprep.subr.bf16.mxu0 0
      %692 = vmatpush1.bf16.msra.mxu0 0
      %693 = vmatprep.subr.bf16.mxu0 0
      %694 = vmatpush1.bf16.msra.mxu0 0
      %695 = vmatprep.subr.bf16.mxu0 0
      %696 = vmatpush1.bf16.msra.mxu0 0
      %697 = vmatprep.subr.bf16.mxu0 0
      %698 = vmatpush1.bf16.msra.mxu0 0
      %699 = vmatprep.subr.bf16.mxu0 0
      %700 = vmatpush1.bf16.msra.mxu0 0
      %701 = vmatprep.subr.bf16.mxu0 0
      %702 = vmatpush1.bf16.msra.mxu0 0
      %703 = vmatprep.subr.bf16.mxu0 0
      %704 = vmatpush1.bf16.msra.mxu0 0
      %705 = vmatprep.subr.bf16.mxu0 0
      %706 = vmatpush1.bf16.msra.mxu0 0
      %707 = vmatprep.subr.bf16.mxu0 0
      %708 = vmatpush1.bf16.msra.mxu0 0
      %709 = vmatprep.mubr.bf16.mxu0 0
      %710 = vmatmul.mubr.bf16.gmra.mrb[0].mxu0 %v563
      %v711 = vpop.f32.mrb[0].mxu0
      %v712 = vadd.f32 0.0, %v711
      %v713 = vpop.f32.mrb[0].mxu0
      %v714 = vpop.f32.mrb[0].mxu0
      %v715 = vpop.f32.mrb[0].mxu0
      %716 = vdwg.mxu0
      %vm717 = vcmask 64512
      %v718 = vsel %vm717, %v600, -inf
      %719 = vmax.xlane.f32.xlu0 %v718
      %v720 = vpop.xlane.xlu0 %719
      %v721 = vsub.f32 %v600, %v720
      %v722 = vmul.f32 %v721, 1.442695
      %v723 = vpow.pop %v722
      %v724 = vsel %vm717, %v723, 0.0
      %725 = vadd.xlane.f32.xlu0 %v724
      %v726 = vpop.xlane.xlu0 %725
      %v727 = vrcp.pop %v726
      %v728 = vmul.f32 %v723, %v727
      %v729 = vmul.f32 %v728, 0.35355338
      %v730 = vsel %vm717, %v656, -inf
      %v731 = vrot.slane %v730, 4
      %v732 = vmax.f32 %v730, %v731
      %v733 = vrot.slane %v732, 2
      %v734 = vmax.f32 %v732, %v733
      %v735 = vrot.slane %v734, 1
      %v736 = vmax.f32 %v734, %v735
      %v737 = vsub.f32 %v656, %v736
      %v738 = vmul.f32 %v737, 1.442695
      %v739 = vpow.pop %v738
      %v740 = vsel %vm717, %v739, 0.0
      %v741 = vrot.slane %v740, 4
      %v742 = vadd.f32 %v740, %v741
      %v743 = vrot.slane %v742, 2
      %v744 = vadd.f32 %v742, %v743
      %v745 = vrot.slane %v744, 1
      %v746 = vadd.f32 %v744, %v745
      %v747 = vrcp.pop %v746
      %v748 = vmul.f32 %v739, %v747
      %749 = vxpose.xlu0.b32.start [1/16] %v748, 128
      %750 = vxpose.xlu0.b32.cont [2/16] 0.0, 128
      %751 = vxpose.xlu0.b32.cont [3/16] 0.0, 128
      %752 = vxpose.xlu0.b32.cont [4/16] 0.0, 128
      %753 = vxpose.xlu0.b32.cont [5/16] 0.0, 128
      %754 = vxpose.xlu0.b32.cont [6/16] 0.0, 128
      %755 = vxpose.xlu0.b32.cont [7/16] 0.0, 128
      %756 = vxpose.xlu0.b32.cont [8/16] 0.0, 128
      %757 = vxpose.xlu0.b32.cont [9/16] 0.0, 128
      %758 = vxpose.xlu0.b32.cont [10/16] 0.0, 128
      %759 = vxpose.xlu0.b32.cont [11/16] 0.0, 128
      %760 = vxpose.xlu0.b32.cont [12/16] 0.0, 128
      %761 = vxpose.xlu0.b32.cont [13/16] 0.0, 128
      %762 = vxpose.xlu0.b32.cont [14/16] 0.0, 128
      %763 = vxpose.xlu0.b32.cont [15/16] 0.0, 128
      %764 = vxpose.xlu0.b32.end [16/16] 0.0, 128
      %v765 = vpop.trf.xlu0
      %v766 = vpop.trf.xlu0
      %v767 = vpop.trf.xlu0
      %v768 = vpop.trf.xlu0
      %v769 = vpop.trf.xlu0
      %v770 = vpop.trf.xlu0
      %v771 = vpop.trf.xlu0
      %v772 = vpop.trf.xlu0
      %v773 = vpop.trf.xlu0
      %v774 = vpop.trf.xlu0
      %v775 = vpop.trf.xlu0
      %v776 = vpop.trf.xlu0
      %v777 = vpop.trf.xlu0
      %v778 = vpop.trf.xlu0
      %v779 = vpop.trf.xlu0
      %v780 = vpop.trf.xlu0
      %v781 = vpack.c.bf16 %v765, %v765
      %v782 = vpack.c.bf16 %v712, %v712
      %v784 = vsel %vm717, %v781, 0
      %vm786 = vcmask 1043456
      %v788 = vsel %vm786, %v782, 0
      %790 = vmatprep.subr.bf16.mxu0 0
      %791 = vmatpush1.bf16.msra.mxu0 %v788
      %792 = vmatprep.subr.bf16.mxu0 0
      %793 = vmatpush1.bf16.msra.mxu0 0
      %794 = vmatprep.subr.bf16.mxu0 0
      %795 = vmatpush1.bf16.msra.mxu0 0
      %796 = vmatprep.subr.bf16.mxu0 0
      %797 = vmatpush1.bf16.msra.mxu0 0
      %798 = vmatprep.subr.bf16.mxu0 0
      %799 = vmatpush1.bf16.msra.mxu0 0
      %800 = vmatprep.subr.bf16.mxu0 0
      %801 = vmatpush1.bf16.msra.mxu0 0
      %802 = vmatprep.subr.bf16.mxu0 0
      %803 = vmatpush1.bf16.msra.mxu0 0
      %804 = vmatprep.subr.bf16.mxu0 0
      %805 = vmatpush1.bf16.msra.mxu0 0
      %806 = vmatprep.subr.bf16.mxu0 0
      %807 = vmatpush1.bf16.msra.mxu0 0
      %808 = vmatprep.subr.bf16.mxu0 0
      %809 = vmatpush1.bf16.msra.mxu0 0
      %810 = vmatprep.subr.bf16.mxu0 0
      %811 = vmatpush1.bf16.msra.mxu0 0
      %812 = vmatprep.subr.bf16.mxu0 0
      %813 = vmatpush1.bf16.msra.mxu0 0
      %814 = vmatprep.subr.bf16.mxu0 0
      %815 = vmatpush1.bf16.msra.mxu0 0
      %816 = vmatprep.subr.bf16.mxu0 0
      %817 = vmatpush1.bf16.msra.mxu0 0
      %818 = vmatprep.subr.bf16.mxu0 0
      %819 = vmatpush1.bf16.msra.mxu0 0
      %820 = vmatprep.subr.bf16.mxu0 0
      %821 = vmatpush1.bf16.msra.mxu0 0
      %822 = vmatprep.mubr.bf16.mxu0 0
      %823 = vmatmul.mubr.bf16.gmra.mrb[0].mxu0 %v784
      %v824 = vpop.f32.mrb[0].mxu0
      %v825 = vadd.f32 0.0, %v824
      %v826 = vpop.f32.mrb[0].mxu0
      %v827 = vpop.f32.mrb[0].mxu0
      %v828 = vpop.f32.mrb[0].mxu0
      %829 = vdwg.mxu0
      %v830 = vpack.c.bf16 %v729, %v729
      %v831 = vpack.c.bf16 %v825, %v825
      %v833 = vsel %vm717, %v830, 0
      %v836 = vsel %vm786, %v831, 0
      %838 = vmatprep.subr.bf16.mxu0 0
      %839 = vmatpush1.bf16.msra.mxu0 %v836
      %840 = vmatprep.subr.bf16.mxu0 0
      %841 = vmatpush1.bf16.msra.mxu0 0
      %842 = vmatprep.subr.bf16.mxu0 0
      %843 = vmatpush1.bf16.msra.mxu0 0
      %844 = vmatprep.subr.bf16.mxu0 0
      %845 = vmatpush1.bf16.msra.mxu0 0
      %846 = vmatprep.subr.bf16.mxu0 0
      %847 = vmatpush1.bf16.msra.mxu0 0
      %848 = vmatprep.subr.bf16.mxu0 0
      %849 = vmatpush1.bf16.msra.mxu0 0
      %850 = vmatprep.subr.bf16.mxu0 0
      %851 = vmatpush1.bf16.msra.mxu0 0
      %852 = vmatprep.subr.bf16.mxu0 0
      %853 = vmatpush1.bf16.msra.mxu0 0
      %854 = vmatprep.subr.bf16.mxu0 0
      %855 = vmatpush1.bf16.msra.mxu0 0
      %856 = vmatprep.subr.bf16.mxu0 0
      %857 = vmatpush1.bf16.msra.mxu0 0
      %858 = vmatprep.subr.bf16.mxu0 0
      %859 = vmatpush1.bf16.msra.mxu0 0
      %860 = vmatprep.subr.bf16.mxu0 0
      %861 = vmatpush1.bf16.msra.mxu0 0
      %862 = vmatprep.subr.bf16.mxu0 0
      %863 = vmatpush1.bf16.msra.mxu0 0
      %864 = vmatprep.subr.bf16.mxu0 0
      %865 = vmatpush1.bf16.msra.mxu0 0
      %866 = vmatprep.subr.bf16.mxu0 0
      %867 = vmatpush1.bf16.msra.mxu0 0
      %868 = vmatprep.subr.bf16.mxu0 0
      %869 = vmatpush1.bf16.msra.mxu0 0
      %870 = vmatprep.mubr.bf16.mxu0 0
      %871 = vmatmul.mubr.bf16.gmra.mrb[0].mxu0 %v833
      %v872 = vpop.f32.mrb[0].mxu0
      %v873 = vadd.f32 0.0, %v872
      %v874 = vpop.f32.mrb[0].mxu0
      %v875 = vpop.f32.mrb[0].mxu0
      %v876 = vpop.f32.mrb[0].mxu0
      %877 = vdwg.mxu0
      %vm878 = vcmask 130112
      %v879 = vsel %vm878, %v600, -inf
      %880 = vmax.xlane.f32.xlu0 %v879
      %v881 = vpop.xlane.xlu0 %880
      %v882 = vsub.f32 %v600, %v881
      %v883 = vmul.f32 %v882, 1.442695
      %v884 = vpow.pop %v883
      %886 = vrot.lane.b32.xlu0 %v884, 120
      %v887 = vpop.permute.xlu0 %886
      %v889 = vsel %vm717, %v887, 0.0
      %890 = vadd.xlane.f32.xlu0 %v889
      %v891 = vpop.xlane.xlu0 %890
      %v892 = vrcp.pop %v891
      %v893 = vmul.f32 %v884, %v892
      %v894 = vmul.f32 %v893, 0.35355338
      %v895 = vsel %vm878, %v656, -inf
      %v896 = vrot.slane %v895, 4
      %v897 = vmax.f32 %v895, %v896
      %v898 = vrot.slane %v897, 2
      %v899 = vmax.f32 %v897, %v898
      %v900 = vrot.slane %v899, 1
      %v901 = vmax.f32 %v899, %v900
      %v902 = vsub.f32 %v656, %v901
      %v903 = vmul.f32 %v902, 1.442695
      %v904 = vpow.pop %v903
      %v905 = vsel %vm878, %v904, 0.0
      %v906 = vrot.slane %v905, 4
      %v907 = vadd.f32 %v905, %v906
      %v908 = vrot.slane %v907, 2
      %v909 = vadd.f32 %v907, %v908
      %v910 = vrot.slane %v909, 1
      %v911 = vadd.f32 %v909, %v910
      %v912 = vrcp.pop %v911
      %v913 = vmul.f32 %v904, %v912
      %915 = vrot.lane.b32.xlu0 %v913, 120
      %v916 = vpop.permute.xlu0 %915
      %918 = vxpose.xlu0.b32.start [1/16] %v916, 128
      %919 = vxpose.xlu0.b32.cont [2/16] 0.0, 128
      %920 = vxpose.xlu0.b32.cont [3/16] 0.0, 128
      %921 = vxpose.xlu0.b32.cont [4/16] 0.0, 128
      %922 = vxpose.xlu0.b32.cont [5/16] 0.0, 128
      %923 = vxpose.xlu0.b32.cont [6/16] 0.0, 128
      %924 = vxpose.xlu0.b32.cont [7/16] 0.0, 128
      %925 = vxpose.xlu0.b32.cont [8/16] 0.0, 128
      %926 = vxpose.xlu0.b32.cont [9/16] 0.0, 128
      %927 = vxpose.xlu0.b32.cont [10/16] 0.0, 128
      %928 = vxpose.xlu0.b32.cont [11/16] 0.0, 128
      %929 = vxpose.xlu0.b32.cont [12/16] 0.0, 128
      %930 = vxpose.xlu0.b32.cont [13/16] 0.0, 128
      %931 = vxpose.xlu0.b32.cont [14/16] 0.0, 128
      %932 = vxpose.xlu0.b32.cont [15/16] 0.0, 128
      %933 = vxpose.xlu0.b32.end [16/16] 0.0, 128
      %v934 = vpop.trf.xlu0
      %v935 = vpop.trf.xlu0
      %v936 = vpop.trf.xlu0
      %v937 = vpop.trf.xlu0
      %v938 = vpop.trf.xlu0
      %v939 = vpop.trf.xlu0
      %v940 = vpop.trf.xlu0
      %v941 = vpop.trf.xlu0
      %v942 = vpop.trf.xlu0
      %v943 = vpop.trf.xlu0
      %v944 = vpop.trf.xlu0
      %v945 = vpop.trf.xlu0
      %v946 = vpop.trf.xlu0
      %v947 = vpop.trf.xlu0
      %v948 = vpop.trf.xlu0
      %v949 = vpop.trf.xlu0
      %v950 = vpack.c.bf16 %v934, %v934
      %952 = vrot.lane.b32.xlu0 %v782, 120
      %v953 = vpop.permute.xlu0 %952
      %v955 = vsel %vm717, %v950, 0
      %v958 = vsel %vm786, %v953, 0
      %960 = vmatprep.subr.bf16.mxu0 0
      %961 = vmatpush1.bf16.msra.mxu0 %v958
      %962 = vmatprep.subr.bf16.mxu0 0
      %963 = vmatpush1.bf16.msra.mxu0 0
      %964 = vmatprep.subr.bf16.mxu0 0
      %965 = vmatpush1.bf16.msra.mxu0 0
      %966 = vmatprep.subr.bf16.mxu0 0
      %967 = vmatpush1.bf16.msra.mxu0 0
      %968 = vmatprep.subr.bf16.mxu0 0
      %969 = vmatpush1.bf16.msra.mxu0 0
      %970 = vmatprep.subr.bf16.mxu0 0
      %971 = vmatpush1.bf16.msra.mxu0 0
      %972 = vmatprep.subr.bf16.mxu0 0
      %973 = vmatpush1.bf16.msra.mxu0 0
      %974 = vmatprep.subr.bf16.mxu0 0
      %975 = vmatpush1.bf16.msra.mxu0 0
      %976 = vmatprep.subr.bf16.mxu0 0
      %977 = vmatpush1.bf16.msra.mxu0 0
      %978 = vmatprep.subr.bf16.mxu0 0
      %979 = vmatpush1.bf16.msra.mxu0 0
      %980 = vmatprep.subr.bf16.mxu0 0
      %981 = vmatpush1.bf16.msra.mxu0 0
      %982 = vmatprep.subr.bf16.mxu0 0
      %983 = vmatpush1.bf16.msra.mxu0 0
      %984 = vmatprep.subr.bf16.mxu0 0
      %985 = vmatpush1.bf16.msra.mxu0 0
      %986 = vmatprep.subr.bf16.mxu0 0
      %987 = vmatpush1.bf16.msra.mxu0 0
      %988 = vmatprep.subr.bf16.mxu0 0
      %989 = vmatpush1.bf16.msra.mxu0 0
      %990 = vmatprep.subr.bf16.mxu0 0
      %991 = vmatpush1.bf16.msra.mxu0 0
      %992 = vmatprep.mubr.bf16.mxu0 0
      %993 = vmatmul.mubr.bf16.gmra.mrb[0].mxu0 %v955
      %v994 = vpop.f32.mrb[0].mxu0
      %v995 = vadd.f32 0.0, %v994
      %v996 = vpop.f32.mrb[0].mxu0
      %v997 = vpop.f32.mrb[0].mxu0
      %v998 = vpop.f32.mrb[0].mxu0
      %999 = vdwg.mxu0
      %v1000 = vpack.c.bf16 %v894, %v894
      %v1001 = vpack.c.bf16 %v995, %v995
      %1003 = vrot.lane.b32.xlu0 %v1000, 120
      %v1004 = vpop.permute.xlu0 %1003
      %v1006 = vsel %vm717, %v1004, 0
      %v1009 = vsel %vm786, %v1001, 0
      %1011 = vmatprep.subr.bf16.mxu0 0
      %1012 = vmatpush1.bf16.msra.mxu0 %v1009
      %1013 = vmatprep.subr.bf16.mxu0 0
      %1014 = vmatpush1.bf16.msra.mxu0 0
      %1015 = vmatprep.subr.bf16.mxu0 0
      %1016 = vmatpush1.bf16.msra.mxu0 0
      %1017 = vmatprep.subr.bf16.mxu0 0
      %1018 = vmatpush1.bf16.msra.mxu0 0
      %1019 = vmatprep.subr.bf16.mxu0 0
      %1020 = vmatpush1.bf16.msra.mxu0 0
      %1021 = vmatprep.subr.bf16.mxu0 0
      %1022 = vmatpush1.bf16.msra.mxu0 0
      %1023 = vmatprep.subr.bf16.mxu0 0
      %1024 = vmatpush1.bf16.msra.mxu0 0
      %1025 = vmatprep.subr.bf16.mxu0 0
      %1026 = vmatpush1.bf16.msra.mxu0 0
      %1027 = vmatprep.subr.bf16.mxu0 0
      %1028 = vmatpush1.bf16.msra.mxu0 0
      %1029 = vmatprep.subr.bf16.mxu0 0
      %1030 = vmatpush1.bf16.msra.mxu0 0
      %1031 = vmatprep.subr.bf16.mxu0 0
      %1032 = vmatpush1.bf16.msra.mxu0 0
      %1033 = vmatprep.subr.bf16.mxu0 0
      %1034 = vmatpush1.bf16.msra.mxu0 0
      %1035 = vmatprep.subr.bf16.mxu0 0
      %1036 = vmatpush1.bf16.msra.mxu0 0
      %1037 = vmatprep.subr.bf16.mxu0 0
      %1038 = vmatpush1.bf16.msra.mxu0 0
      %1039 = vmatprep.subr.bf16.mxu0 0
      %1040 = vmatpush1.bf16.msra.mxu0 0
      %1041 = vmatprep.subr.bf16.mxu0 0
      %1042 = vmatpush1.bf16.msra.mxu0 0
      %1043 = vmatprep.mubr.bf16.mxu0 0
      %1044 = vmatmul.mubr.bf16.gmra.mrb[0].mxu0 %v1006
      %v1045 = vpop.f32.mrb[0].mxu0
      %v1046 = vadd.f32 0.0, %v1045
      %v1047 = vpop.f32.mrb[0].mxu0
      %v1048 = vpop.f32.mrb[0].mxu0
      %v1049 = vpop.f32.mrb[0].mxu0
      %1050 = vdwg.mxu0
      %vm1051 = vcmask 195712
      %v1052 = vsel %vm1051, %v600, -inf
      %1053 = vmax.xlane.f32.xlu0 %v1052
      %v1054 = vpop.xlane.xlu0 %1053
      %v1055 = vsub.f32 %v600, %v1054
      %v1056 = vmul.f32 %v1055, 1.442695
      %v1057 = vpow.pop %v1056
      %1059 = vrot.lane.b32.xlu0 %v1057, 112
      %v1060 = vpop.permute.xlu0 %1059
      %v1062 = vsel %vm717, %v1060, 0.0
      %1063 = vadd.xlane.f32.xlu0 %v1062
      %v1064 = vpop.xlane.xlu0 %1063
      %v1065 = vrcp.pop %v1064
      %v1066 = vmul.f32 %v1057, %v1065
      %v1067 = vmul.f32 %v1066, 0.35355338
      %v1068 = vsel %vm1051, %v656, -inf
      %v1069 = vrot.slane %v1068, 4
      %v1070 = vmax.f32 %v1068, %v1069
      %v1071 = vrot.slane %v1070, 2
      %v1072 = vmax.f32 %v1070, %v1071
      %v1073 = vrot.slane %v1072, 1
      %v1074 = vmax.f32 %v1072, %v1073
      %v1075 = vsub.f32 %v656, %v1074
      %v1076 = vmul.f32 %v1075, 1.442695
      %v1077 = vpow.pop %v1076
      %v1078 = vsel %vm1051, %v1077, 0.0
      %v1079 = vrot.slane %v1078, 4
      %v1080 = vadd.f32 %v1078, %v1079
      %v1081 = vrot.slane %v1080, 2
      %v1082 = vadd.f32 %v1080, %v1081
      %v1083 = vrot.slane %v1082, 1
      %v1084 = vadd.f32 %v1082, %v1083
      %v1085 = vrcp.pop %v1084
      %v1086 = vmul.f32 %v1077, %v1085
      %1088 = vrot.lane.b32.xlu0 %v1086, 112
      %v1089 = vpop.permute.xlu0 %1088
      %1091 = vxpose.xlu0.b32.start [1/16] %v1089, 128
      %1092 = vxpose.xlu0.b32.cont [2/16] 0.0, 128
      %1093 = vxpose.xlu0.b32.cont [3/16] 0.0, 128
      %1094 = vxpose.xlu0.b32.cont [4/16] 0.0, 128
      %1095 = vxpose.xlu0.b32.cont [5/16] 0.0, 128
      %1096 = vxpose.xlu0.b32.cont [6/16] 0.0, 128
      %1097 = vxpose.xlu0.b32.cont [7/16] 0.0, 128
      %1098 = vxpose.xlu0.b32.cont [8/16] 0.0, 128
      %1099 = vxpose.xlu0.b32.cont [9/16] 0.0, 128
      %1100 = vxpose.xlu0.b32.cont [10/16] 0.0, 128
      %1101 = vxpose.xlu0.b32.cont [11/16] 0.0, 128
      %1102 = vxpose.xlu0.b32.cont [12/16] 0.0, 128
      %1103 = vxpose.xlu0.b32.cont [13/16] 0.0, 128
      %1104 = vxpose.xlu0.b32.cont [14/16] 0.0, 128
      %1105 = vxpose.xlu0.b32.cont [15/16] 0.0, 128
      %1106 = vxpose.xlu0.b32.end [16/16] 0.0, 128
      %v1107 = vpop.trf.xlu0
      %v1108 = vpop.trf.xlu0
      %v1109 = vpop.trf.xlu0
      %v1110 = vpop.trf.xlu0
      %v1111 = vpop.trf.xlu0
      %v1112 = vpop.trf.xlu0
      %v1113 = vpop.trf.xlu0
      %v1114 = vpop.trf.xlu0
      %v1115 = vpop.trf.xlu0
      %v1116 = vpop.trf.xlu0
      %v1117 = vpop.trf.xlu0
      %v1118 = vpop.trf.xlu0
      %v1119 = vpop.trf.xlu0
      %v1120 = vpop.trf.xlu0
      %v1121 = vpop.trf.xlu0
      %v1122 = vpop.trf.xlu0
      %v1123 = vpack.c.bf16 %v1107, %v1107
      %1124 = vrot.lane.b32.xlu0 %v782, 112
      %v1125 = vpop.permute.xlu0 %1124
      %v1127 = vsel %vm717, %v1123, 0
      %v1130 = vsel %vm786, %v1125, 0
      %1132 = vmatprep.subr.bf16.mxu0 0
      %1133 = vmatpush1.bf16.msra.mxu0 %v1130
      %1134 = vmatprep.subr.bf16.mxu0 0
      %1135 = vmatpush1.bf16.msra.mxu0 0
      %1136 = vmatprep.subr.bf16.mxu0 0
      %1137 = vmatpush1.bf16.msra.mxu0 0
      %1138 = vmatprep.subr.bf16.mxu0 0
      %1139 = vmatpush1.bf16.msra.mxu0 0
      %1140 = vmatprep.subr.bf16.mxu0 0
      %1141 = vmatpush1.bf16.msra.mxu0 0
      %1142 = vmatprep.subr.bf16.mxu0 0
      %1143 = vmatpush1.bf16.msra.mxu0 0
      %1144 = vmatprep.subr.bf16.mxu0 0
      %1145 = vmatpush1.bf16.msra.mxu0 0
      %1146 = vmatprep.subr.bf16.mxu0 0
      %1147 = vmatpush1.bf16.msra.mxu0 0
      %1148 = vmatprep.subr.bf16.mxu0 0
      %1149 = vmatpush1.bf16.msra.mxu0 0
      %1150 = vmatprep.subr.bf16.mxu0 0
      %1151 = vmatpush1.bf16.msra.mxu0 0
      %1152 = vmatprep.subr.bf16.mxu0 0
      %1153 = vmatpush1.bf16.msra.mxu0 0
      %1154 = vmatprep.subr.bf16.mxu0 0
      %1155 = vmatpush1.bf16.msra.mxu0 0
      %1156 = vmatprep.subr.bf16.mxu0 0
      %1157 = vmatpush1.bf16.msra.mxu0 0
      %1158 = vmatprep.subr.bf16.mxu0 0
      %1159 = vmatpush1.bf16.msra.mxu0 0
      %1160 = vmatprep.subr.bf16.mxu0 0
      %1161 = vmatpush1.bf16.msra.mxu0 0
      %1162 = vmatprep.subr.bf16.mxu0 0
      %1163 = vmatpush1.bf16.msra.mxu0 0
      %1164 = vmatprep.mubr.bf16.mxu0 0
      %1165 = vmatmul.mubr.bf16.gmra.mrb[0].mxu0 %v1127
      %v1166 = vpop.f32.mrb[0].mxu0
      %v1167 = vadd.f32 0.0, %v1166
      %v1168 = vpop.f32.mrb[0].mxu0
      %v1169 = vpop.f32.mrb[0].mxu0
      %v1170 = vpop.f32.mrb[0].mxu0
      %1171 = vdwg.mxu0
      %v1172 = vpack.c.bf16 %v1067, %v1067
      %v1173 = vpack.c.bf16 %v1167, %v1167
      %1175 = vrot.lane.b32.xlu0 %v1172, 112
      %v1176 = vpop.permute.xlu0 %1175
      %v1178 = vsel %vm717, %v1176, 0
      %v1181 = vsel %vm786, %v1173, 0
      %1183 = vmatprep.subr.bf16.mxu0 0
      %1184 = vmatpush1.bf16.msra.mxu0 %v1181
      %1185 = vmatprep.subr.bf16.mxu0 0
      %1186 = vmatpush1.bf16.msra.mxu0 0
      %1187 = vmatprep.subr.bf16.mxu0 0
      %1188 = vmatpush1.bf16.msra.mxu0 0
      %1189 = vmatprep.subr.bf16.mxu0 0
      %1190 = vmatpush1.bf16.msra.mxu0 0
      %1191 = vmatprep.subr.bf16.mxu0 0
      %1192 = vmatpush1.bf16.msra.mxu0 0
      %1193 = vmatprep.subr.bf16.mxu0 0
      %1194 = vmatpush1.bf16.msra.mxu0 0
      %1195 = vmatprep.subr.bf16.mxu0 0
      %1196 = vmatpush1.bf16.msra.mxu0 0
      %1197 = vmatprep.subr.bf16.mxu0 0
      %1198 = vmatpush1.bf16.msra.mxu0 0
      %1199 = vmatprep.subr.bf16.mxu0 0
      %1200 = vmatpush1.bf16.msra.mxu0 0
      %1201 = vmatprep.subr.bf16.mxu0 0
      %1202 = vmatpush1.bf16.msra.mxu0 0
      %1203 = vmatprep.subr.bf16.mxu0 0
      %1204 = vmatpush1.bf16.msra.mxu0 0
      %1205 = vmatprep.subr.bf16.mxu0 0
      %1206 = vmatpush1.bf16.msra.mxu0 0
      %1207 = vmatprep.subr.bf16.mxu0 0
      %1208 = vmatpush1.bf16.msra.mxu0 0
      %1209 = vmatprep.subr.bf16.mxu0 0
      %1210 = vmatpush1.bf16.msra.mxu0 0
      %1211 = vmatprep.subr.bf16.mxu0 0
      %1212 = vmatpush1.bf16.msra.mxu0 0
      %1213 = vmatprep.subr.bf16.mxu0 0
      %1214 = vmatpush1.bf16.msra.mxu0 0
      %1215 = vmatprep.mubr.bf16.mxu0 0
      %1216 = vmatmul.mubr.bf16.gmra.mrb[0].mxu0 %v1178
      %v1217 = vpop.f32.mrb[0].mxu0
      %v1218 = vadd.f32 0.0, %v1217
      %v1219 = vpop.f32.mrb[0].mxu0
      %v1220 = vpop.f32.mrb[0].mxu0
      %v1221 = vpop.f32.mrb[0].mxu0
      %1222 = vdwg.mxu0
      %vm1223 = vcmask 261312
      %v1224 = vsel %vm1223, %v600, -inf
      %1225 = vmax.xlane.f32.xlu0 %v1224
      %v1226 = vpop.xlane.xlu0 %1225
      %v1227 = vsub.f32 %v600, %v1226
      %v1228 = vmul.f32 %v1227, 1.442695
      %v1229 = vpow.pop %v1228
      %1231 = vrot.lane.b32.xlu0 %v1229, 104
      %v1232 = vpop.permute.xlu0 %1231
      %v1234 = vsel %vm717, %v1232, 0.0
      %1235 = vadd.xlane.f32.xlu0 %v1234
      %v1236 = vpop.xlane.xlu0 %1235
      %v1237 = vrcp.pop %v1236
      %v1238 = vmul.f32 %v1229, %v1237
      %v1239 = vmul.f32 %v1238, 0.35355338
      %v1240 = vsel %vm1223, %v656, -inf
      %v1241 = vrot.slane %v1240, 4
      %v1242 = vmax.f32 %v1240, %v1241
      %v1243 = vrot.slane %v1242, 2
      %v1244 = vmax.f32 %v1242, %v1243
      %v1245 = vrot.slane %v1244, 1
      %v1246 = vmax.f32 %v1244, %v1245
      %v1247 = vsub.f32 %v656, %v1246
      %v1248 = vmul.f32 %v1247, 1.442695
      %v1249 = vpow.pop %v1248
      %v1250 = vsel %vm1223, %v1249, 0.0
      %v1251 = vrot.slane %v1250, 4
      %v1252 = vadd.f32 %v1250, %v1251
      %v1253 = vrot.slane %v1252, 2
      %v1254 = vadd.f32 %v1252, %v1253
      %v1255 = vrot.slane %v1254, 1
      %v1256 = vadd.f32 %v1254, %v1255
      %v1257 = vrcp.pop %v1256
      %v1258 = vmul.f32 %v1249, %v1257
      %1260 = vrot.lane.b32.xlu0 %v1258, 104
      %v1261 = vpop.permute.xlu0 %1260
      %1263 = vxpose.xlu0.b32.start [1/16] %v1261, 128
      %1264 = vxpose.xlu0.b32.cont [2/16] 0.0, 128
      %1265 = vxpose.xlu0.b32.cont [3/16] 0.0, 128
      %1266 = vxpose.xlu0.b32.cont [4/16] 0.0, 128
      %1267 = vxpose.xlu0.b32.cont [5/16] 0.0, 128
      %1268 = vxpose.xlu0.b32.cont [6/16] 0.0, 128
      %1269 = vxpose.xlu0.b32.cont [7/16] 0.0, 128
      %1270 = vxpose.xlu0.b32.cont [8/16] 0.0, 128
      %1271 = vxpose.xlu0.b32.cont [9/16] 0.0, 128
      %1272 = vxpose.xlu0.b32.cont [10/16] 0.0, 128
      %1273 = vxpose.xlu0.b32.cont [11/16] 0.0, 128
      %1274 = vxpose.xlu0.b32.cont [12/16] 0.0, 128
      %1275 = vxpose.xlu0.b32.cont [13/16] 0.0, 128
      %1276 = vxpose.xlu0.b32.cont [14/16] 0.0, 128
      %1277 = vxpose.xlu0.b32.cont [15/16] 0.0, 128
      %1278 = vxpose.xlu0.b32.end [16/16] 0.0, 128
      %v1279 = vpop.trf.xlu0
      %v1280 = vpop.trf.xlu0
      %v1281 = vpop.trf.xlu0
      %v1282 = vpop.trf.xlu0
      %v1283 = vpop.trf.xlu0
      %v1284 = vpop.trf.xlu0
      %v1285 = vpop.trf.xlu0
      %v1286 = vpop.trf.xlu0
      %v1287 = vpop.trf.xlu0
      %v1288 = vpop.trf.xlu0
      %v1289 = vpop.trf.xlu0
      %v1290 = vpop.trf.xlu0
      %v1291 = vpop.trf.xlu0
      %v1292 = vpop.trf.xlu0
      %v1293 = vpop.trf.xlu0
      %v1294 = vpop.trf.xlu0
      %v1295 = vpack.c.bf16 %v1279, %v1279
      %1296 = vrot.lane.b32.xlu0 %v782, 104
      %v1297 = vpop.permute.xlu0 %1296
      %v1299 = vsel %vm717, %v1295, 0
      %v1302 = vsel %vm786, %v1297, 0
      %1304 = vmatprep.subr.bf16.mxu0 0
      %1305 = vmatpush1.bf16.msra.mxu0 %v1302
      %1306 = vmatprep.subr.bf16.mxu0 0
      %1307 = vmatpush1.bf16.msra.mxu0 0
      %1308 = vmatprep.subr.bf16.mxu0 0
      %1309 = vmatpush1.bf16.msra.mxu0 0
      %1310 = vmatprep.subr.bf16.mxu0 0
      %1311 = vmatpush1.bf16.msra.mxu0 0
      %1312 = vmatprep.subr.bf16.mxu0 0
      %1313 = vmatpush1.bf16.msra.mxu0 0
      %1314 = vmatprep.subr.bf16.mxu0 0
      %1315 = vmatpush1.bf16.msra.mxu0 0
      %1316 = vmatprep.subr.bf16.mxu0 0
      %1317 = vmatpush1.bf16.msra.mxu0 0
      %1318 = vmatprep.subr.bf16.mxu0 0
      %1319 = vmatpush1.bf16.msra.mxu0 0
      %1320 = vmatprep.subr.bf16.mxu0 0
      %1321 = vmatpush1.bf16.msra.mxu0 0
      %1322 = vmatprep.subr.bf16.mxu0 0
      %1323 = vmatpush1.bf16.msra.mxu0 0
      %1324 = vmatprep.subr.bf16.mxu0 0
      %1325 = vmatpush1.bf16.msra.mxu0 0
      %1326 = vmatprep.subr.bf16.mxu0 0
      %1327 = vmatpush1.bf16.msra.mxu0 0
      %1328 = vmatprep.subr.bf16.mxu0 0
      %1329 = vmatpush1.bf16.msra.mxu0 0
      %1330 = vmatprep.subr.bf16.mxu0 0
      %1331 = vmatpush1.bf16.msra.mxu0 0
      %1332 = vmatprep.subr.bf16.mxu0 0
      %1333 = vmatpush1.bf16.msra.mxu0 0
      %1334 = vmatprep.subr.bf16.mxu0 0
      %1335 = vmatpush1.bf16.msra.mxu0 0
      %1336 = vmatprep.mubr.bf16.mxu0 0
      %1337 = vmatmul.mubr.bf16.gmra.mrb[0].mxu0 %v1299
      %v1338 = vpop.f32.mrb[0].mxu0
      %v1339 = vadd.f32 0.0, %v1338
      %v1340 = vpop.f32.mrb[0].mxu0
      %v1341 = vpop.f32.mrb[0].mxu0
      %v1342 = vpop.f32.mrb[0].mxu0
      %1343 = vdwg.mxu0
      %v1344 = vpack.c.bf16 %v1239, %v1239
      %v1345 = vpack.c.bf16 %v1339, %v1339
      %1347 = vrot.lane.b32.xlu0 %v1344, 104
      %v1348 = vpop.permute.xlu0 %1347
      %v1350 = vsel %vm717, %v1348, 0
      %v1353 = vsel %vm786, %v1345, 0
      %1355 = vmatprep.subr.bf16.mxu0 0
      %1356 = vmatpush1.bf16.msra.mxu0 %v1353
      %1357 = vmatprep.subr.bf16.mxu0 0
      %1358 = vmatpush1.bf16.msra.mxu0 0
      %1359 = vmatprep.subr.bf16.mxu0 0
      %1360 = vmatpush1.bf16.msra.mxu0 0
      %1361 = vmatprep.subr.bf16.mxu0 0
      %1362 = vmatpush1.bf16.msra.mxu0 0
      %1363 = vmatprep.subr.bf16.mxu0 0
      %1364 = vmatpush1.bf16.msra.mxu0 0
      %1365 = vmatprep.subr.bf16.mxu0 0
      %1366 = vmatpush1.bf16.msra.mxu0 0
      %1367 = vmatprep.subr.bf16.mxu0 0
      %1368 = vmatpush1.bf16.msra.mxu0 0
      %1369 = vmatprep.subr.bf16.mxu0 0
      %1370 = vmatpush1.bf16.msra.mxu0 0
      %1371 = vmatprep.subr.bf16.mxu0 0
      %1372 = vmatpush1.bf16.msra.mxu0 0
      %1373 = vmatprep.subr.bf16.mxu0 0
      %1374 = vmatpush1.bf16.msra.mxu0 0
      %1375 = vmatprep.subr.bf16.mxu0 0
      %1376 = vmatpush1.bf16.msra.mxu0 0
      %1377 = vmatprep.subr.bf16.mxu0 0
      %1378 = vmatpush1.bf16.msra.mxu0 0
      %1379 = vmatprep.subr.bf16.mxu0 0
      %1380 = vmatpush1.bf16.msra.mxu0 0
      %1381 = vmatprep.subr.bf16.mxu0 0
      %1382 = vmatpush1.bf16.msra.mxu0 0
      %1383 = vmatprep.subr.bf16.mxu0 0
      %1384 = vmatpush1.bf16.msra.mxu0 0
      %1385 = vmatprep.subr.bf16.mxu0 0
      %1386 = vmatpush1.bf16.msra.mxu0 0
      %1387 = vmatprep.mubr.bf16.mxu0 0
      %1388 = vmatmul.mubr.bf16.gmra.mrb[0].mxu0 %v1350
      %v1389 = vpop.f32.mrb[0].mxu0
      %v1390 = vadd.f32 0.0, %v1389
      %v1391 = vpop.f32.mrb[0].mxu0
      %v1392 = vpop.f32.mrb[0].mxu0
      %v1393 = vpop.f32.mrb[0].mxu0
      %1394 = vdwg.mxu0
      %1396 = vrot.lane.b32.xlu0 %v1046, 8
      %v1397 = vpop.permute.xlu0 %1396
      %1400 = vrot.lane.b32.xlu0 %v1218, 16
      %v1401 = vpop.permute.xlu0 %1400
      %1404 = vrot.lane.b32.xlu0 %v1390, 24
      %v1405 = vpop.permute.xlu0 %1404
      %v1407 = vsel %vm717, %v873, %v1397
      %vm1408 = vcmask 130048
      %v1409 = vsel %vm1408, %v1407, %v1401
      %vm1410 = vcmask 195584
      %v1411 = vsel %vm1410, %v1409, %v1405
      %v1412 = vpack.c.bf16 %v1411, %v1411
      %v1413 = vld [vmem:[%s7] sm:$0xf]
      %v1414 = vld [vmem:[%s7 + $0x4] sm:$0xf]
      %v1415 = vld [vmem:[%s7 + $0x8] sm:$0xf]
      %v1416 = vld [vmem:[%s7 + $0xc] sm:$0xf]
      %v1421 = vunpack.c.l.b16 %v1413
      %v1422 = vunpack.c.l.b16 %v1414
      %v1423 = vunpack.c.l.b16 %v1415
      %v1424 = vunpack.c.l.b16 %v1416
      %v1425 = vpack.c.b16 %v1422, %v1421
      %v1426 = vpack.c.b16 %v1424, %v1423
      %v1430 = vsel %vm516, %v1412, 0
      %1432 = vmatprep.subr.bf16.mxu0 0
      %1433 = vmatpush1.bf16.msra.mxu0 %v1425
      %1434 = vmatprep.subr.bf16.mxu0 0
      %1435 = vmatpush1.bf16.msra.mxu0 %v1426
      %1436 = vmatprep.subr.bf16.mxu0 0
      %1437 = vmatpush1.bf16.msra.mxu0 0
      %1438 = vmatprep.subr.bf16.mxu0 0
      %1439 = vmatpush1.bf16.msra.mxu0 0
      %1440 = vmatprep.subr.bf16.mxu0 0
      %1441 = vmatpush1.bf16.msra.mxu0 0
      %1442 = vmatprep.subr.bf16.mxu0 0
      %1443 = vmatpush1.bf16.msra.mxu0 0
      %1444 = vmatprep.subr.bf16.mxu0 0
      %1445 = vmatpush1.bf16.msra.mxu0 0
      %1446 = vmatprep.subr.bf16.mxu0 0
      %1447 = vmatpush1.bf16.msra.mxu0 0
      %1448 = vmatprep.subr.bf16.mxu0 0
      %1449 = vmatpush1.bf16.msra.mxu0 0
      %1450 = vmatprep.subr.bf16.mxu0 0
      %1451 = vmatpush1.bf16.msra.mxu0 0
      %1452 = vmatprep.subr.bf16.mxu0 0
      %1453 = vmatpush1.bf16.msra.mxu0 0
      %1454 = vmatprep.subr.bf16.mxu0 0
      %1455 = vmatpush1.bf16.msra.mxu0 0
      %1456 = vmatprep.subr.bf16.mxu0 0
      %1457 = vmatpush1.bf16.msra.mxu0 0
      %1458 = vmatprep.subr.bf16.mxu0 0
      %1459 = vmatpush1.bf16.msra.mxu0 0
      %1460 = vmatprep.subr.bf16.mxu0 0
      %1461 = vmatpush1.bf16.msra.mxu0 0
      %1462 = vmatprep.subr.bf16.mxu0 0
      %1463 = vmatpush1.bf16.msra.mxu0 0
      %1464 = vmatprep.mubr.bf16.mxu0 0
      %1465 = vmatmul.mubr.bf16.gmra.mrb[0].mxu0 %v1430
      %v1466 = vpop.f32.mrb[0].mxu0
      %v1467 = vadd.f32 0.0, %v1466
      %v1468 = vpop.f32.mrb[0].mxu0
      %v1469 = vpop.f32.mrb[0].mxu0
      %v1470 = vpop.f32.mrb[0].mxu0
      %1471 = vdwg.mxu0
      %v1472 = vadd.f32 %v513, %v1467
      %v1473 = vld [vmem:[%s8] sm:$0x1]
      %v1475 = vlaneseq
      %v1476 = vshrl.u32 %v1475, 7
      %v1477 = vsub.s32 0, %v1476
      %v1478 = vrot.slane %v1473, %v1477
      %v1480 = vadd.f32 %v1472, %v1478
      %v1481 = vld [vmem:[%s9] sm:$0x1]
      %v1482 = vld [vmem:[%s10] sm:$0x1]
      %v1483 = vsel %vm516, %v1480, 0.0
      %1484 = vadd.xlane.f32.xlu0 %v1483
      %v1485 = vpop.xlane.xlu0 %1484
      %v1486 = vmul.f32 %v1485, %v520
      %v1487 = vsub.f32 %v1480, %v1486
      %v1488 = vmul.f32 %v1487, %v1487
      %v1489 = vsel %vm516, %v1488, 0.0
      %1490 = vadd.xlane.f32.xlu0 %v1489
      %v1491 = vpop.xlane.xlu0 %1490
      %v1492 = vmul.f32 %v1491, %v520
      %v1493 = vadd.f32 %v1492, 1e-05
      %v1494 = vrsqrt.pop %v1493
      %v1495 = vmul.f32 %v1487, %v1494
      %v1497 = vlaneseq
      %v1498 = vshrl.u32 %v1497, 7
      %v1499 = vsub.s32 0, %v1498
      %v1500 = vrot.slane %v1481, %v1499
      %v1502 = vmul.f32 %v1495, %v1500
      %v1504 = vlaneseq
      %v1505 = vshrl.u32 %v1504, 7
      %v1506 = vsub.s32 0, %v1505
      %v1507 = vrot.slane %v1482, %v1506
      %v1509 = vadd.f32 %v1502, %v1507
      %v1510 = vpack.c.bf16 %v1509, %v1509
      %v1511 = vld [vmem:[%s11] sm:$0xf]
      %v1512 = vld [vmem:[%s11 + $0x4] sm:$0xf]
      %v1513 = vld [vmem:[%s11 + $0x8] sm:$0xf]
      %v1514 = vld [vmem:[%s11 + $0xc] sm:$0xf]
      %v1515 = vld [vmem:[%s12] sm:$0x1]
      %v1517 = vlaneseq
      %v1518 = vshrl.u32 %v1517, 7
      %v1519 = vsub.s32 0, %v1518
      %v1520 = vrot.slane %v1515, %v1519
      %v1526 = vunpack.c.l.b16 %v1511
      %v1527 = vunpack.c.l.b16 %v1512
      %v1528 = vunpack.c.l.b16 %v1513
      %v1529 = vunpack.c.l.b16 %v1514
      %v1530 = vpack.c.b16 %v1527, %v1526
      %v1531 = vpack.c.b16 %v1529, %v1528
      %v1535 = vsel %vm516, %v1510, 0
      %1537 = vmatprep.subr.bf16.mxu0 0
      %1538 = vmatpush1.bf16.msra.mxu0 %v1530
      %1539 = vmatprep.subr.bf16.mxu0 0
      %1540 = vmatpush1.bf16.msra.mxu0 %v1531
      %1541 = vmatprep.subr.bf16.mxu0 0
      %1542 = vmatpush1.bf16.msra.mxu0 0
      %1543 = vmatprep.subr.bf16.mxu0 0
      %1544 = vmatpush1.bf16.msra.mxu0 0
      %1545 = vmatprep.subr.bf16.mxu0 0
      %1546 = vmatpush1.bf16.msra.mxu0 0
      %1547 = vmatprep.subr.bf16.mxu0 0
      %1548 = vmatpush1.bf16.msra.mxu0 0
      %1549 = vmatprep.subr.bf16.mxu0 0
      %1550 = vmatpush1.bf16.msra.mxu0 0
      %1551 = vmatprep.subr.bf16.mxu0 0
      %1552 = vmatpush1.bf16.msra.mxu0 0
      %1553 = vmatprep.subr.bf16.mxu0 0
      %1554 = vmatpush1.bf16.msra.mxu0 0
      %1555 = vmatprep.subr.bf16.mxu0 0
      %1556 = vmatpush1.bf16.msra.mxu0 0
      %1557 = vmatprep.subr.bf16.mxu0 0
      %1558 = vmatpush1.bf16.msra.mxu0 0
      %1559 = vmatprep.subr.bf16.mxu0 0
      %1560 = vmatpush1.bf16.msra.mxu0 0
      %1561 = vmatprep.subr.bf16.mxu0 0
      %1562 = vmatpush1.bf16.msra.mxu0 0
      %1563 = vmatprep.subr.bf16.mxu0 0
      %1564 = vmatpush1.bf16.msra.mxu0 0
      %1565 = vmatprep.subr.bf16.mxu0 0
      %1566 = vmatpush1.bf16.msra.mxu0 0
      %1567 = vmatprep.subr.bf16.mxu0 0
      %1568 = vmatpush1.bf16.msra.mxu0 0
      %1569 = vmatprep.mubr.bf16.mxu0 0
      %1570 = vmatmul.mubr.bf16.gmra.mrb[0].mxu0 %v1535
      %v1571 = vpop.f32.mrb[0].mxu0
      %v1572 = vadd.f32 %v1520, %v1571
      %v1573 = vpop.f32.mrb[0].mxu0
      %v1574 = vpop.f32.mrb[0].mxu0
      %v1575 = vpop.f32.mrb[0].mxu0
      %1576 = vdwg.mxu0
      %v1577 = vmul.f32 %v1572, %v1572
      %v1578 = vmul.f32 %v1572, %v1577
      %v1579 = vmul.f32 %v1578, 0.044715
      %v1580 = vadd.f32 %v1572, %v1579
      %v1581 = vmul.f32 %v1580, 0.7978846
      %v1582 = vtanh.pop %v1581
      %v1583 = vadd.f32 %v1582, 1.0
      %v1584 = vmul.f32 %v1583, 0.5
      %v1585 = vmul.f32 %v1572, %v1584
      %v1586 = vpack.c.bf16 %v1585, %v1585
      %v1587 = vld [vmem:[%s13] sm:$0xf]
      %v1588 = vld [vmem:[%s13 + $0x4] sm:$0xf]
      %v1589 = vld [vmem:[%s13 + $0x8] sm:$0xf]
      %v1590 = vld [vmem:[%s13 + $0xc] sm:$0xf]
      %v1591 = vld [vmem:[%s13 + $0x10] sm:$0xf]
      %v1592 = vld [vmem:[%s13 + $0x14] sm:$0xf]
      %v1593 = vld [vmem:[%s13 + $0x18] sm:$0xf]
      %v1594 = vld [vmem:[%s13 + $0x1c] sm:$0xf]
      %v1595 = vld [vmem:[%s13 + $0x20] sm:$0xf]
      %v1596 = vld [vmem:[%s13 + $0x24] sm:$0xf]
      %v1597 = vld [vmem:[%s13 + $0x28] sm:$0xf]
      %v1598 = vld [vmem:[%s13 + $0x2c] sm:$0xf]
      %v1599 = vld [vmem:[%s13 + $0x30] sm:$0xf]
      %v1600 = vld [vmem:[%s13 + $0x34] sm:$0xf]
      %v1601 = vld [vmem:[%s13 + $0x38] sm:$0xf]
      %v1602 = vld [vmem:[%s13 + $0x3c] sm:$0xf]
      %v1619 = vunpack.c.l.b16 %v1587
      %v1620 = vunpack.c.l.b16 %v1588
      %v1621 = vunpack.c.l.b16 %v1589
      %v1622 = vunpack.c.l.b16 %v1590
      %v1623 = vunpack.c.l.b16 %v1591
      %v1624 = vunpack.c.l.b16 %v1592
      %v1625 = vunpack.c.l.b16 %v1593
      %v1626 = vunpack.c.l.b16 %v1594
      %v1627 = vunpack.c.l.b16 %v1595
      %v1628 = vunpack.c.l.b16 %v1596
      %v1629 = vunpack.c.l.b16 %v1597
      %v1630 = vunpack.c.l.b16 %v1598
      %v1631 = vunpack.c.l.b16 %v1599
      %v1632 = vunpack.c.l.b16 %v1600
      %v1633 = vunpack.c.l.b16 %v1601
      %v1634 = vunpack.c.l.b16 %v1602
      %v1635 = vpack.c.b16 %v1620, %v1619
      %v1636 = vpack.c.b16 %v1622, %v1621
      %v1637 = vpack.c.b16 %v1624, %v1623
      %v1638 = vpack.c.b16 %v1626, %v1625
      %v1639 = vpack.c.b16 %v1628, %v1627
      %v1640 = vpack.c.b16 %v1630, %v1629
      %v1641 = vpack.c.b16 %v1632, %v1631
      %v1642 = vpack.c.b16 %v1634, %v1633
      %1651 = vmatprep.subr.bf16.mxu0 0
      %1652 = vmatpush1.bf16.msra.mxu0 %v1635
      %1653 = vmatprep.subr.bf16.mxu0 0
      %1654 = vmatpush1.bf16.msra.mxu0 %v1636
      %1655 = vmatprep.subr.bf16.mxu0 0
      %1656 = vmatpush1.bf16.msra.mxu0 %v1637
      %1657 = vmatprep.subr.bf16.mxu0 0
      %1658 = vmatpush1.bf16.msra.mxu0 %v1638
      %1659 = vmatprep.subr.bf16.mxu0 0
      %1660 = vmatpush1.bf16.msra.mxu0 %v1639
      %1661 = vmatprep.subr.bf16.mxu0 0
      %1662 = vmatpush1.bf16.msra.mxu0 %v1640
      %1663 = vmatprep.subr.bf16.mxu0 0
      %1664 = vmatpush1.bf16.msra.mxu0 %v1641
      %1665 = vmatprep.subr.bf16.mxu0 0
      %1666 = vmatpush1.bf16.msra.mxu0 %v1642
      %1667 = vmatprep.subr.bf16.mxu0 0
      %1668 = vmatpush1.bf16.msra.mxu0 0
      %1669 = vmatprep.subr.bf16.mxu0 0
      %1670 = vmatpush1.bf16.msra.mxu0 0
      %1671 = vmatprep.subr.bf16.mxu0 0
      %1672 = vmatpush1.bf16.msra.mxu0 0
      %1673 = vmatprep.subr.bf16.mxu0 0
      %1674 = vmatpush1.bf16.msra.mxu0 0
      %1675 = vmatprep.subr.bf16.mxu0 0
      %1676 = vmatpush1.bf16.msra.mxu0 0
      %1677 = vmatprep.subr.bf16.mxu0 0
      %1678 = vmatpush1.bf16.msra.mxu0 0
      %1679 = vmatprep.subr.bf16.mxu0 0
      %1680 = vmatpush1.bf16.msra.mxu0 0
      %1681 = vmatprep.subr.bf16.mxu0 0
      %1682 = vmatpush1.bf16.msra.mxu0 0
      %1683 = vmatprep.mubr.bf16.mxu0 0
      %1684 = vmatmul.mubr.bf16.gmra.mrb[0].mxu0 %v1586
      %v1685 = vpop.f32.mrb[0].mxu0
      %v1686 = vadd.f32 0.0, %v1685
      %v1687 = vpop.f32.mrb[0].mxu0
      %v1688 = vpop.f32.mrb[0].mxu0
      %v1689 = vpop.f32.mrb[0].mxu0
      %1690 = vdwg.mxu0
      %v1691 = vadd.f32 %v1480, %v1686
      %v1692 = vld [vmem:[%s14] sm:$0x1]
      %v1694 = vlaneseq
      %v1695 = vshrl.u32 %v1694, 7
      %v1696 = vsub.s32 0, %v1695
      %v1697 = vrot.slane %v1692, %v1696
      %v1699 = vadd.f32 %v1691, %v1697
      %1700 = vst.msk [vmem:[%s503] sm:$0xff] %vm516, %v1699
      %p1701 = scmp.lt.s32.totalorder %s26, 1
      %s1702 = scalar_select %p1701, %s26, 1
      %s1703 = smul.addr %s1702, 8
      %s1704 = scalar_lea.vmem %s15, %s1703
      // Predicated region
      $region81: #{run.9} parent=79 // pred_check
        %p1705 = pneg %p369
      $region82: #{run.9} parent=79 // pred_check_branch
        %1707 = sbr.rel (%p1705) target = $region84
      $region83: #{run.9} parent=79 // pred_region
        _
      $region84: #{run.9} parent=79 // pred_fallthru
        _
    $region80: #{run.9} parent=5 // pred_fallthru
      _
    %p1708 = scmp.le.s32.totalorder 2, %s21
    // Predicated region
    $region85: #{run.9} parent=5 // pred_check
      %p1709 = pneg %p1708
    $region86: #{run.9} parent=5 // pred_check_branch
      %1711 = sbr.rel (%p1709) target = $region88
    $region87: #{run.9} parent=5 // pred_region
      %s1712 = ssub.s32 %s21, 2
      // Predicated region
      $region89: #{run.9} parent=87 // pred_check
        %p1713 = pneg %p375
      $region90: #{run.9} parent=87 // pred_check_branch
        %1715 = sbr.rel (%p1713) target = $region92
      $region91: #{run.9} parent=87 // pred_region
        %p1716 = scmp.lt.s32.totalorder %s27, 1
        %s1717 = scalar_select %p1716, %s27, 1
        %s1718 = smul.addr %s1717, 8
        %s1719 = scalar_lea.vmem %s15, %s1718
      $region92: #{run.9} parent=87 // pred_fallthru
        _
    $region88: #{run.9} parent=5 // pred_fallthru
      _
  $region6: #{run.9} parent=0 // loop_footer
    %s25 = sadd.s32 1, %s21
  $region7: #{run.9} parent=0 // loop_footer_branch
    %20 = sbr.rel target = $region3
  $region8: #{run.9} parent=0 // loop_exit
    _

// kernel: run.10
$region0: #{run.10}
  #allocation0 [shape = 'u32[]', space=smem, size = 0x4, offset = 0x4, fixed_abs, tag = 'smem constant byte address 0x4 - core index']
  #allocation1 [shape = 'u32[144,128]{1,0:T(1,128)}', space=vmem, size = 0x12000, scoped, tag = 'internal scratch']
  %s0 = inlined_call_operand.vmem [shape: f32[2,8,32], index: 0, kind: input, shape index: {}]
  %s1 = inlined_call_operand.vmem [shape: f32[2,8,32], index: 1, kind: input, shape index: {}]
  %s2 = inlined_call_operand.vmem [shape: f32[1,32], index: 2, kind: input, shape index: {}, may-alias: {2,9}]
  %s3 = inlined_call_operand.vmem [shape: f32[1,32], index: 3, kind: input, shape index: {}, may-alias: {3,8,10,14}]
  %s4 = inlined_call_operand.vmem [shape: bf16[32,32], index: 4, kind: input, shape index: {}]
  %s5 = inlined_call_operand.vmem [shape: bf16[32,32], index: 5, kind: input, shape index: {}]
  %s6 = inlined_call_operand.vmem [shape: bf16[32,32], index: 6, kind: input, shape index: {}]
  %s7 = inlined_call_operand.vmem [shape: bf16[32,32], index: 7, kind: input, shape index: {}]
  %s8 = inlined_call_operand.vmem [shape: f32[1,32], index: 8, kind: input, shape index: {}, may-alias: {3,8,10,14}]
  %s9 = inlined_call_operand.vmem [shape: f32[1,32], index: 9, kind: input, shape index: {}, may-alias: {2,9}]
  %s10 = inlined_call_operand.vmem [shape: f32[1,32], index: 10, kind: input, shape index: {}, may-alias: {3,8,10,14}]
  %s11 = inlined_call_operand.vmem [shape: bf16[32,128], index: 11, kind: input, shape index: {}]
  %s12 = inlined_call_operand.vmem [shape: f32[1,128], index: 12, kind: input, shape index: {}]
  %s13 = inlined_call_operand.vmem [shape: bf16[128,32], index: 13, kind: input, shape index: {}]
  %s14 = inlined_call_operand.vmem [shape: f32[1,32], index: 14, kind: input, shape index: {}, may-alias: {3,8,10,14}]
  %s15 = inlined_call_operand.vmem [shape: f32[2,8,32], index: 15, kind: output, shape index: {}]
  %s16 = sld [smem:[#allocation0]]
  $region93: #{run.10} parent=0
    _
  %s18 = ssub.s32 1, %s16
  %s19 = scalar_select 0, %s18, %s16
  loop: start=0, step=1, limit=4
  $region2: #{run.10} parent=0 // loop_pre_header
    _
  $region3: #{run.10} parent=0 // loop_header
    %s21 = sphi 0, %s25
    %p22 = scmp.ge.s32.totalorder %s21, 4
    %s31 = sphi 0, %s33
    %s34 = sphi 0, %s31
    %s35 = sphi 0, %s34
    %s51 = sphi 0, %s35
    %s57 = sphi 0, %s59
    %s60 = sphi 0, %s57
    %s61 = sphi 0, %s60
    %s77 = sphi 0, %s61
    %s81 = sphi 0, %s81
    %s83 = sphi 0, %s81
    %s84 = sphi 0, %s83
    %s98 = sphi 0, %s84
    %s102 = sphi 0, %s102
    %s104 = sphi 0, %s102
    %s105 = sphi 0, %s104
    %s119 = sphi 0, %s105
    %s123 = sphi 0, %s123
    %s125 = sphi 0, %s123
    %s126 = sphi 0, %s125
    %s140 = sphi 0, %s126
    %s144 = sphi 0, %s144
    %s146 = sphi 0, %s144
    %s147 = sphi 0, %s146
    %s161 = sphi 0, %s147
    %s165 = sphi 0, %s165
    %s167 = sphi 0, %s165
    %s168 = sphi 0, %s167
    %s182 = sphi 0, %s168
    %s186 = sphi 0, %s186
    %s188 = sphi 0, %s186
    %s189 = sphi 0, %s188
    %s203 = sphi 0, %s189
    %s207 = sphi 0, %s207
    %s209 = sphi 0, %s207
    %s210 = sphi 0, %s209
    %s224 = sphi 0, %s210
    %s228 = sphi 0, %s228
    %s230 = sphi 0, %s228
    %s231 = sphi 0, %s230
    %s245 = sphi 0, %s231
    %s249 = sphi 0, %s249
    %s251 = sphi 0, %s249
    %s252 = sphi 0, %s251
    %s266 = sphi 0, %s252
    %s270 = sphi 0, %s270
    %s272 = sphi 0, %s270
    %s273 = sphi 0, %s272
    %s287 = sphi 0, %s273
    %s291 = sphi 0, %s291
    %s293 = sphi 0, %s291
    %s294 = sphi 0, %s293
    %s308 = sphi 0, %s294
    %s312 = sphi 0, %s312
    %s314 = sphi 0, %s312
    %s315 = sphi 0, %s314
    %s329 = sphi 0, %s315
    %s333 = sphi 0, %s333
    %s335 = sphi 0, %s333
    %s336 = sphi 0, %s335
    %s350 = sphi 0, %s336
    %s356 = sphi 0, %s358
    %s359 = sphi 0, %s356
    %s360 = sphi 0, %s359
    %s376 = sphi 0, %s360
  $region4: #{run.10} parent=0 // loop_header_branch
    %24 = sbr.rel (%p22) target = $region8
  $region5: #{run.10} parent=0 // loop_body
    %s26 = ssub.s32 %s21, 1
    %s27 = ssub.s32 %s21, 2
    %s28 = sadd.s32 %s21, 1
    %s29 = ssub.s32 %s21, %s28
    %p30 = scmp.eq.s32.totalorder %s29, 0
    %s32 = sadd.s32 %s31, 1
    %s33 = scalar_select %p30, %s31, %s32
    %p36 = pneg %p30
    %p37 = scmp.eq.s32.totalorder %s21, 1
    %p38 = por %p36, %p37
    %p39 = scmp.ne.s32.totalorder %s31, %s34
    %p40 = scmp.eq.s32.totalorder %s21, 0
    %p41 = por %p39, %p40
    %p42 = scmp.ne.s32.totalorder %s31, %s34
    %p43 = scmp.eq.s32.totalorder %s26, 1
    %p44 = por %p42, %p43
    %p45 = scmp.ne.s32.totalorder %s34, %s35
    %p46 = scmp.eq.s32.totalorder %s26, 0
    %p47 = por %p45, %p46
    %p48 = scmp.ne.s32.totalorder %s34, %s35
    %p49 = scmp.eq.s32.totalorder %s27, 1
    %p50 = por %p48, %p49
    %p52 = scmp.ne.s32.totalorder %s35, %s51
    %p53 = scmp.eq.s32.totalorder %s27, 0
    %p54 = por %p52, %p53
    %s55 = ssub.s32 %s21, %s28
    %p56 = scmp.eq.s32.totalorder %s55, 0
    %s58 = sadd.s32 %s57, 1
    %s59 = scalar_select %p56, %s57, %s58
    %p62 = pneg %p56
    %p63 = scmp.eq.s32.totalorder %s21, 1
    %p64 = por %p62, %p63
    %p65 = scmp.ne.s32.totalorder %s57, %s60
    %p66 = scmp.eq.s32.totalorder %s21, 0
    %p67 = por %p65, %p66
    %p68 = scmp.ne.s32.totalorder %s57, %s60
    %p69 = scmp.eq.s32.totalorder %s26, 1
    %p70 = por %p68, %p69
    %p71 = scmp.ne.s32.totalorder %s60, %s61
    %p72 = scmp.eq.s32.totalorder %s26, 0
    %p73 = por %p71, %p72
    %p74 = scmp.ne.s32.totalorder %s60, %s61
    %p75 = scmp.eq.s32.totalorder %s27, 1
    %p76 = por %p74, %p75
    %p78 = scmp.ne.s32.totalorder %s61, %s77
    %p79 = scmp.eq.s32.totalorder %s27, 0
    %p80 = por %p78, %p79
    %s82 = sadd.s32 %s81, 1
    %p85 = scmp.eq.s32.totalorder %s21, 1
    %p86 = scmp.ne.s32.totalorder %s81, %s83
    %p87 = scmp.eq.s32.totalorder %s21, 0
    %p88 = por %p86, %p87
    %p89 = scmp.ne.s32.totalorder %s81, %s83
    %p90 = scmp.eq.s32.totalorder %s26, 1
    %p91 = por %p89, %p90
    %p92 = scmp.ne.s32.totalorder %s83, %s84
    %p93 = scmp.eq.s32.totalorder %s26, 0
    %p94 = por %p92, %p93
    %p95 = scmp.ne.s32.totalorder %s83, %s84
    %p96 = scmp.eq.s32.totalorder %s27, 1
    %p97 = por %p95, %p96
    %p99 = scmp.ne.s32.totalorder %s84, %s98
    %p100 = scmp.eq.s32.totalorder %s27, 0
    %p101 = por %p99, %p100
    %s103 = sadd.s32 %s102, 1
    %p106 = scmp.eq.s32.totalorder %s21, 1
    %p107 = scmp.ne.s32.totalorder %s102, %s104
    %p108 = scmp.eq.s32.totalorder %s21, 0
    %p109 = por %p107, %p108
    %p110 = scmp.ne.s32.totalorder %s102, %s104
    %p111 = scmp.eq.s32.totalorder %s26, 1
    %p112 = por %p110, %p111
    %p113 = scmp.ne.s32.totalorder %s104, %s105
    %p114 = scmp.eq.s32.totalorder %s26, 0
    %p115 = por %p113, %p114
    %p116 = scmp.ne.s32.totalorder %s104, %s105
    %p117 = scmp.eq.s32.totalorder %s27, 1
    %p118 = por %p116, %p117
    %p120 = scmp.ne.s32.totalorder %s105, %s119
    %p121 = scmp.eq.s32.totalorder %s27, 0
    %p122 = por %p120, %p121
    %s124 = sadd.s32 %s123, 1
    %p127 = scmp.eq.s32.totalorder %s21, 1
    %p128 = scmp.ne.s32.totalorder %s123, %s125
    %p129 = scmp.eq.s32.totalorder %s21, 0
    %p130 = por %p128, %p129
    %p131 = scmp.ne.s32.totalorder %s123, %s125
    %p132 = scmp.eq.s32.totalorder %s26, 1
    %p133 = por %p131, %p132
    %p134 = scmp.ne.s32.totalorder %s125, %s126
    %p135 = scmp.eq.s32.totalorder %s26, 0
    %p136 = por %p134, %p135
    %p137 = scmp.ne.s32.totalorder %s125, %s126
    %p138 = scmp.eq.s32.totalorder %s27, 1
    %p139 = por %p137, %p138
    %p141 = scmp.ne.s32.totalorder %s126, %s140
    %p142 = scmp.eq.s32.totalorder %s27, 0
    %p143 = por %p141, %p142
    %s145 = sadd.s32 %s144, 1
    %p148 = scmp.eq.s32.totalorder %s21, 1
    %p149 = scmp.ne.s32.totalorder %s144, %s146
    %p150 = scmp.eq.s32.totalorder %s21, 0
    %p151 = por %p149, %p150
    %p152 = scmp.ne.s32.totalorder %s144, %s146
    %p153 = scmp.eq.s32.totalorder %s26, 1
    %p154 = por %p152, %p153
    %p155 = scmp.ne.s32.totalorder %s146, %s147
    %p156 = scmp.eq.s32.totalorder %s26, 0
    %p157 = por %p155, %p156
    %p158 = scmp.ne.s32.totalorder %s146, %s147
    %p159 = scmp.eq.s32.totalorder %s27, 1
    %p160 = por %p158, %p159
    %p162 = scmp.ne.s32.totalorder %s147, %s161
    %p163 = scmp.eq.s32.totalorder %s27, 0
    %p164 = por %p162, %p163
    %s166 = sadd.s32 %s165, 1
    %p169 = scmp.eq.s32.totalorder %s21, 1
    %p170 = scmp.ne.s32.totalorder %s165, %s167
    %p171 = scmp.eq.s32.totalorder %s21, 0
    %p172 = por %p170, %p171
    %p173 = scmp.ne.s32.totalorder %s165, %s167
    %p174 = scmp.eq.s32.totalorder %s26, 1
    %p175 = por %p173, %p174
    %p176 = scmp.ne.s32.totalorder %s167, %s168
    %p177 = scmp.eq.s32.totalorder %s26, 0
    %p178 = por %p176, %p177
    %p179 = scmp.ne.s32.totalorder %s167, %s168
    %p180 = scmp.eq.s32.totalorder %s27, 1
    %p181 = por %p179, %p180
    %p183 = scmp.ne.s32.totalorder %s168, %s182
    %p184 = scmp.eq.s32.totalorder %s27, 0
    %p185 = por %p183, %p184
    %s187 = sadd.s32 %s186, 1
    %p190 = scmp.eq.s32.totalorder %s21, 1
    %p191 = scmp.ne.s32.totalorder %s186, %s188
    %p192 = scmp.eq.s32.totalorder %s21, 0
    %p193 = por %p191, %p192
    %p194 = scmp.ne.s32.totalorder %s186, %s188
    %p195 = scmp.eq.s32.totalorder %s26, 1
    %p196 = por %p194, %p195
    %p197 = scmp.ne.s32.totalorder %s188, %s189
    %p198 = scmp.eq.s32.totalorder %s26, 0
    %p199 = por %p197, %p198
    %p200 = scmp.ne.s32.totalorder %s188, %s189
    %p201 = scmp.eq.s32.totalorder %s27, 1
    %p202 = por %p200, %p201
    %p204 = scmp.ne.s32.totalorder %s189, %s203
    %p205 = scmp.eq.s32.totalorder %s27, 0
    %p206 = por %p204, %p205
    %s208 = sadd.s32 %s207, 1
    %p211 = scmp.eq.s32.totalorder %s21, 1
    %p212 = scmp.ne.s32.totalorder %s207, %s209
    %p213 = scmp.eq.s32.totalorder %s21, 0
    %p214 = por %p212, %p213
    %p215 = scmp.ne.s32.totalorder %s207, %s209
    %p216 = scmp.eq.s32.totalorder %s26, 1
    %p217 = por %p215, %p216
    %p218 = scmp.ne.s32.totalorder %s209, %s210
    %p219 = scmp.eq.s32.totalorder %s26, 0
    %p220 = por %p218, %p219
    %p221 = scmp.ne.s32.totalorder %s209, %s210
    %p222 = scmp.eq.s32.totalorder %s27, 1
    %p223 = por %p221, %p222
    %p225 = scmp.ne.s32.totalorder %s210, %s224
    %p226 = scmp.eq.s32.totalorder %s27, 0
    %p227 = por %p225, %p226
    %s229 = sadd.s32 %s228, 1
    %p232 = scmp.eq.s32.totalorder %s21, 1
    %p233 = scmp.ne.s32.totalorder %s228, %s230
    %p234 = scmp.eq.s32.totalorder %s21, 0
    %p235 = por %p233, %p234
    %p236 = scmp.ne.s32.totalorder %s228, %s230
    %p237 = scmp.eq.s32.totalorder %s26, 1
    %p238 = por %p236, %p237
    %p239 = scmp.ne.s32.totalorder %s230, %s231
    %p240 = scmp.eq.s32.totalorder %s26, 0
    %p241 = por %p239, %p240
    %p242 = scmp.ne.s32.totalorder %s230, %s231
    %p243 = scmp.eq.s32.totalorder %s27, 1
    %p244 = por %p242, %p243
    %p246 = scmp.ne.s32.totalorder %s231, %s245
    %p247 = scmp.eq.s32.totalorder %s27, 0
    %p248 = por %p246, %p247
    %s250 = sadd.s32 %s249, 1
    %p253 = scmp.eq.s32.totalorder %s21, 1
    %p254 = scmp.ne.s32.totalorder %s249, %s251
    %p255 = scmp.eq.s32.totalorder %s21, 0
    %p256 = por %p254, %p255
    %p257 = scmp.ne.s32.totalorder %s249, %s251
    %p258 = scmp.eq.s32.totalorder %s26, 1
    %p259 = por %p257, %p258
    %p260 = scmp.ne.s32.totalorder %s251, %s252
    %p261 = scmp.eq.s32.totalorder %s26, 0
    %p262 = por %p260, %p261
    %p263 = scmp.ne.s32.totalorder %s251, %s252
    %p264 = scmp.eq.s32.totalorder %s27, 1
    %p265 = por %p263, %p264
    %p267 = scmp.ne.s32.totalorder %s252, %s266
    %p268 = scmp.eq.s32.totalorder %s27, 0
    %p269 = por %p267, %p268
    %s271 = sadd.s32 %s270, 1
    %p274 = scmp.eq.s32.totalorder %s21, 1
    %p275 = scmp.ne.s32.totalorder %s270, %s272
    %p276 = scmp.eq.s32.totalorder %s21, 0
    %p277 = por %p275, %p276
    %p278 = scmp.ne.s32.totalorder %s270, %s272
    %p279 = scmp.eq.s32.totalorder %s26, 1
    %p280 = por %p278, %p279
    %p281 = scmp.ne.s32.totalorder %s272, %s273
    %p282 = scmp.eq.s32.totalorder %s26, 0
    %p283 = por %p281, %p282
    %p284 = scmp.ne.s32.totalorder %s272, %s273
    %p285 = scmp.eq.s32.totalorder %s27, 1
    %p286 = por %p284, %p285
    %p288 = scmp.ne.s32.totalorder %s273, %s287
    %p289 = scmp.eq.s32.totalorder %s27, 0
    %p290 = por %p288, %p289
    %s292 = sadd.s32 %s291, 1
    %p295 = scmp.eq.s32.totalorder %s21, 1
    %p296 = scmp.ne.s32.totalorder %s291, %s293
    %p297 = scmp.eq.s32.totalorder %s21, 0
    %p298 = por %p296, %p297
    %p299 = scmp.ne.s32.totalorder %s291, %s293
    %p300 = scmp.eq.s32.totalorder %s26, 1
    %p301 = por %p299, %p300
    %p302 = scmp.ne.s32.totalorder %s293, %s294
    %p303 = scmp.eq.s32.totalorder %s26, 0
    %p304 = por %p302, %p303
    %p305 = scmp.ne.s32.totalorder %s293, %s294
    %p306 = scmp.eq.s32.totalorder %s27, 1
    %p307 = por %p305, %p306
    %p309 = scmp.ne.s32.totalorder %s294, %s308
    %p310 = scmp.eq.s32.totalorder %s27, 0
    %p311 = por %p309, %p310
    %s313 = sadd.s32 %s312, 1
    %p316 = scmp.eq.s32.totalorder %s21, 1
    %p317 = scmp.ne.s32.totalorder %s312, %s314
    %p318 = scmp.eq.s32.totalorder %s21, 0
    %p319 = por %p317, %p318
    %p320 = scmp.ne.s32.totalorder %s312, %s314
    %p321 = scmp.eq.s32.totalorder %s26, 1
    %p322 = por %p320, %p321
    %p323 = scmp.ne.s32.totalorder %s314, %s315
    %p324 = scmp.eq.s32.totalorder %s26, 0
    %p325 = por %p323, %p324
    %p326 = scmp.ne.s32.totalorder %s314, %s315
    %p327 = scmp.eq.s32.totalorder %s27, 1
    %p328 = por %p326, %p327
    %p330 = scmp.ne.s32.totalorder %s315, %s329
    %p331 = scmp.eq.s32.totalorder %s27, 0
    %p332 = por %p330, %p331
    %s334 = sadd.s32 %s333, 1
    %p337 = scmp.eq.s32.totalorder %s21, 1
    %p338 = scmp.ne.s32.totalorder %s333, %s335
    %p339 = scmp.eq.s32.totalorder %s21, 0
    %p340 = por %p338, %p339
    %p341 = scmp.ne.s32.totalorder %s333, %s335
    %p342 = scmp.eq.s32.totalorder %s26, 1
    %p343 = por %p341, %p342
    %p344 = scmp.ne.s32.totalorder %s335, %s336
    %p345 = scmp.eq.s32.totalorder %s26, 0
    %p346 = por %p344, %p345
    %p347 = scmp.ne.s32.totalorder %s335, %s336
    %p348 = scmp.eq.s32.totalorder %s27, 1
    %p349 = por %p347, %p348
    %p351 = scmp.ne.s32.totalorder %s336, %s350
    %p352 = scmp.eq.s32.totalorder %s27, 0
    %p353 = por %p351, %p352
    %s354 = ssub.s32 %s21, %s28
    %p355 = scmp.eq.s32.totalorder %s354, 0
    %s357 = sadd.s32 %s356, 1
    %s358 = scalar_select %p355, %s356, %s357
    %p361 = pneg %p355
    %p362 = scmp.eq.s32.totalorder %s21, 1
    %p363 = por %p361, %p362
    %p364 = scmp.ne.s32.totalorder %s356, %s359
    %p365 = scmp.eq.s32.totalorder %s21, 0
    %p366 = por %p364, %p365
    %p367 = scmp.ne.s32.totalorder %s356, %s359
    %p368 = scmp.eq.s32.totalorder %s26, 1
    %p369 = por %p367, %p368
    %p370 = scmp.ne.s32.totalorder %s359, %s360
    %p371 = scmp.eq.s32.totalorder %s26, 0
    %p372 = por %p370, %p371
    %p373 = scmp.ne.s32.totalorder %s359, %s360
    %p374 = scmp.eq.s32.totalorder %s27, 1
    %p375 = por %p373, %p374
    %p377 = scmp.ne.s32.totalorder %s360, %s376
    %p378 = scmp.eq.s32.totalorder %s27, 0
    %p379 = por %p377, %p378
    %p380 = scmp.le.s32.totalorder 1, %s21
    %p381 = scmp.lt.s32.totalorder %s21, 3
    %p382 = pnand %p380, %p381
    %p383 = pneg %p382
    // Predicated region
    $region9: #{run.10} parent=5 // pred_check
      _
    $region10: #{run.10} parent=5 // pred_check_branch
      %385 = sbr.rel (%p382) target = $region12
    $region11: #{run.10} parent=5 // pred_region
      %s386 = ssub.s32 %s21, 1
      // Predicated region
      $region13: #{run.10} parent=11 // pred_check
        %p387 = pneg %p94
      $region14: #{run.10} parent=11 // pred_check_branch
        %389 = sbr.rel (%p387) target = $region16
      $region15: #{run.10} parent=11 // pred_region
        _
      $region16: #{run.10} parent=11 // pred_fallthru
        _
      // Predicated region
      $region17: #{run.10} parent=11 // pred_check
        %p390 = pneg %p115
      $region18: #{run.10} parent=11 // pred_check_branch
        %392 = sbr.rel (%p390) target = $region20
      $region19: #{run.10} parent=11 // pred_region
        _
      $region20: #{run.10} parent=11 // pred_fallthru
        _
      // Predicated region
      $region21: #{run.10} parent=11 // pred_check
        %p393 = pneg %p136
      $region22: #{run.10} parent=11 // pred_check_branch
        %395 = sbr.rel (%p393) target = $region24
      $region23: #{run.10} parent=11 // pred_region
        _
      $region24: #{run.10} parent=11 // pred_fallthru
        _
      // Predicated region
      $region25: #{run.10} parent=11 // pred_check
        %p396 = pneg %p157
      $region26: #{run.10} parent=11 // pred_check_branch
        %398 = sbr.rel (%p396) target = $region28
      $region27: #{run.10} parent=11 // pred_region
        _
      $region28: #{run.10} parent=11 // pred_fallthru
        _
      // Predicated region
      $region29: #{run.10} parent=11 // pred_check
        %p399 = pneg %p178
      $region30: #{run.10} parent=11 // pred_check_branch
        %401 = sbr.rel (%p399) target = $region32
      $region31: #{run.10} parent=11 // pred_region
        _
      $region32: #{run.10} parent=11 // pred_fallthru
        _
      // Predicated region
      $region33: #{run.10} parent=11 // pred_check
        %p402 = pneg %p199
      $region34: #{run.10} parent=11 // pred_check_branch
        %404 = sbr.rel (%p402) target = $region36
      $region35: #{run.10} parent=11 // pred_region
        _
      $region36: #{run.10} parent=11 // pred_fallthru
        _
      // Predicated region
      $region37: #{run.10} parent=11 // pred_check
        %p405 = pneg %p220
      $region38: #{run.10} parent=11 // pred_check_branch
        %407 = sbr.rel (%p405) target = $region40
      $region39: #{run.10} parent=11 // pred_region
        _
      $region40: #{run.10} parent=11 // pred_fallthru
        _
      // Predicated region
      $region41: #{run.10} parent=11 // pred_check
        %p408 = pneg %p241
      $region42: #{run.10} parent=11 // pred_check_branch
        %410 = sbr.rel (%p408) target = $region44
      $region43: #{run.10} parent=11 // pred_region
        _
      $region44: #{run.10} parent=11 // pred_fallthru
        _
      // Predicated region
      $region45: #{run.10} parent=11 // pred_check
        %p411 = pneg %p262
      $region46: #{run.10} parent=11 // pred_check_branch
        %413 = sbr.rel (%p411) target = $region48
      $region47: #{run.10} parent=11 // pred_region
        _
      $region48: #{run.10} parent=11 // pred_fallthru
        _
      // Predicated region
      $region49: #{run.10} parent=11 // pred_check
        %p414 = pneg %p283
      $region50: #{run.10} parent=11 // pred_check_branch
        %416 = sbr.rel (%p414) target = $region52
      $region51: #{run.10} parent=11 // pred_region
        _
      $region52: #{run.10} parent=11 // pred_fallthru
        _
      // Predicated region
      $region53: #{run.10} parent=11 // pred_check
        %p417 = pneg %p304
      $region54: #{run.10} parent=11 // pred_check_branch
        %419 = sbr.rel (%p417) target = $region56
      $region55: #{run.10} parent=11 // pred_region
        _
      $region56: #{run.10} parent=11 // pred_fallthru
        _
      // Predicated region
      $region57: #{run.10} parent=11 // pred_check
        %p420 = pneg %p325
      $region58: #{run.10} parent=11 // pred_check_branch
        %422 = sbr.rel (%p420) target = $region60
      $region59: #{run.10} parent=11 // pred_region
        _
      $region60: #{run.10} parent=11 // pred_fallthru
        _
      // Predicated region
      $region61: #{run.10} parent=11 // pred_check
        %p423 = pneg %p346
      $region62: #{run.10} parent=11 // pred_check_branch
        %425 = sbr.rel (%p423) target = $region64
      $region63: #{run.10} parent=11 // pred_region
        _
      $region64: #{run.10} parent=11 // pred_fallthru
        _
    $region12: #{run.10} parent=5 // pred_fallthru
      _
    %p426 = scmp.lt.s32.totalorder %s21, 2
    // Predicated region
    $region65: #{run.10} parent=5 // pred_check
      %p427 = pneg %p426
    $region66: #{run.10} parent=5 // pred_check_branch
      %429 = sbr.rel (%p427) target = $region68
    $region67: #{run.10} parent=5 // pred_region
      // Predicated region
      $region69: #{run.10} parent=67 // pred_check
        %p430 = pneg %p41
      $region70: #{run.10} parent=67 // pred_check_branch
        %432 = sbr.rel (%p430) target = $region72
      $region71: #{run.10} parent=67 // pred_region
        %p433 = scmp.lt.s32.totalorder %s21, 1
        %s434 = scalar_select %p433, %s21, 1
        %s435 = smul.addr %s434, 8
        %s436 = scalar_lea.vmem %s0, %s435
      $region72: #{run.10} parent=67 // pred_fallthru
        _
      // Predicated region
      $region73: #{run.10} parent=67 // pred_check
        %p437 = pneg %p67
      $region74: #{run.10} parent=67 // pred_check_branch
        %439 = sbr.rel (%p437) target = $region76
      $region75: #{run.10} parent=67 // pred_region
        %p440 = scmp.lt.s32.totalorder %s21, 1
        %s441 = scalar_select %p440, %s21, 1
        %s442 = smul.addr %s441, 8
        %s443 = scalar_lea.vmem %s1, %s442
      $region76: #{run.10} parent=67 // pred_fallthru
        _
    $region68: #{run.10} parent=5 // pred_fallthru
      _
    %p444 = scmp.le.s32.totalorder 1, %s21
    %p445 = scmp.lt.s32.totalorder %s21, 3
    %p446 = pnand %p444, %p445
    %p447 = pneg %p446
    // Predicated region
    $region77: #{run.10} parent=5 // pred_check
      _
    $region78: #{run.10} parent=5 // pred_check_branch
      %449 = sbr.rel (%p446) target = $region80
    $region79: #{run.10} parent=5 // pred_region
      %s450 = ssub.s32 %s21, 1
      %p451 = scmp.lt.s32.totalorder %s26, 1
      %s452 = scalar_select %p451, %s26, 1
      %s453 = smul.addr %s452, 8
      %s454 = scalar_lea.vmem %s0, %s453
      %p455 = pneg %p47
      %p456 = pneg %p44
      %p457 = scmp.lt.s32.totalorder %s26, 1
      %s458 = scalar_select %p457, %s26, 1
      %s459 = smul.addr %s458, 8
      %s460 = scalar_lea.vmem %s1, %s459
      %p461 = pneg %p73
      %p462 = pneg %p70
      %p463 = pneg %p94
      %p464 = pneg %p91
      %p465 = pneg %p115
      %p466 = pneg %p112
      %p467 = pneg %p136
      %p468 = pneg %p133
      %p469 = pneg %p157
      %p470 = pneg %p154
      %p471 = pneg %p178
      %p472 = pneg %p175
      %p473 = pneg %p199
      %p474 = pneg %p196
      %p475 = pneg %p220
      %p476 = pneg %p217
      %p477 = pneg %p241
      %p478 = pneg %p238
      %p479 = pneg %p262
      %p480 = pneg %p259
      %p481 = pneg %p283
      %p482 = pneg %p280
      %p483 = pneg %p304
      %p484 = pneg %p301
      %p485 = pneg %p325
      %p486 = pneg %p322
      %p487 = pneg %p346
      %p488 = pneg %p343
      %p489 = pneg %p372
      %p490 = pneg %p369
      %p491 = scmp.lt.s32.totalorder %s26, 1
      %s492 = scalar_select %p491, %s26, 1
      %s493 = smul.addr %s492, 8
      %s494 = scalar_lea.vmem %s15, %s493
      %p495 = scmp.lt.s32.totalorder %s26, 1
      %s496 = scalar_select %p495, %s26, 1
      %s497 = smul.addr %s496, 8
      %s498 = scalar_lea.vmem %s0, %s497
      %p499 = scmp.lt.s32.totalorder %s26, 1
      %s500 = scalar_select %p499, %s26, 1
      %s501 = smul.addr %s500, 8
      %s502 = scalar_lea.vmem %s1, %s501
      %p503 = scmp.lt.s32.totalorder %s26, 1
      %s504 = scalar_select %p503, %s26, 1
      %s505 = smul.addr %s504, 8
      %s506 = scalar_lea.vmem %s15, %s505
      %v508 = vld [vmem:[%s498] sm:$0xff]
      %v509 = vld [vmem:[%s2] sm:$0x1]
      %v510 = vld [vmem:[%s3] sm:$0x1]
      %vm511 = vcmask 261120
      %v512 = vsel %vm511, %v508, 0.0
      %513 = vadd.xlane.f32.xlu0 %v512
      %v514 = vpop.xlane.xlu0 %513
      %v515 = vrcp.pop 32.0
      %v516 = vmul.f32 %v514, %v515
      %v517 = vsub.f32 %v508, %v516
      %v518 = vmul.f32 %v517, %v517
      %v519 = vsel %vm511, %v518, 0.0
      %520 = vadd.xlane.f32.xlu0 %v519
      %v521 = vpop.xlane.xlu0 %520
      %v522 = vmul.f32 %v521, %v515
      %v523 = vadd.f32 %v522, 1e-05
      %v524 = vrsqrt.pop %v523
      %v525 = vmul.f32 %v517, %v524
      %v527 = vlaneseq
      %v528 = vshrl.u32 %v527, 7
      %v529 = vsub.s32 0, %v528
      %v530 = vrot.slane %v509, %v529
      %v532 = vmul.f32 %v525, %v530
      %v534 = vlaneseq
      %v535 = vshrl.u32 %v534, 7
      %v536 = vsub.s32 0, %v535
      %v537 = vrot.slane %v510, %v536
      %v539 = vadd.f32 %v532, %v537
      %v540 = vpack.c.bf16 %v539, %v539
      %v541 = vld [vmem:[%s4] sm:$0xf]
      %v542 = vld [vmem:[%s4 + $0x4] sm:$0xf]
      %v543 = vld [vmem:[%s4 + $0x8] sm:$0xf]
      %v544 = vld [vmem:[%s4 + $0xc] sm:$0xf]
      %v549 = vunpack.c.l.b16 %v541
      %v550 = vunpack.c.l.b16 %v542
      %v551 = vunpack.c.l.b16 %v543
      %v552 = vunpack.c.l.b16 %v544
      %v553 = vpack.c.b16 %v550, %v549
      %v554 = vpack.c.b16 %v552, %v551
      %v558 = vsel %vm511, %v540, 0
      %560 = vmatprep.subr.bf16.mxu0 0
      %561 = vmatpush1.bf16.msra.mxu0 %v553
      %562 = vmatprep.subr.bf16.mxu0 0
      %563 = vmatpush1.bf16.msra.mxu0 %v554
      %564 = vmatprep.subr.bf16.mxu0 0
      %565 = vmatpush1.bf16.msra.mxu0 0
      %566 = vmatprep.subr.bf16.mxu0 0
      %567 = vmatpush1.bf16.msra.mxu0 0
      %568 = vmatprep.subr.bf16.mxu0 0
      %569 = vmatpush1.bf16.msra.mxu0 0
      %570 = vmatprep.subr.bf16.mxu0 0
      %571 = vmatpush1.bf16.msra.mxu0 0
      %572 = vmatprep.subr.bf16.mxu0 0
      %573 = vmatpush1.bf16.msra.mxu0 0
      %574 = vmatprep.subr.bf16.mxu0 0
      %575 = vmatpush1.bf16.msra.mxu0 0
      %576 = vmatprep.subr.bf16.mxu0 0
      %577 = vmatpush1.bf16.msra.mxu0 0
      %578 = vmatprep.subr.bf16.mxu0 0
      %579 = vmatpush1.bf16.msra.mxu0 0
      %580 = vmatprep.subr.bf16.mxu0 0
      %581 = vmatpush1.bf16.msra.mxu0 0
      %582 = vmatprep.subr.bf16.mxu0 0
      %583 = vmatpush1.bf16.msra.mxu0 0
      %584 = vmatprep.subr.bf16.mxu0 0
      %585 = vmatpush1.bf16.msra.mxu0 0
      %586 = vmatprep.subr.bf16.mxu0 0
      %587 = vmatpush1.bf16.msra.mxu0 0
      %588 = vmatprep.subr.bf16.mxu0 0
      %589 = vmatpush1.bf16.msra.mxu0 0
      %590 = vmatprep.subr.bf16.mxu0 0
      %591 = vmatpush1.bf16.msra.mxu0 0
      %592 = vmatprep.mubr.bf16.mxu0 0
      %593 = vmatmul.mubr.bf16.gmra.mrb[0].mxu0 %v558
      %v594 = vpop.f32.mrb[0].mxu0
      %v595 = vadd.f32 0.0, %v594
      %v596 = vpop.f32.mrb[0].mxu0
      %v597 = vpop.f32.mrb[0].mxu0
      %v598 = vpop.f32.mrb[0].mxu0
      %599 = vdwg.mxu0
      %v600 = vld [vmem:[%s502] sm:$0xff]
      %v601 = vpack.c.bf16 %v600, %v600
      %v602 = vld [vmem:[%s5] sm:$0xf]
      %v603 = vld [vmem:[%s5 + $0x4] sm:$0xf]
      %v604 = vld [vmem:[%s5 + $0x8] sm:$0xf]
      %v605 = vld [vmem:[%s5 + $0xc] sm:$0xf]
      %v610 = vunpack.c.l.b16 %v602
      %v611 = vunpack.c.l.b16 %v603
      %v612 = vunpack.c.l.b16 %v604
      %v613 = vunpack.c.l.b16 %v605
      %v614 = vpack.c.b16 %v611, %v610
      %v615 = vpack.c.b16 %v613, %v612
      %v619 = vsel %vm511, %v601, 0
      %621 = vmatprep.subr.bf16.mxu0 0
      %622 = vmatpush1.bf16.msra.mxu0 %v614
      %623 = vmatprep.subr.bf16.mxu0 0
      %624 = vmatpush1.bf16.msra.mxu0 %v615
      %625 = vmatprep.subr.bf16.mxu0 0
      %626 = vmatpush1.bf16.msra.mxu0 0
      %627 = vmatprep.subr.bf16.mxu0 0
      %628 = vmatpush1.bf16.msra.mxu0 0
      %629 = vmatprep.subr.bf16.mxu0 0
      %630 = vmatpush1.bf16.msra.mxu0 0
      %631 = vmatprep.subr.bf16.mxu0 0
      %632 = vmatpush1.bf16.msra.mxu0 0
      %633 = vmatprep.subr.bf16.mxu0 0
      %634 = vmatpush1.bf16.msra.mxu0 0
      %635 = vmatprep.subr.bf16.mxu0 0
      %636 = vmatpush1.bf16.msra.mxu0 0
      %637 = vmatprep.subr.bf16.mxu0 0
      %638 = vmatpush1.bf16.msra.mxu0 0
      %639 = vmatprep.subr.bf16.mxu0 0
      %640 = vmatpush1.bf16.msra.mxu0 0
      %641 = vmatprep.subr.bf16.mxu0 0
      %642 = vmatpush1.bf16.msra.mxu0 0
      %643 = vmatprep.subr.bf16.mxu0 0
      %644 = vmatpush1.bf16.msra.mxu0 0
      %645 = vmatprep.subr.bf16.mxu0 0
      %646 = vmatpush1.bf16.msra.mxu0 0
      %647 = vmatprep.subr.bf16.mxu0 0
      %648 = vmatpush1.bf16.msra.mxu0 0
      %649 = vmatprep.subr.bf16.mxu0 0
      %650 = vmatpush1.bf16.msra.mxu0 0
      %651 = vmatprep.subr.bf16.mxu0 0
      %652 = vmatpush1.bf16.msra.mxu0 0
      %653 = vmatprep.mubr.bf16.mxu0 0
      %654 = vmatmul.mubr.bf16.gmra.mrb[0].mxu0 %v619
      %v655 = vpop.f32.mrb[0].mxu0
      %v656 = vadd.f32 0.0, %v655
      %v657 = vpop.f32.mrb[0].mxu0
      %v658 = vpop.f32.mrb[0].mxu0
      %v659 = vpop.f32.mrb[0].mxu0
      %660 = vdwg.mxu0
      %v661 = vld [vmem:[%s6] sm:$0xf]
      %v662 = vld [vmem:[%s6 + $0x4] sm:$0xf]
      %v663 = vld [vmem:[%s6 + $0x8] sm:$0xf]
      %v664 = vld [vmem:[%s6 + $0xc] sm:$0xf]
      %v669 = vunpack.c.l.b16 %v661
      %v670 = vunpack.c.l.b16 %v662
      %v671 = vunpack.c.l.b16 %v663
      %v672 = vunpack.c.l.b16 %v664
      %v673 = vpack.c.b16 %v670, %v669
      %v674 = vpack.c.b16 %v672, %v671
      %677 = vmatprep.subr.bf16.mxu0 0
      %678 = vmatpush1.bf16.msra.mxu0 %v673
      %679 = vmatprep.subr.bf16.mxu0 0
      %680 = vmatpush1.bf16.msra.mxu0 %v674
      %681 = vmatprep.subr.bf16.mxu0 0
      %682 = vmatpush1.bf16.msra.mxu0 0
      %683 = vmatprep.subr.bf16.mxu0 0
      %684 = vmatpush1.bf16.msra.mxu0 0
      %685 = vmatprep.subr.bf16.mxu0 0
      %686 = vmatpush1.bf16.msra.mxu0 0
      %687 = vmatprep.subr.bf16.mxu0 0
      %688 = vmatpush1.bf16.msra.mxu0 0
      %689 = vmatprep.subr.bf16.mxu0 0
      %690 = vmatpush1.bf16.msra.mxu0 0
      %691 = vmatprep.subr.bf16.mxu0 0
      %692 = vmatpush1.bf16.msra.mxu0 0
      %693 = vmatprep.subr.bf16.mxu0 0
      %694 = vmatpush1.bf16.msra.mxu0 0
      %695 = vmatprep.subr.bf16.mxu0 0
      %696 = vmatpush1.bf16.msra.mxu0 0
      %697 = vmatprep.subr.bf16.mxu0 0
      %698 = vmatpush1.bf16.msra.mxu0 0
      %699 = vmatprep.subr.bf16.mxu0 0
      %700 = vmatpush1.bf16.msra.mxu0 0
      %701 = vmatprep.subr.bf16.mxu0 0
      %702 = vmatpush1.bf16.msra.mxu0 0
      %703 = vmatprep.subr.bf16.mxu0 0
      %704 = vmatpush1.bf16.msra.mxu0 0
      %705 = vmatprep.subr.bf16.mxu0 0
      %706 = vmatpush1.bf16.msra.mxu0 0
      %707 = vmatprep.subr.bf16.mxu0 0
      %708 = vmatpush1.bf16.msra.mxu0 0
      %709 = vmatprep.mubr.bf16.mxu0 0
      %710 = vmatmul.mubr.bf16.gmra.mrb[0].mxu0 %v619
      %v711 = vpop.f32.mrb[0].mxu0
      %v712 = vadd.f32 0.0, %v711
      %v713 = vpop.f32.mrb[0].mxu0
      %v714 = vpop.f32.mrb[0].mxu0
      %v715 = vpop.f32.mrb[0].mxu0
      %716 = vdwg.mxu0
      %vm717 = vcmask 64512
      %v718 = vsel %vm717, %v595, -inf
      %719 = vmax.xlane.f32.xlu0 %v718
      %v720 = vpop.xlane.xlu0 %719
      %v721 = vsub.f32 %v595, %v720
      %v722 = vmul.f32 %v721, 1.442695
      %v723 = vpow.pop %v722
      %v724 = vsel %vm717, %v723, 0.0
      %725 = vadd.xlane.f32.xlu0 %v724
      %v726 = vpop.xlane.xlu0 %725
      %v727 = vrcp.pop %v726
      %v728 = vmul.f32 %v723, %v727
      %v729 = vmul.f32 %v728, 0.35355338
      %v730 = vsel %vm717, %v656, -inf
      %v731 = vrot.slane %v730, 4
      %v732 = vmax.f32 %v730, %v731
      %v733 = vrot.slane %v732, 2
      %v734 = vmax.f32 %v732, %v733
      %v735 = vrot.slane %v734, 1
      %v736 = vmax.f32 %v734, %v735
      %v737 = vsub.f32 %v656, %v736
      %v738 = vmul.f32 %v737, 1.442695
      %v739 = vpow.pop %v738
      %v740 = vsel %vm717, %v739, 0.0
      %v741 = vrot.slane %v740, 4
      %v742 = vadd.f32 %v740, %v741
      %v743 = vrot.slane %v742, 2
      %v744 = vadd.f32 %v742, %v743
      %v745 = vrot.slane %v744, 1
      %v746 = vadd.f32 %v744, %v745
      %v747 = vrcp.pop %v746
      %v748 = vmul.f32 %v739, %v747
      %749 = vxpose.xlu0.b32.start [1/16] %v748, 128
      %750 = vxpose.xlu0.b32.cont [2/16] 0.0, 128
      %751 = vxpose.xlu0.b32.cont [3/16] 0.0, 128
      %752 = vxpose.xlu0.b32.cont [4/16] 0.0, 128
      %753 = vxpose.xlu0.b32.cont [5/16] 0.0, 128
      %754 = vxpose.xlu0.b32.cont [6/16] 0.0, 128
      %755 = vxpose.xlu0.b32.cont [7/16] 0.0, 128
      %756 = vxpose.xlu0.b32.cont [8/16] 0.0, 128
      %757 = vxpose.xlu0.b32.cont [9/16] 0.0, 128
      %758 = vxpose.xlu0.b32.cont [10/16] 0.0, 128
      %759 = vxpose.xlu0.b32.cont [11/16] 0.0, 128
      %760 = vxpose.xlu0.b32.cont [12/16] 0.0, 128
      %761 = vxpose.xlu0.b32.cont [13/16] 0.0, 128
      %762 = vxpose.xlu0.b32.cont [14/16] 0.0, 128
      %763 = vxpose.xlu0.b32.cont [15/16] 0.0, 128
      %764 = vxpose.xlu0.b32.end [16/16] 0.0, 128
      %v765 = vpop.trf.xlu0
      %v766 = vpop.trf.xlu0
      %v767 = vpop.trf.xlu0
      %v768 = vpop.trf.xlu0
      %v769 = vpop.trf.xlu0
      %v770 = vpop.trf.xlu0
      %v771 = vpop.trf.xlu0
      %v772 = vpop.trf.xlu0
      %v773 = vpop.trf.xlu0
      %v774 = vpop.trf.xlu0
      %v775 = vpop.trf.xlu0
      %v776 = vpop.trf.xlu0
      %v777 = vpop.trf.xlu0
      %v778 = vpop.trf.xlu0
      %v779 = vpop.trf.xlu0
      %v780 = vpop.trf.xlu0
      %v781 = vpack.c.bf16 %v765, %v765
      %v782 = vpack.c.bf16 %v712, %v712
      %v784 = vsel %vm717, %v781, 0
      %vm786 = vcmask 1043456
      %v788 = vsel %vm786, %v782, 0
      %790 = vmatprep.subr.bf16.mxu0 0
      %791 = vmatpush1.bf16.msra.mxu0 %v788
      %792 = vmatprep.subr.bf16.mxu0 0
      %793 = vmatpush1.bf16.msra.mxu0 0
      %794 = vmatprep.subr.bf16.mxu0 0
      %795 = vmatpush1.bf16.msra.mxu0 0
      %796 = vmatprep.subr.bf16.mxu0 0
      %797 = vmatpush1.bf16.msra.mxu0 0
      %798 = vmatprep.subr.bf16.mxu0 0
      %799 = vmatpush1.bf16.msra.mxu0 0
      %800 = vmatprep.subr.bf16.mxu0 0
      %801 = vmatpush1.bf16.msra.mxu0 0
      %802 = vmatprep.subr.bf16.mxu0 0
      %803 = vmatpush1.bf16.msra.mxu0 0
      %804 = vmatprep.subr.bf16.mxu0 0
      %805 = vmatpush1.bf16.msra.mxu0 0
      %806 = vmatprep.subr.bf16.mxu0 0
      %807 = vmatpush1.bf16.msra.mxu0 0
      %808 = vmatprep.subr.bf16.mxu0 0
      %809 = vmatpush1.bf16.msra.mxu0 0
      %810 = vmatprep.subr.bf16.mxu0 0
      %811 = vmatpush1.bf16.msra.mxu0 0
      %812 = vmatprep.subr.bf16.mxu0 0
      %813 = vmatpush1.bf16.msra.mxu0 0
      %814 = vmatprep.subr.bf16.mxu0 0
      %815 = vmatpush1.bf16.msra.mxu0 0
      %816 = vmatprep.subr.bf16.mxu0 0
      %817 = vmatpush1.bf16.msra.mxu0 0
      %818 = vmatprep.subr.bf16.mxu0 0
      %819 = vmatpush1.bf16.msra.mxu0 0
      %820 = vmatprep.subr.bf16.mxu0 0
      %821 = vmatpush1.bf16.msra.mxu0 0
      %822 = vmatprep.mubr.bf16.mxu0 0
      %823 = vmatmul.mubr.bf16.gmra.mrb[0].mxu0 %v784
      %v824 = vpop.f32.mrb[0].mxu0
      %v825 = vadd.f32 0.0, %v824
      %v826 = vpop.f32.mrb[0].mxu0
      %v827 = vpop.f32.mrb[0].mxu0
      %v828 = vpop.f32.mrb[0].mxu0
      %829 = vdwg.mxu0
      %v830 = vpack.c.bf16 %v729, %v729
      %v831 = vpack.c.bf16 %v825, %v825
      %v833 = vsel %vm717, %v830, 0
      %v836 = vsel %vm786, %v831, 0
      %838 = vmatprep.subr.bf16.mxu0 0
      %839 = vmatpush1.bf16.msra.mxu0 %v836
      %840 = vmatprep.subr.bf16.mxu0 0
      %841 = vmatpush1.bf16.msra.mxu0 0
      %842 = vmatprep.subr.bf16.mxu0 0
      %843 = vmatpush1.bf16.msra.mxu0 0
      %844 = vmatprep.subr.bf16.mxu0 0
      %845 = vmatpush1.bf16.msra.mxu0 0
      %846 = vmatprep.subr.bf16.mxu0 0
      %847 = vmatpush1.bf16.msra.mxu0 0
      %848 = vmatprep.subr.bf16.mxu0 0
      %849 = vmatpush1.bf16.msra.mxu0 0
      %850 = vmatprep.subr.bf16.mxu0 0
      %851 = vmatpush1.bf16.msra.mxu0 0
      %852 = vmatprep.subr.bf16.mxu0 0
      %853 = vmatpush1.bf16.msra.mxu0 0
      %854 = vmatprep.subr.bf16.mxu0 0
      %855 = vmatpush1.bf16.msra.mxu0 0
      %856 = vmatprep.subr.bf16.mxu0 0
      %857 = vmatpush1.bf16.msra.mxu0 0
      %858 = vmatprep.subr.bf16.mxu0 0
      %859 = vmatpush1.bf16.msra.mxu0 0
      %860 = vmatprep.subr.bf16.mxu0 0
      %861 = vmatpush1.bf16.msra.mxu0 0
      %862 = vmatprep.subr.bf16.mxu0 0
      %863 = vmatpush1.bf16.msra.mxu0 0
      %864 = vmatprep.subr.bf16.mxu0 0
      %865 = vmatpush1.bf16.msra.mxu0 0
      %866 = vmatprep.subr.bf16.mxu0 0
      %867 = vmatpush1.bf16.msra.mxu0 0
      %868 = vmatprep.subr.bf16.mxu0 0
      %869 = vmatpush1.bf16.msra.mxu0 0
      %870 = vmatprep.mubr.bf16.mxu0 0
      %871 = vmatmul.mubr.bf16.gmra.mrb[0].mxu0 %v833
      %v872 = vpop.f32.mrb[0].mxu0
      %v873 = vadd.f32 0.0, %v872
      %v874 = vpop.f32.mrb[0].mxu0
      %v875 = vpop.f32.mrb[0].mxu0
      %v876 = vpop.f32.mrb[0].mxu0
      %877 = vdwg.mxu0
      %vm878 = vcmask 130112
      %v879 = vsel %vm878, %v595, -inf
      %880 = vmax.xlane.f32.xlu0 %v879
      %v881 = vpop.xlane.xlu0 %880
      %v882 = vsub.f32 %v595, %v881
      %v883 = vmul.f32 %v882, 1.442695
      %v884 = vpow.pop %v883
      %886 = vrot.lane.b32.xlu0 %v884, 120
      %v887 = vpop.permute.xlu0 %886
      %v889 = vsel %vm717, %v887, 0.0
      %890 = vadd.xlane.f32.xlu0 %v889
      %v891 = vpop.xlane.xlu0 %890
      %v892 = vrcp.pop %v891
      %v893 = vmul.f32 %v884, %v892
      %v894 = vmul.f32 %v893, 0.35355338
      %v895 = vsel %vm878, %v656, -inf
      %v896 = vrot.slane %v895, 4
      %v897 = vmax.f32 %v895, %v896
      %v898 = vrot.slane %v897, 2
      %v899 = vmax.f32 %v897, %v898
      %v900 = vrot.slane %v899, 1
      %v901 = vmax.f32 %v899, %v900
      %v902 = vsub.f32 %v656, %v901
      %v903 = vmul.f32 %v902, 1.442695
      %v904 = vpow.pop %v903
      %v905 = vsel %vm878, %v904, 0.0
      %v906 = vrot.slane %v905, 4
      %v907 = vadd.f32 %v905, %v906
      %v908 = vrot.slane %v907, 2
      %v909 = vadd.f32 %v907, %v908
      %v910 = vrot.slane %v909, 1
      %v911 = vadd.f32 %v909, %v910
      %v912 = vrcp.pop %v911
      %v913 = vmul.f32 %v904, %v912
      %915 = vrot.lane.b32.xlu0 %v913, 120
      %v916 = vpop.permute.xlu0 %915
      %918 = vxpose.xlu0.b32.start [1/16] %v916, 128
      %919 = vxpose.xlu0.b32.cont [2/16] 0.0, 128
      %920 = vxpose.xlu0.b32.cont [3/16] 0.0, 128
      %921 = vxpose.xlu0.b32.cont [4/16] 0.0, 128
      %922 = vxpose.xlu0.b32.cont [5/16] 0.0, 128
      %923 = vxpose.xlu0.b32.cont [6/16] 0.0, 128
      %924 = vxpose.xlu0.b32.cont [7/16] 0.0, 128
      %925 = vxpose.xlu0.b32.cont [8/16] 0.0, 128
      %926 = vxpose.xlu0.b32.cont [9/16] 0.0, 128
      %927 = vxpose.xlu0.b32.cont [10/16] 0.0, 128
      %928 = vxpose.xlu0.b32.cont [11/16] 0.0, 128
      %929 = vxpose.xlu0.b32.cont [12/16] 0.0, 128
      %930 = vxpose.xlu0.b32.cont [13/16] 0.0, 128
      %931 = vxpose.xlu0.b32.cont [14/16] 0.0, 128
      %932 = vxpose.xlu0.b32.cont [15/16] 0.0, 128
      %933 = vxpose.xlu0.b32.end [16/16] 0.0, 128
      %v934 = vpop.trf.xlu0
      %v935 = vpop.trf.xlu0
      %v936 = vpop.trf.xlu0
      %v937 = vpop.trf.xlu0
      %v938 = vpop.trf.xlu0
      %v939 = vpop.trf.xlu0
      %v940 = vpop.trf.xlu0
      %v941 = vpop.trf.xlu0
      %v942 = vpop.trf.xlu0
      %v943 = vpop.trf.xlu0
      %v944 = vpop.trf.xlu0
      %v945 = vpop.trf.xlu0
      %v946 = vpop.trf.xlu0
      %v947 = vpop.trf.xlu0
      %v948 = vpop.trf.xlu0
      %v949 = vpop.trf.xlu0
      %v950 = vpack.c.bf16 %v934, %v934
      %952 = vrot.lane.b32.xlu0 %v782, 120
      %v953 = vpop.permute.xlu0 %952
      %v955 = vsel %vm717, %v950, 0
      %v958 = vsel %vm786, %v953, 0
      %960 = vmatprep.subr.bf16.mxu0 0
      %961 = vmatpush1.bf16.msra.mxu0 %v958
      %962 = vmatprep.subr.bf16.mxu0 0
      %963 = vmatpush1.bf16.msra.mxu0 0
      %964 = vmatprep.subr.bf16.mxu0 0
      %965 = vmatpush1.bf16.msra.mxu0 0
      %966 = vmatprep.subr.bf16.mxu0 0
      %967 = vmatpush1.bf16.msra.mxu0 0
      %968 = vmatprep.subr.bf16.mxu0 0
      %969 = vmatpush1.bf16.msra.mxu0 0
      %970 = vmatprep.subr.bf16.mxu0 0
      %971 = vmatpush1.bf16.msra.mxu0 0
      %972 = vmatprep.subr.bf16.mxu0 0
      %973 = vmatpush1.bf16.msra.mxu0 0
      %974 = vmatprep.subr.bf16.mxu0 0
      %975 = vmatpush1.bf16.msra.mxu0 0
      %976 = vmatprep.subr.bf16.mxu0 0
      %977 = vmatpush1.bf16.msra.mxu0 0
      %978 = vmatprep.subr.bf16.mxu0 0
      %979 = vmatpush1.bf16.msra.mxu0 0
      %980 = vmatprep.subr.bf16.mxu0 0
      %981 = vmatpush1.bf16.msra.mxu0 0
      %982 = vmatprep.subr.bf16.mxu0 0
      %983 = vmatpush1.bf16.msra.mxu0 0
      %984 = vmatprep.subr.bf16.mxu0 0
      %985 = vmatpush1.bf16.msra.mxu0 0
      %986 = vmatprep.subr.bf16.mxu0 0
      %987 = vmatpush1.bf16.msra.mxu0 0
      %988 = vmatprep.subr.bf16.mxu0 0
      %989 = vmatpush1.bf16.msra.mxu0 0
      %990 = vmatprep.subr.bf16.mxu0 0
      %991 = vmatpush1.bf16.msra.mxu0 0
      %992 = vmatprep.mubr.bf16.mxu0 0
      %993 = vmatmul.mubr.bf16.gmra.mrb[0].mxu0 %v955
      %v994 = vpop.f32.mrb[0].mxu0
      %v995 = vadd.f32 0.0, %v994
      %v996 = vpop.f32.mrb[0].mxu0
      %v997 = vpop.f32.mrb[0].mxu0
      %v998 = vpop.f32.mrb[0].mxu0
      %999 = vdwg.mxu0
      %v1000 = vpack.c.bf16 %v894, %v894
      %v1001 = vpack.c.bf16 %v995, %v995
      %1003 = vrot.lane.b32.xlu0 %v1000, 120
      %v1004 = vpop.permute.xlu0 %1003
      %v1006 = vsel %vm717, %v1004, 0
      %v1009 = vsel %vm786, %v1001, 0
      %1011 = vmatprep.subr.bf16.mxu0 0
      %1012 = vmatpush1.bf16.msra.mxu0 %v1009
      %1013 = vmatprep.subr.bf16.mxu0 0
      %1014 = vmatpush1.bf16.msra.mxu0 0
      %1015 = vmatprep.subr.bf16.mxu0 0
      %1016 = vmatpush1.bf16.msra.mxu0 0
      %1017 = vmatprep.subr.bf16.mxu0 0
      %1018 = vmatpush1.bf16.msra.mxu0 0
      %1019 = vmatprep.subr.bf16.mxu0 0
      %1020 = vmatpush1.bf16.msra.mxu0 0
      %1021 = vmatprep.subr.bf16.mxu0 0
      %1022 = vmatpush1.bf16.msra.mxu0 0
      %1023 = vmatprep.subr.bf16.mxu0 0
      %1024 = vmatpush1.bf16.msra.mxu0 0
      %1025 = vmatprep.subr.bf16.mxu0 0
      %1026 = vmatpush1.bf16.msra.mxu0 0
      %1027 = vmatprep.subr.bf16.mxu0 0
      %1028 = vmatpush1.bf16.msra.mxu0 0
      %1029 = vmatprep.subr.bf16.mxu0 0
      %1030 = vmatpush1.bf16.msra.mxu0 0
      %1031 = vmatprep.subr.bf16.mxu0 0
      %1032 = vmatpush1.bf16.msra.mxu0 0
      %1033 = vmatprep.subr.bf16.mxu0 0
      %1034 = vmatpush1.bf16.msra.mxu0 0
      %1035 = vmatprep.subr.bf16.mxu0 0
      %1036 = vmatpush1.bf16.msra.mxu0 0
      %1037 = vmatprep.subr.bf16.mxu0 0
      %1038 = vmatpush1.bf16.msra.mxu0 0
      %1039 = vmatprep.subr.bf16.mxu0 0
      %1040 = vmatpush1.bf16.msra.mxu0 0
      %1041 = vmatprep.subr.bf16.mxu0 0
      %1042 = vmatpush1.bf16.msra.mxu0 0
      %1043 = vmatprep.mubr.bf16.mxu0 0
      %1044 = vmatmul.mubr.bf16.gmra.mrb[0].mxu0 %v1006
      %v1045 = vpop.f32.mrb[0].mxu0
      %v1046 = vadd.f32 0.0, %v1045
      %v1047 = vpop.f32.mrb[0].mxu0
      %v1048 = vpop.f32.mrb[0].mxu0
      %v1049 = vpop.f32.mrb[0].mxu0
      %1050 = vdwg.mxu0
      %vm1051 = vcmask 195712
      %v1052 = vsel %vm1051, %v595, -inf
      %1053 = vmax.xlane.f32.xlu0 %v1052
      %v1054 = vpop.xlane.xlu0 %1053
      %v1055 = vsub.f32 %v595, %v1054
      %v1056 = vmul.f32 %v1055, 1.442695
      %v1057 = vpow.pop %v1056
      %1059 = vrot.lane.b32.xlu0 %v1057, 112
      %v1060 = vpop.permute.xlu0 %1059
      %v1062 = vsel %vm717, %v1060, 0.0
      %1063 = vadd.xlane.f32.xlu0 %v1062
      %v1064 = vpop.xlane.xlu0 %1063
      %v1065 = vrcp.pop %v1064
      %v1066 = vmul.f32 %v1057, %v1065
      %v1067 = vmul.f32 %v1066, 0.35355338
      %v1068 = vsel %vm1051, %v656, -inf
      %v1069 = vrot.slane %v1068, 4
      %v1070 = vmax.f32 %v1068, %v1069
      %v1071 = vrot.slane %v1070, 2
      %v1072 = vmax.f32 %v1070, %v1071
      %v1073 = vrot.slane %v1072, 1
      %v1074 = vmax.f32 %v1072, %v1073
      %v1075 = vsub.f32 %v656, %v1074
      %v1076 = vmul.f32 %v1075, 1.442695
      %v1077 = vpow.pop %v1076
      %v1078 = vsel %vm1051, %v1077, 0.0
      %v1079 = vrot.slane %v1078, 4
      %v1080 = vadd.f32 %v1078, %v1079
      %v1081 = vrot.slane %v1080, 2
      %v1082 = vadd.f32 %v1080, %v1081
      %v1083 = vrot.slane %v1082, 1
      %v1084 = vadd.f32 %v1082, %v1083
      %v1085 = vrcp.pop %v1084
      %v1086 = vmul.f32 %v1077, %v1085
      %1088 = vrot.lane.b32.xlu0 %v1086, 112
      %v1089 = vpop.permute.xlu0 %1088
      %1091 = vxpose.xlu0.b32.start [1/16] %v1089, 128
      %1092 = vxpose.xlu0.b32.cont [2/16] 0.0, 128
      %1093 = vxpose.xlu0.b32.cont [3/16] 0.0, 128
      %1094 = vxpose.xlu0.b32.cont [4/16] 0.0, 128
      %1095 = vxpose.xlu0.b32.cont [5/16] 0.0, 128
      %1096 = vxpose.xlu0.b32.cont [6/16] 0.0, 128
      %1097 = vxpose.xlu0.b32.cont [7/16] 0.0, 128
      %1098 = vxpose.xlu0.b32.cont [8/16] 0.0, 128
      %1099 = vxpose.xlu0.b32.cont [9/16] 0.0, 128
      %1100 = vxpose.xlu0.b32.cont [10/16] 0.0, 128
      %1101 = vxpose.xlu0.b32.cont [11/16] 0.0, 128
      %1102 = vxpose.xlu0.b32.cont [12/16] 0.0, 128
      %1103 = vxpose.xlu0.b32.cont [13/16] 0.0, 128
      %1104 = vxpose.xlu0.b32.cont [14/16] 0.0, 128
      %1105 = vxpose.xlu0.b32.cont [15/16] 0.0, 128
      %1106 = vxpose.xlu0.b32.end [16/16] 0.0, 128
      %v1107 = vpop.trf.xlu0
      %v1108 = vpop.trf.xlu0
      %v1109 = vpop.trf.xlu0
      %v1110 = vpop.trf.xlu0
      %v1111 = vpop.trf.xlu0
      %v1112 = vpop.trf.xlu0
      %v1113 = vpop.trf.xlu0
      %v1114 = vpop.trf.xlu0
      %v1115 = vpop.trf.xlu0
      %v1116 = vpop.trf.xlu0
      %v1117 = vpop.trf.xlu0
      %v1118 = vpop.trf.xlu0
      %v1119 = vpop.trf.xlu0
      %v1120 = vpop.trf.xlu0
      %v1121 = vpop.trf.xlu0
      %v1122 = vpop.trf.xlu0
      %v1123 = vpack.c.bf16 %v1107, %v1107
      %1124 = vrot.lane.b32.xlu0 %v782, 112
      %v1125 = vpop.permute.xlu0 %1124
      %v1127 = vsel %vm717, %v1123, 0
      %v1130 = vsel %vm786, %v1125, 0
      %1132 = vmatprep.subr.bf16.mxu0 0
      %1133 = vmatpush1.bf16.msra.mxu0 %v1130
      %1134 = vmatprep.subr.bf16.mxu0 0
      %1135 = vmatpush1.bf16.msra.mxu0 0
      %1136 = vmatprep.subr.bf16.mxu0 0
      %1137 = vmatpush1.bf16.msra.mxu0 0
      %1138 = vmatprep.subr.bf16.mxu0 0
      %1139 = vmatpush1.bf16.msra.mxu0 0
      %1140 = vmatprep.subr.bf16.mxu0 0
      %1141 = vmatpush1.bf16.msra.mxu0 0
      %1142 = vmatprep.subr.bf16.mxu0 0
      %1143 = vmatpush1.bf16.msra.mxu0 0
      %1144 = vmatprep.subr.bf16.mxu0 0
      %1145 = vmatpush1.bf16.msra.mxu0 0
      %1146 = vmatprep.subr.bf16.mxu0 0
      %1147 = vmatpush1.bf16.msra.mxu0 0
      %1148 = vmatprep.subr.bf16.mxu0 0
      %1149 = vmatpush1.bf16.msra.mxu0 0
      %1150 = vmatprep.subr.bf16.mxu0 0
      %1151 = vmatpush1.bf16.msra.mxu0 0
      %1152 = vmatprep.subr.bf16.mxu0 0
      %1153 = vmatpush1.bf16.msra.mxu0 0
      %1154 = vmatprep.subr.bf16.mxu0 0
      %1155 = vmatpush1.bf16.msra.mxu0 0
      %1156 = vmatprep.subr.bf16.mxu0 0
      %1157 = vmatpush1.bf16.msra.mxu0 0
      %1158 = vmatprep.subr.bf16.mxu0 0
      %1159 = vmatpush1.bf16.msra.mxu0 0
      %1160 = vmatprep.subr.bf16.mxu0 0
      %1161 = vmatpush1.bf16.msra.mxu0 0
      %1162 = vmatprep.subr.bf16.mxu0 0
      %1163 = vmatpush1.bf16.msra.mxu0 0
      %1164 = vmatprep.mubr.bf16.mxu0 0
      %1165 = vmatmul.mubr.bf16.gmra.mrb[0].mxu0 %v1127
      %v1166 = vpop.f32.mrb[0].mxu0
      %v1167 = vadd.f32 0.0, %v1166
      %v1168 = vpop.f32.mrb[0].mxu0
      %v1169 = vpop.f32.mrb[0].mxu0
      %v1170 = vpop.f32.mrb[0].mxu0
      %1171 = vdwg.mxu0
      %v1172 = vpack.c.bf16 %v1067, %v1067
      %v1173 = vpack.c.bf16 %v1167, %v1167
      %1175 = vrot.lane.b32.xlu0 %v1172, 112
      %v1176 = vpop.permute.xlu0 %1175
      %v1178 = vsel %vm717, %v1176, 0
      %v1181 = vsel %vm786, %v1173, 0
      %1183 = vmatprep.subr.bf16.mxu0 0
      %1184 = vmatpush1.bf16.msra.mxu0 %v1181
      %1185 = vmatprep.subr.bf16.mxu0 0
      %1186 = vmatpush1.bf16.msra.mxu0 0
      %1187 = vmatprep.subr.bf16.mxu0 0
      %1188 = vmatpush1.bf16.msra.mxu0 0
      %1189 = vmatprep.subr.bf16.mxu0 0
      %1190 = vmatpush1.bf16.msra.mxu0 0
      %1191 = vmatprep.subr.bf16.mxu0 0
      %1192 = vmatpush1.bf16.msra.mxu0 0
      %1193 = vmatprep.subr.bf16.mxu0 0
      %1194 = vmatpush1.bf16.msra.mxu0 0
      %1195 = vmatprep.subr.bf16.mxu0 0
      %1196 = vmatpush1.bf16.msra.mxu0 0
      %1197 = vmatprep.subr.bf16.mxu0 0
      %1198 = vmatpush1.bf16.msra.mxu0 0
      %1199 = vmatprep.subr.bf16.mxu0 0
      %1200 = vmatpush1.bf16.msra.mxu0 0
      %1201 = vmatprep.subr.bf16.mxu0 0
      %1202 = vmatpush1.bf16.msra.mxu0 0
      %1203 = vmatprep.subr.bf16.mxu0 0
      %1204 = vmatpush1.bf16.msra.mxu0 0
      %1205 = vmatprep.subr.bf16.mxu0 0
      %1206 = vmatpush1.bf16.msra.mxu0 0
      %1207 = vmatprep.subr.bf16.mxu0 0
      %1208 = vmatpush1.bf16.msra.mxu0 0
      %1209 = vmatprep.subr.bf16.mxu0 0
      %1210 = vmatpush1.bf16.msra.mxu0 0
      %1211 = vmatprep.subr.bf16.mxu0 0
      %1212 = vmatpush1.bf16.msra.mxu0 0
      %1213 = vmatprep.subr.bf16.mxu0 0
      %1214 = vmatpush1.bf16.msra.mxu0 0
      %1215 = vmatprep.mubr.bf16.mxu0 0
      %1216 = vmatmul.mubr.bf16.gmra.mrb[0].mxu0 %v1178
      %v1217 = vpop.f32.mrb[0].mxu0
      %v1218 = vadd.f32 0.0, %v1217
      %v1219 = vpop.f32.mrb[0].mxu0
      %v1220 = vpop.f32.mrb[0].mxu0
      %v1221 = vpop.f32.mrb[0].mxu0
      %1222 = vdwg.mxu0
      %vm1223 = vcmask 261312
      %v1224 = vsel %vm1223, %v595, -inf
      %1225 = vmax.xlane.f32.xlu0 %v1224
      %v1226 = vpop.xlane.xlu0 %1225
      %v1227 = vsub.f32 %v595, %v1226
      %v1228 = vmul.f32 %v1227, 1.442695
      %v1229 = vpow.pop %v1228
      %1231 = vrot.lane.b32.xlu0 %v1229, 104
      %v1232 = vpop.permute.xlu0 %1231
      %v1234 = vsel %vm717, %v1232, 0.0
      %1235 = vadd.xlane.f32.xlu0 %v1234
      %v1236 = vpop.xlane.xlu0 %1235
      %v1237 = vrcp.pop %v1236
      %v1238 = vmul.f32 %v1229, %v1237
      %v1239 = vmul.f32 %v1238, 0.35355338
      %v1240 = vsel %vm1223, %v656, -inf
      %v1241 = vrot.slane %v1240, 4
      %v1242 = vmax.f32 %v1240, %v1241
      %v1243 = vrot.slane %v1242, 2
      %v1244 = vmax.f32 %v1242, %v1243
      %v1245 = vrot.slane %v1244, 1
      %v1246 = vmax.f32 %v1244, %v1245
      %v1247 = vsub.f32 %v656, %v1246
      %v1248 = vmul.f32 %v1247, 1.442695
      %v1249 = vpow.pop %v1248
      %v1250 = vsel %vm1223, %v1249, 0.0
      %v1251 = vrot.slane %v1250, 4
      %v1252 = vadd.f32 %v1250, %v1251
      %v1253 = vrot.slane %v1252, 2
      %v1254 = vadd.f32 %v1252, %v1253
      %v1255 = vrot.slane %v1254, 1
      %v1256 = vadd.f32 %v1254, %v1255
      %v1257 = vrcp.pop %v1256
      %v1258 = vmul.f32 %v1249, %v1257
      %1260 = vrot.lane.b32.xlu0 %v1258, 104
      %v1261 = vpop.permute.xlu0 %1260
      %1263 = vxpose.xlu0.b32.start [1/16] %v1261, 128
      %1264 = vxpose.xlu0.b32.cont [2/16] 0.0, 128
      %1265 = vxpose.xlu0.b32.cont [3/16] 0.0, 128
      %1266 = vxpose.xlu0.b32.cont [4/16] 0.0, 128
      %1267 = vxpose.xlu0.b32.cont [5/16] 0.0, 128
      %1268 = vxpose.xlu0.b32.cont [6/16] 0.0, 128
      %1269 = vxpose.xlu0.b32.cont [7/16] 0.0, 128
      %1270 = vxpose.xlu0.b32.cont [8/16] 0.0, 128
      %1271 = vxpose.xlu0.b32.cont [9/16] 0.0, 128
      %1272 = vxpose.xlu0.b32.cont [10/16] 0.0, 128
      %1273 = vxpose.xlu0.b32.cont [11/16] 0.0, 128
      %1274 = vxpose.xlu0.b32.cont [12/16] 0.0, 128
      %1275 = vxpose.xlu0.b32.cont [13/16] 0.0, 128
      %1276 = vxpose.xlu0.b32.cont [14/16] 0.0, 128
      %1277 = vxpose.xlu0.b32.cont [15/16] 0.0, 128
      %1278 = vxpose.xlu0.b32.end [16/16] 0.0, 128
      %v1279 = vpop.trf.xlu0
      %v1280 = vpop.trf.xlu0
      %v1281 = vpop.trf.xlu0
      %v1282 = vpop.trf.xlu0
      %v1283 = vpop.trf.xlu0
      %v1284 = vpop.trf.xlu0
      %v1285 = vpop.trf.xlu0
      %v1286 = vpop.trf.xlu0
      %v1287 = vpop.trf.xlu0
      %v1288 = vpop.trf.xlu0
      %v1289 = vpop.trf.xlu0
      %v1290 = vpop.trf.xlu0
      %v1291 = vpop.trf.xlu0
      %v1292 = vpop.trf.xlu0
      %v1293 = vpop.trf.xlu0
      %v1294 = vpop.trf.xlu0
      %v1295 = vpack.c.bf16 %v1279, %v1279
      %1296 = vrot.lane.b32.xlu0 %v782, 104
      %v1297 = vpop.permute.xlu0 %1296
      %v1299 = vsel %vm717, %v1295, 0
      %v1302 = vsel %vm786, %v1297, 0
      %1304 = vmatprep.subr.bf16.mxu0 0
      %1305 = vmatpush1.bf16.msra.mxu0 %v1302
      %1306 = vmatprep.subr.bf16.mxu0 0
      %1307 = vmatpush1.bf16.msra.mxu0 0
      %1308 = vmatprep.subr.bf16.mxu0 0
      %1309 = vmatpush1.bf16.msra.mxu0 0
      %1310 = vmatprep.subr.bf16.mxu0 0
      %1311 = vmatpush1.bf16.msra.mxu0 0
      %1312 = vmatprep.subr.bf16.mxu0 0
      %1313 = vmatpush1.bf16.msra.mxu0 0
      %1314 = vmatprep.subr.bf16.mxu0 0
      %1315 = vmatpush1.bf16.msra.mxu0 0
      %1316 = vmatprep.subr.bf16.mxu0 0
      %1317 = vmatpush1.bf16.msra.mxu0 0
      %1318 = vmatprep.subr.bf16.mxu0 0
      %1319 = vmatpush1.bf16.msra.mxu0 0
      %1320 = vmatprep.subr.bf16.mxu0 0
      %1321 = vmatpush1.bf16.msra.mxu0 0
      %1322 = vmatprep.subr.bf16.mxu0 0
      %1323 = vmatpush1.bf16.msra.mxu0 0
      %1324 = vmatprep.subr.bf16.mxu0 0
      %1325 = vmatpush1.bf16.msra.mxu0 0
      %1326 = vmatprep.subr.bf16.mxu0 0
      %1327 = vmatpush1.bf16.msra.mxu0 0
      %1328 = vmatprep.subr.bf16.mxu0 0
      %1329 = vmatpush1.bf16.msra.mxu0 0
      %1330 = vmatprep.subr.bf16.mxu0 0
      %1331 = vmatpush1.bf16.msra.mxu0 0
      %1332 = vmatprep.subr.bf16.mxu0 0
      %1333 = vmatpush1.bf16.msra.mxu0 0
      %1334 = vmatprep.subr.bf16.mxu0 0
      %1335 = vmatpush1.bf16.msra.mxu0 0
      %1336 = vmatprep.mubr.bf16.mxu0 0
      %1337 = vmatmul.mubr.bf16.gmra.mrb[0].mxu0 %v1299
      %v1338 = vpop.f32.mrb[0].mxu0
      %v1339 = vadd.f32 0.0, %v1338
      %v1340 = vpop.f32.mrb[0].mxu0
      %v1341 = vpop.f32.mrb[0].mxu0
      %v1342 = vpop.f32.mrb[0].mxu0
      %1343 = vdwg.mxu0
      %v1344 = vpack.c.bf16 %v1239, %v1239
      %v1345 = vpack.c.bf16 %v1339, %v1339
      %1347 = vrot.lane.b32.xlu0 %v1344, 104
      %v1348 = vpop.permute.xlu0 %1347
      %v1350 = vsel %vm717, %v1348, 0
      %v1353 = vsel %vm786, %v1345, 0
      %1355 = vmatprep.subr.bf16.mxu0 0
      %1356 = vmatpush1.bf16.msra.mxu0 %v1353
      %1357 = vmatprep.subr.bf16.mxu0 0
      %1358 = vmatpush1.bf16.msra.mxu0 0
      %1359 = vmatprep.subr.bf16.mxu0 0
      %1360 = vmatpush1.bf16.msra.mxu0 0
      %1361 = vmatprep.subr.bf16.mxu0 0
      %1362 = vmatpush1.bf16.msra.mxu0 0
      %1363 = vmatprep.subr.bf16.mxu0 0
      %1364 = vmatpush1.bf16.msra.mxu0 0
      %1365 = vmatprep.subr.bf16.mxu0 0
      %1366 = vmatpush1.bf16.msra.mxu0 0
      %1367 = vmatprep.subr.bf16.mxu0 0
      %1368 = vmatpush1.bf16.msra.mxu0 0
      %1369 = vmatprep.subr.bf16.mxu0 0
      %1370 = vmatpush1.bf16.msra.mxu0 0
      %1371 = vmatprep.subr.bf16.mxu0 0
      %1372 = vmatpush1.bf16.msra.mxu0 0
      %1373 = vmatprep.subr.bf16.mxu0 0
      %1374 = vmatpush1.bf16.msra.mxu0 0
      %1375 = vmatprep.subr.bf16.mxu0 0
      %1376 = vmatpush1.bf16.msra.mxu0 0
      %1377 = vmatprep.subr.bf16.mxu0 0
      %1378 = vmatpush1.bf16.msra.mxu0 0
      %1379 = vmatprep.subr.bf16.mxu0 0
      %1380 = vmatpush1.bf16.msra.mxu0 0
      %1381 = vmatprep.subr.bf16.mxu0 0
      %1382 = vmatpush1.bf16.msra.mxu0 0
      %1383 = vmatprep.subr.bf16.mxu0 0
      %1384 = vmatpush1.bf16.msra.mxu0 0
      %1385 = vmatprep.subr.bf16.mxu0 0
      %1386 = vmatpush1.bf16.msra.mxu0 0
      %1387 = vmatprep.mubr.bf16.mxu0 0
      %1388 = vmatmul.mubr.bf16.gmra.mrb[0].mxu0 %v1350
      %v1389 = vpop.f32.mrb[0].mxu0
      %v1390 = vadd.f32 0.0, %v1389
      %v1391 = vpop.f32.mrb[0].mxu0
      %v1392 = vpop.f32.mrb[0].mxu0
      %v1393 = vpop.f32.mrb[0].mxu0
      %1394 = vdwg.mxu0
      %1396 = vrot.lane.b32.xlu0 %v1046, 8
      %v1397 = vpop.permute.xlu0 %1396
      %1400 = vrot.lane.b32.xlu0 %v1218, 16
      %v1401 = vpop.permute.xlu0 %1400
      %1404 = vrot.lane.b32.xlu0 %v1390, 24
      %v1405 = vpop.permute.xlu0 %1404
      %v1407 = vsel %vm717, %v873, %v1397
      %vm1408 = vcmask 130048
      %v1409 = vsel %vm1408, %v1407, %v1401
      %vm1410 = vcmask 195584
      %v1411 = vsel %vm1410, %v1409, %v1405
      %v1412 = vpack.c.bf16 %v1411, %v1411
      %v1413 = vld [vmem:[%s7] sm:$0xf]
      %v1414 = vld [vmem:[%s7 + $0x4] sm:$0xf]
      %v1415 = vld [vmem:[%s7 + $0x8] sm:$0xf]
      %v1416 = vld [vmem:[%s7 + $0xc] sm:$0xf]
      %v1421 = vunpack.c.l.b16 %v1413
      %v1422 = vunpack.c.l.b16 %v1414
      %v1423 = vunpack.c.l.b16 %v1415
      %v1424 = vunpack.c.l.b16 %v1416
      %v1425 = vpack.c.b16 %v1422, %v1421
      %v1426 = vpack.c.b16 %v1424, %v1423
      %v1430 = vsel %vm511, %v1412, 0
      %1432 = vmatprep.subr.bf16.mxu0 0
      %1433 = vmatpush1.bf16.msra.mxu0 %v1425
      %1434 = vmatprep.subr.bf16.mxu0 0
      %1435 = vmatpush1.bf16.msra.mxu0 %v1426
      %1436 = vmatprep.subr.bf16.mxu0 0
      %1437 = vmatpush1.bf16.msra.mxu0 0
      %1438 = vmatprep.subr.bf16.mxu0 0
      %1439 = vmatpush1.bf16.msra.mxu0 0
      %1440 = vmatprep.subr.bf16.mxu0 0
      %1441 = vmatpush1.bf16.msra.mxu0 0
      %1442 = vmatprep.subr.bf16.mxu0 0
      %1443 = vmatpush1.bf16.msra.mxu0 0
      %1444 = vmatprep.subr.bf16.mxu0 0
      %1445 = vmatpush1.bf16.msra.mxu0 0
      %1446 = vmatprep.subr.bf16.mxu0 0
      %1447 = vmatpush1.bf16.msra.mxu0 0
      %1448 = vmatprep.subr.bf16.mxu0 0
      %1449 = vmatpush1.bf16.msra.mxu0 0
      %1450 = vmatprep.subr.bf16.mxu0 0
      %1451 = vmatpush1.bf16.msra.mxu0 0
      %1452 = vmatprep.subr.bf16.mxu0 0
      %1453 = vmatpush1.bf16.msra.mxu0 0
      %1454 = vmatprep.subr.bf16.mxu0 0
      %1455 = vmatpush1.bf16.msra.mxu0 0
      %1456 = vmatprep.subr.bf16.mxu0 0
      %1457 = vmatpush1.bf16.msra.mxu0 0
      %1458 = vmatprep.subr.bf16.mxu0 0
      %1459 = vmatpush1.bf16.msra.mxu0 0
      %1460 = vmatprep.subr.bf16.mxu0 0
      %1461 = vmatpush1.bf16.msra.mxu0 0
      %1462 = vmatprep.subr.bf16.mxu0 0
      %1463 = vmatpush1.bf16.msra.mxu0 0
      %1464 = vmatprep.mubr.bf16.mxu0 0
      %1465 = vmatmul.mubr.bf16.gmra.mrb[0].mxu0 %v1430
      %v1466 = vpop.f32.mrb[0].mxu0
      %v1467 = vadd.f32 0.0, %v1466
      %v1468 = vpop.f32.mrb[0].mxu0
      %v1469 = vpop.f32.mrb[0].mxu0
      %v1470 = vpop.f32.mrb[0].mxu0
      %1471 = vdwg.mxu0
      %v1472 = vadd.f32 %v508, %v1467
      %v1473 = vld [vmem:[%s8] sm:$0x1]
      %v1475 = vlaneseq
      %v1476 = vshrl.u32 %v1475, 7
      %v1477 = vsub.s32 0, %v1476
      %v1478 = vrot.slane %v1473, %v1477
      %v1480 = vadd.f32 %v1472, %v1478
      %v1481 = vld [vmem:[%s9] sm:$0x1]
      %v1482 = vld [vmem:[%s10] sm:$0x1]
      %v1483 = vsel %vm511, %v1480, 0.0
      %1484 = vadd.xlane.f32.xlu0 %v1483
      %v1485 = vpop.xlane.xlu0 %1484
      %v1486 = vmul.f32 %v1485, %v515
      %v1487 = vsub.f32 %v1480, %v1486
      %v1488 = vmul.f32 %v1487, %v1487
      %v1489 = vsel %vm511, %v1488, 0.0
      %1490 = vadd.xlane.f32.xlu0 %v1489
      %v1491 = vpop.xlane.xlu0 %1490
      %v1492 = vmul.f32 %v1491, %v515
      %v1493 = vadd.f32 %v1492, 1e-05
      %v1494 = vrsqrt.pop %v1493
      %v1495 = vmul.f32 %v1487, %v1494
      %v1497 = vlaneseq
      %v1498 = vshrl.u32 %v1497, 7
      %v1499 = vsub.s32 0, %v1498
      %v1500 = vrot.slane %v1481, %v1499
      %v1502 = vmul.f32 %v1495, %v1500
      %v1504 = vlaneseq
      %v1505 = vshrl.u32 %v1504, 7
      %v1506 = vsub.s32 0, %v1505
      %v1507 = vrot.slane %v1482, %v1506
      %v1509 = vadd.f32 %v1502, %v1507
      %v1510 = vpack.c.bf16 %v1509, %v1509
      %v1511 = vld [vmem:[%s11] sm:$0xf]
      %v1512 = vld [vmem:[%s11 + $0x4] sm:$0xf]
      %v1513 = vld [vmem:[%s11 + $0x8] sm:$0xf]
      %v1514 = vld [vmem:[%s11 + $0xc] sm:$0xf]
      %v1515 = vld [vmem:[%s12] sm:$0x1]
      %v1517 = vlaneseq
      %v1518 = vshrl.u32 %v1517, 7
      %v1519 = vsub.s32 0, %v1518
      %v1520 = vrot.slane %v1515, %v1519
      %v1526 = vunpack.c.l.b16 %v1511
      %v1527 = vunpack.c.l.b16 %v1512
      %v1528 = vunpack.c.l.b16 %v1513
      %v1529 = vunpack.c.l.b16 %v1514
      %v1530 = vpack.c.b16 %v1527, %v1526
      %v1531 = vpack.c.b16 %v1529, %v1528
      %v1535 = vsel %vm511, %v1510, 0
      %1537 = vmatprep.subr.bf16.mxu0 0
      %1538 = vmatpush1.bf16.msra.mxu0 %v1530
      %1539 = vmatprep.subr.bf16.mxu0 0
      %1540 = vmatpush1.bf16.msra.mxu0 %v1531
      %1541 = vmatprep.subr.bf16.mxu0 0
      %1542 = vmatpush1.bf16.msra.mxu0 0
      %1543 = vmatprep.subr.bf16.mxu0 0
      %1544 = vmatpush1.bf16.msra.mxu0 0
      %1545 = vmatprep.subr.bf16.mxu0 0
      %1546 = vmatpush1.bf16.msra.mxu0 0
      %1547 = vmatprep.subr.bf16.mxu0 0
      %1548 = vmatpush1.bf16.msra.mxu0 0
      %1549 = vmatprep.subr.bf16.mxu0 0
      %1550 = vmatpush1.bf16.msra.mxu0 0
      %1551 = vmatprep.subr.bf16.mxu0 0
      %1552 = vmatpush1.bf16.msra.mxu0 0
      %1553 = vmatprep.subr.bf16.mxu0 0
      %1554 = vmatpush1.bf16.msra.mxu0 0
      %1555 = vmatprep.subr.bf16.mxu0 0
      %1556 = vmatpush1.bf16.msra.mxu0 0
      %1557 = vmatprep.subr.bf16.mxu0 0
      %1558 = vmatpush1.bf16.msra.mxu0 0
      %1559 = vmatprep.subr.bf16.mxu0 0
      %1560 = vmatpush1.bf16.msra.mxu0 0
      %1561 = vmatprep.subr.bf16.mxu0 0
      %1562 = vmatpush1.bf16.msra.mxu0 0
      %1563 = vmatprep.subr.bf16.mxu0 0
      %1564 = vmatpush1.bf16.msra.mxu0 0
      %1565 = vmatprep.subr.bf16.mxu0 0
      %1566 = vmatpush1.bf16.msra.mxu0 0
      %1567 = vmatprep.subr.bf16.mxu0 0
      %1568 = vmatpush1.bf16.msra.mxu0 0
      %1569 = vmatprep.mubr.bf16.mxu0 0
      %1570 = vmatmul.mubr.bf16.gmra.mrb[0].mxu0 %v1535
      %v1571 = vpop.f32.mrb[0].mxu0
      %v1572 = vadd.f32 %v1520, %v1571
      %v1573 = vpop.f32.mrb[0].mxu0
      %v1574 = vpop.f32.mrb[0].mxu0
      %v1575 = vpop.f32.mrb[0].mxu0
      %1576 = vdwg.mxu0
      %v1577 = vmul.f32 %v1572, %v1572
      %v1578 = vmul.f32 %v1572, %v1577
      %v1579 = vmul.f32 %v1578, 0.044715
      %v1580 = vadd.f32 %v1572, %v1579
      %v1581 = vmul.f32 %v1580, 0.7978846
      %v1582 = vtanh.pop %v1581
      %v1583 = vadd.f32 %v1582, 1.0
      %v1584 = vmul.f32 %v1583, 0.5
      %v1585 = vmul.f32 %v1572, %v1584
      %v1586 = vpack.c.bf16 %v1585, %v1585
      %v1587 = vld [vmem:[%s13] sm:$0xf]
      %v1588 = vld [vmem:[%s13 + $0x4] sm:$0xf]
      %v1589 = vld [vmem:[%s13 + $0x8] sm:$0xf]
      %v1590 = vld [vmem:[%s13 + $0xc] sm:$0xf]
      %v1591 = vld [vmem:[%s13 + $0x10] sm:$0xf]
      %v1592 = vld [vmem:[%s13 + $0x14] sm:$0xf]
      %v1593 = vld [vmem:[%s13 + $0x18] sm:$0xf]
      %v1594 = vld [vmem:[%s13 + $0x1c] sm:$0xf]
      %v1595 = vld [vmem:[%s13 + $0x20] sm:$0xf]
      %v1596 = vld [vmem:[%s13 + $0x24] sm:$0xf]
      %v1597 = vld [vmem:[%s13 + $0x28] sm:$0xf]
      %v1598 = vld [vmem:[%s13 + $0x2c] sm:$0xf]
      %v1599 = vld [vmem:[%s13 + $0x30] sm:$0xf]
      %v1600 = vld [vmem:[%s13 + $0x34] sm:$0xf]
      %v1601 = vld [vmem:[%s13 + $0x38] sm:$0xf]
      %v1602 = vld [vmem:[%s13 + $0x3c] sm:$0xf]
      %v1619 = vunpack.c.l.b16 %v1587
      %v1620 = vunpack.c.l.b16 %v1588
      %v1621 = vunpack.c.l.b16 %v1589
      %v1622 = vunpack.c.l.b16 %v1590
      %v1623 = vunpack.c.l.b16 %v1591
      %v1624 = vunpack.c.l.b16 %v1592
      %v1625 = vunpack.c.l.b16 %v1593
      %v1626 = vunpack.c.l.b16 %v1594
      %v1627 = vunpack.c.l.b16 %v1595
      %v1628 = vunpack.c.l.b16 %v1596
      %v1629 = vunpack.c.l.b16 %v1597
      %v1630 = vunpack.c.l.b16 %v1598
      %v1631 = vunpack.c.l.b16 %v1599
      %v1632 = vunpack.c.l.b16 %v1600
      %v1633 = vunpack.c.l.b16 %v1601
      %v1634 = vunpack.c.l.b16 %v1602
      %v1635 = vpack.c.b16 %v1620, %v1619
      %v1636 = vpack.c.b16 %v1622, %v1621
      %v1637 = vpack.c.b16 %v1624, %v1623
      %v1638 = vpack.c.b16 %v1626, %v1625
      %v1639 = vpack.c.b16 %v1628, %v1627
      %v1640 = vpack.c.b16 %v1630, %v1629
      %v1641 = vpack.c.b16 %v1632, %v1631
      %v1642 = vpack.c.b16 %v1634, %v1633
      %1651 = vmatprep.subr.bf16.mxu0 0
      %1652 = vmatpush1.bf16.msra.mxu0 %v1635
      %1653 = vmatprep.subr.bf16.mxu0 0
      %1654 = vmatpush1.bf16.msra.mxu0 %v1636
      %1655 = vmatprep.subr.bf16.mxu0 0
      %1656 = vmatpush1.bf16.msra.mxu0 %v1637
      %1657 = vmatprep.subr.bf16.mxu0 0
      %1658 = vmatpush1.bf16.msra.mxu0 %v1638
      %1659 = vmatprep.subr.bf16.mxu0 0
      %1660 = vmatpush1.bf16.msra.mxu0 %v1639
      %1661 = vmatprep.subr.bf16.mxu0 0
      %1662 = vmatpush1.bf16.msra.mxu0 %v1640
      %1663 = vmatprep.subr.bf16.mxu0 0
      %1664 = vmatpush1.bf16.msra.mxu0 %v1641
      %1665 = vmatprep.subr.bf16.mxu0 0
      %1666 = vmatpush1.bf16.msra.mxu0 %v1642
      %1667 = vmatprep.subr.bf16.mxu0 0
      %1668 = vmatpush1.bf16.msra.mxu0 0
      %1669 = vmatprep.subr.bf16.mxu0 0
      %1670 = vmatpush1.bf16.msra.mxu0 0
      %1671 = vmatprep.subr.bf16.mxu0 0
      %1672 = vmatpush1.bf16.msra.mxu0 0
      %1673 = vmatprep.subr.bf16.mxu0 0
      %1674 = vmatpush1.bf16.msra.mxu0 0
      %1675 = vmatprep.subr.bf16.mxu0 0
      %1676 = vmatpush1.bf16.msra.mxu0 0
      %1677 = vmatprep.subr.bf16.mxu0 0
      %1678 = vmatpush1.bf16.msra.mxu0 0
      %1679 = vmatprep.subr.bf16.mxu0 0
      %1680 = vmatpush1.bf16.msra.mxu0 0
      %1681 = vmatprep.subr.bf16.mxu0 0
      %1682 = vmatpush1.bf16.msra.mxu0 0
      %1683 = vmatprep.mubr.bf16.mxu0 0
      %1684 = vmatmul.mubr.bf16.gmra.mrb[0].mxu0 %v1586
      %v1685 = vpop.f32.mrb[0].mxu0
      %v1686 = vadd.f32 0.0, %v1685
      %v1687 = vpop.f32.mrb[0].mxu0
      %v1688 = vpop.f32.mrb[0].mxu0
      %v1689 = vpop.f32.mrb[0].mxu0
      %1690 = vdwg.mxu0
      %v1691 = vadd.f32 %v1480, %v1686
      %v1692 = vld [vmem:[%s14] sm:$0x1]
      %v1694 = vlaneseq
      %v1695 = vshrl.u32 %v1694, 7
      %v1696 = vsub.s32 0, %v1695
      %v1697 = vrot.slane %v1692, %v1696
      %v1699 = vadd.f32 %v1691, %v1697
      %1700 = vst.msk [vmem:[%s506] sm:$0xff] %vm511, %v1699
      %p1701 = scmp.lt.s32.totalorder %s26, 1
      %s1702 = scalar_select %p1701, %s26, 1
      %s1703 = smul.addr %s1702, 8
      %s1704 = scalar_lea.vmem %s15, %s1703
      // Predicated region
      $region81: #{run.10} parent=79 // pred_check
        %p1705 = pneg %p369
      $region82: #{run.10} parent=79 // pred_check_branch
        %1707 = sbr.rel (%p1705) target = $region84
      $region83: #{run.10} parent=79 // pred_region
        _
      $region84: #{run.10} parent=79 // pred_fallthru
        _
    $region80: #{run.10} parent=5 // pred_fallthru
      _
    %p1708 = scmp.le.s32.totalorder 2, %s21
    // Predicated region
    $region85: #{run.10} parent=5 // pred_check
      %p1709 = pneg %p1708
    $region86: #{run.10} parent=5 // pred_check_branch
      %1711 = sbr.rel (%p1709) target = $region88
    $region87: #{run.10} parent=5 // pred_region
      %s1712 = ssub.s32 %s21, 2
      // Predicated region
      $region89: #{run.10} parent=87 // pred_check
        %p1713 = pneg %p375
      $region90: #{run.10} parent=87 // pred_check_branch
        %1715 = sbr.rel (%p1713) target = $region92
      $region91: #{run.10} parent=87 // pred_region
        %p1716 = scmp.lt.s32.totalorder %s27, 1
        %s1717 = scalar_select %p1716, %s27, 1
        %s1718 = smul.addr %s1717, 8
        %s1719 = scalar_lea.vmem %s15, %s1718
      $region92: #{run.10} parent=87 // pred_fallthru
        _
    $region88: #{run.10} parent=5 // pred_fallthru
      _
  $region6: #{run.10} parent=0 // loop_footer
    %s25 = sadd.s32 1, %s21
  $region7: #{run.10} parent=0 // loop_footer_branch
    %20 = sbr.rel target = $region3
  $region8: #{run.10} parent=0 // loop_exit
    _

</llo_original>
